<compile_context>
chip_gen: v7x
topology: tpu7x:2x2x1
jax: 0.10.0
libtpu: 0.0.40
codegen_flags: <defaults>
</compile_context>

<pallas_src>
import functools

import jax
import jax.numpy as jnp
from jax import lax
from jax.experimental import pallas as pl
from jax.experimental.pallas import tpu as pltpu


@functools.lru_cache(maxsize=None)
def _vmem_limit():
    # Generation-aware scoped-VMEM limit (3/4 of physical), 32 MiB fallback.
    try:
        cap = int(pltpu.get_tpu_info().vmem_capacity_bytes)
        return (cap // 4) * 3
    except Exception:
        return 32 * 1024 * 1024


# --------------------------------------------------------------------------
# ConvTranspose2d(kernel_size=2, stride=2), channel-major.
#   out[b, co, 2i+di, 2j+dj] = sum_ci x[b, ci, i, j] * W[di, dj, ci, co] + bias
# One (4*Cout, Cin) @ (Cin, H*W) bf16 matmul per batch block; output is written
# in the sub-pixel ("block") layout (B, di*dj*Cout, H*W) — lane-dense — and the
# wrapper performs the tiny depth-to-space rearrangement.
# --------------------------------------------------------------------------
def _convt2x2_kernel(x_ref, w_ref, b_ref, o_ref):
    # x_ref: (1, Cin, N) f32;  w_ref: (4*Cout, Cin) bf16 rows ordered (di,dj,co)
    # b_ref: (4*Cout, 1) f32;  o_ref: (1, 4*Cout, N) bf16
    x = x_ref[0].astype(jnp.bfloat16)
    y = jnp.dot(w_ref[...], x, preferred_element_type=jnp.float32) + b_ref[...]
    o_ref[0] = y.astype(jnp.bfloat16)


def conv_transpose2x2_nchw(x_nchw, w4, b4):
    # x_nchw: (B, Cin, H, W) f32;  w4: (4*Cout, Cin) bf16;  b4: (4*Cout, 1) f32
    B, Cin, H, W = x_nchw.shape
    Cout = w4.shape[0] // 4
    N = H * W
    xf = x_nchw.reshape(B, Cin, N)                     # free, contiguous

    out = pl.pallas_call(
        _convt2x2_kernel,
        grid=(B,),
        in_specs=[
            pl.BlockSpec((1, Cin, N), lambda bi: (bi, 0, 0)),
            pl.BlockSpec((4 * Cout, Cin), lambda bi: (0, 0)),
            pl.BlockSpec((4 * Cout, 1), lambda bi: (0, 0)),
        ],
        out_specs=pl.BlockSpec((1, 4 * Cout, N), lambda bi: (bi, 0, 0)),
        out_shape=jax.ShapeDtypeStruct((B, 4 * Cout, N), jnp.bfloat16),
        compiler_params=pltpu.CompilerParams(
            dimension_semantics=("parallel",),
            vmem_limit_bytes=_vmem_limit()),
        cost_estimate=pl.CostEstimate(
            flops=2 * B * N * Cin * 4 * Cout,
            transcendentals=0,
            bytes_accessed=B * N * Cin * 4 + B * N * 4 * Cout * 2
                           + 4 * Cout * Cin * 2),
    )(xf, w4, b4)

    # depth-to-space: (B, di, dj, Cout, H, W) -> (B, Cout, 2H, 2W) -> (B,Cout,4N)
    out = out.reshape(B, 2, 2, Cout, H, W)
    out = jnp.transpose(out, (0, 3, 4, 1, 5, 2))       # (B, Cout, H, 2, W, 2)
    return out.reshape(B, Cout, 4 * N)


# --------------------------------------------------------------------------
# Conv2d(3x3, pad=1), channel-major, with fused input BatchNorm+ReLU (of the
# PREVIOUS layer) and fused per-batch BN statistics of its own output.
# --------------------------------------------------------------------------
def _conv3x3_fused_kernel(x_ref, masks_ref, scale_ref, shift_ref, w_ref, b_ref,
                          y_ref, stats_ref, pad_ref, *col,
                          H, W, Cin, Cout, apply_act, use_im2col):
    # x_ref:     (1, Cin, N) bf16 — raw previous activation (pre-BN), N = H*W
    # masks_ref: (2, N) bf16 — [left-column mask (j != 0); right mask (j != W-1)]
    # scale/shift: (Cin, 1) f32 — previous layer's folded BN affine
    # w_ref:     (Cout, 9*Cin) bf16, columns ordered (dy, dx, ci)
    # b_ref:     (Cout, 1) f32
    # y_ref:     (1, Cout, N) bf16 — raw conv output (pre-BN)
    # stats_ref: (1, Cout, 2) f32 — [sum over N ; sum of squares over N]
    # pad_ref:   VMEM (Cin, (H+2)*W + 2) bf16 — H-padded rows + 1-lane guards
    # col:       optional VMEM (9*Cin, N) bf16 im2col scratch (Cin < 128 path)
    N = H * W
    col_ref = col[0] if use_im2col else None

    x = x_ref[0]
    if apply_act:                        # previous layer's BatchNorm + ReLU
        x = jnp.maximum(x.astype(jnp.float32) * scale_ref[...] + shift_ref[...],
                        0.0).astype(jnp.bfloat16)

    # zero only the border lanes (interior is fully overwritten every step)
    base0 = 1 + W                        # [guard | top pad row | interior ...]
    pad_ref[:, 0:base0] = jnp.zeros((Cin, base0), jnp.bfloat16)
    pad_ref[:, base0 + N:base0 + N + W + 1] = jnp.zeros((Cin, W + 1),
                                                        jnp.bfloat16)
    pad_ref[:, base0:base0 + N] = x

    mask_l = masks_ref[0:1, :]           # zero where j == 0     (dx == 0 taps)
    mask_r = masks_ref[1:2, :]           # zero where j == W - 1 (dx == 2 taps)

    def tap(dy, dx):
        start = dy * W + dx              # static lane offset
        t = pad_ref[:, start:start + N]  # (Cin, N) bf16
        if dx == 0:
            t = t * mask_l
        elif dx == 2:
            t = t * mask_r
        return t

    if use_im2col:                       # K = 9*Cin fills the MXU for small Cin
        for dy in range(3):
            for dx in range(3):
                k = dy * 3 + dx
                col_ref[k * Cin:(k + 1) * Cin, :] = tap(dy, dx)
        acc = jnp.dot(w_ref[...], col_ref[...],
                      preferred_element_type=jnp.float32)        # (Cout, N)
    else:                                # big-Cin path: no im2col scratch
        acc = jnp.zeros((Cout, N), jnp.float32)
        for dy in range(3):
            for dx in range(3):
                k = dy * 3 + dx
                acc = acc + jnp.dot(w_ref[:, k * Cin:(k + 1) * Cin], tap(dy, dx),
                                    preferred_element_type=jnp.float32)

    acc = acc + b_ref[...]

    # per-batch partial BN statistics (f32, from the f32 accumulator)
    stats_ref[0, :, 0:1] = jnp.sum(acc, axis=1, keepdims=True)
    stats_ref[0, :, 1:2] = jnp.sum(acc * acc, axis=1, keepdims=True)

    # lane-dense bf16 activation writeback
    y_ref[0] = acc.astype(jnp.bfloat16)


def conv3x3_bn_stats(x, scale_in, shift_in, w2, b2, *, H, W, apply_act):
    # x: (B, Cin, H*W) bf16;  scale_in/shift_in: (Cin,) f32
    # w2: (Cout, 9*Cin) bf16 (pre-laid-out);  b2: (Cout, 1) f32
    B = x.shape[0]
    Cin = x.shape[1]
    Cout = w2.shape[0]
    N = H * W
    use_im2col = Cin < 128

    # boundary masks for the left/right column padding (constant under jit)
    j = jnp.arange(N, dtype=jnp.int32) % W
    masks = jnp.stack([(j != 0), (j != W - 1)], axis=0).astype(jnp.bfloat16)

    scratch = [pltpu.VMEM((Cin, (H + 2) * W + 2), jnp.bfloat16)]
    if use_im2col:
        scratch.append(pltpu.VMEM((9 * Cin, N), jnp.bfloat16))

    kern = functools.partial(_conv3x3_fused_kernel, H=H, W=W, Cin=Cin, Cout=Cout,
                             apply_act=apply_act, use_im2col=use_im2col)

    y, stats = pl.pallas_call(
        kern,
        grid=(B,),
        in_specs=[
            pl.BlockSpec((1, Cin, N), lambda bi: (bi, 0, 0)),
            pl.BlockSpec((2, N), lambda bi: (0, 0)),
            pl.BlockSpec((Cin, 1), lambda bi: (0, 0)),
            pl.BlockSpec((Cin, 1), lambda bi: (0, 0)),
            pl.BlockSpec((Cout, 9 * Cin), lambda bi: (0, 0)),
            pl.BlockSpec((Cout, 1), lambda bi: (0, 0)),
        ],
        out_specs=[
            pl.BlockSpec((1, Cout, N), lambda bi: (bi, 0, 0)),
            pl.BlockSpec((1, Cout, 2), lambda bi: (bi, 0, 0)),
        ],
        out_shape=[
            jax.ShapeDtypeStruct((B, Cout, N), jnp.bfloat16),
            jax.ShapeDtypeStruct((B, Cout, 2), jnp.float32),
        ],
        scratch_shapes=scratch,
        compiler_params=pltpu.CompilerParams(
            dimension_semantics=("parallel",),
            vmem_limit_bytes=_vmem_limit()),
        cost_estimate=pl.CostEstimate(
            flops=2 * B * N * 9 * Cin * Cout,
            transcendentals=0,
            bytes_accessed=B * N * (Cin + Cout) * 2 + Cout * 9 * Cin * 2
                           + B * Cout * 2 * 4),
    )(x, masks,
      scale_in.reshape(Cin, 1).astype(jnp.float32),
      shift_in.reshape(Cin, 1).astype(jnp.float32),
      w2, b2)
    return y, stats


def bn_affine_from_stats(stats, gamma, beta, count, eps=1e-5):
    # stats: (B, C, 2) per-batch partial [sum ; sumsq] -> folded affine
    s = jnp.sum(stats, axis=0)                          # (C, 2)
    mean = s[:, 0] / count
    var = jnp.maximum(s[:, 1] / count - mean * mean, 0.0)   # biased (training)
    scale = gamma * lax.rsqrt(var + eps)
    shift = beta - mean * scale
    return scale, shift


# --------------------------------------------------------------------------
# Last layer's folded BatchNorm + ReLU, channel-major (writes NCHW natively).
# --------------------------------------------------------------------------
def _bn_relu_kernel(x_ref, scale_ref, shift_ref, o_ref):
    # x_ref: (1, C, N) bf16;  scale/shift: (C, 1) f32;  o_ref: (1, C, N) f32
    o_ref[0] = jnp.maximum(
        x_ref[0].astype(jnp.float32) * scale_ref[...] + shift_ref[...], 0.0)


def bn_relu_nchw(x, scale, shift, *, H, W):
    B, C, N = x.shape
    out = pl.pallas_call(
        _bn_relu_kernel,
        grid=(B,),
        in_specs=[
            pl.BlockSpec((1, C, N), lambda bi: (bi, 0, 0)),
            pl.BlockSpec((C, 1), lambda bi: (0, 0)),
            pl.BlockSpec((C, 1), lambda bi: (0, 0)),
        ],
        out_specs=pl.BlockSpec((1, C, N), lambda bi: (bi, 0, 0)),
        out_shape=jax.ShapeDtypeStruct((B, C, N), jnp.float32),
        compiler_params=pltpu.CompilerParams(
            dimension_semantics=("parallel",),
            vmem_limit_bytes=_vmem_limit()),
    )(x, scale.reshape(C, 1).astype(jnp.float32),
      shift.reshape(C, 1).astype(jnp.float32))
    return out.reshape(B, C, H, W)


# --------------------------------------------------------------------------
# Parameter init, one-time layout prep, and full decoder block forward
# --------------------------------------------------------------------------
def init_decoder_params(key, in_channels, out_channels, num_conv_layers):
    mid = in_channels // 2
    params = {}
    keys = jax.random.split(key, 2 + 4 * max(num_conv_layers, 2))

    params["convt_w"] = 0.1 * jax.random.normal(
        keys[0], (2, 2, in_channels, in_channels), jnp.float32)   # (di,dj,ci,co)
    params["convt_b"] = 0.1 * jax.random.normal(
        keys[1], (in_channels,), jnp.float32)

    # Mirrors the PyTorch list construction (negative repeats collapse to []).
    chans = ([(in_channels, mid)]
             + [(mid, mid)] * (num_conv_layers - 2)
             + [(mid, out_channels)])
    convs = []
    for li, (cin, cout) in enumerate(chans):
        kw, kb, kg, kt = keys[2 + 4 * li: 2 + 4 * li + 4]
        w = 0.1 * jax.random.normal(kw, (3, 3, cin, cout), jnp.float32)
        b = 0.1 * jax.random.normal(kb, (cout,), jnp.float32)
        gamma = 1.0 + 0.1 * jax.random.normal(kg, (cout,), jnp.float32)
        beta = 0.1 * jax.random.normal(kt, (cout,), jnp.float32)
        convs.append((w, b, gamma, beta))
    params["convs"] = convs
    return params


def prepare_params(params):
    """One-time weight layout prep (hoisted out of the forward path)."""
    wt = params["convt_w"]                                # (2,2,Cin,Cout)
    cin, cout = wt.shape[2], wt.shape[3]
    prep = {
        # rows ordered (di, dj, co)
        "convt_w": jnp.transpose(wt, (0, 1, 3, 2)).reshape(
            4 * cout, cin).astype(jnp.bfloat16),
        "convt_b": jnp.tile(params["convt_b"], 4).reshape(
            4 * cout, 1).astype(jnp.float32),
        "convs": [],
    }
    for (w, b, gamma, beta) in params["convs"]:
        ci, co = w.shape[2], w.shape[3]
        prep["convs"].append({
            # columns ordered (dy, dx, ci)
            "w": jnp.transpose(w, (3, 0, 1, 2)).reshape(
                co, 9 * ci).astype(jnp.bfloat16),
            "b": b.reshape(co, 1).astype(jnp.float32),
            "gamma": gamma.astype(jnp.float32),
            "beta": beta.astype(jnp.float32),
        })
    return prep


def decoder_block_forward(x_nchw, prep):
    # x_nchw: (B, Cin, H, W) -> (B, Cout, 2H, 2W), everything stays channel-major
    B, _, H, W = x_nchw.shape

    x = conv_transpose2x2_nchw(x_nchw, prep["convt_w"], prep["convt_b"])
    H2, W2 = 2 * H, 2 * W
    count = float(B * H2 * W2)

    cin = x.shape[1]
    scale = jnp.ones((cin,), jnp.float32)                 # convT output: no BN/ReLU
    shift = jnp.zeros((cin,), jnp.float32)
    for li, cp in enumerate(prep["convs"]):
        apply_act = li > 0
        x, stats = conv3x3_bn_stats(x, scale, shift, cp["w"], cp["b"],
                                    H=H2, W=W2, apply_act=apply_act)
        scale, shift = bn_affine_from_stats(stats, cp["gamma"], cp["beta"], count)

    # last layer's BatchNorm + ReLU, written NCHW natively
    return bn_relu_nchw(x, scale, shift, H=H2, W=W2)


if __name__ == "__main__":
    in_channels, out_channels, num_conv_layers = 8, 4, 3
    B, H, W = 2, 16, 16

    key = jax.random.PRNGKey(0)
    k_x, k_p = jax.random.split(key)
    x = jax.random.normal(k_x, (B, in_channels, H, W), jnp.float32)
    params = init_decoder_params(k_p, in_channels, out_channels, num_conv_layers)
    prep = prepare_params(params)                         # one-time layout prep

    fwd = jax.jit(decoder_block_forward)
    out = jax.block_until_ready(fwd(x, prep))

    assert out.shape == (B, out_channels, 2 * H, 2 * W), out.shape
    assert bool(jnp.all(jnp.isfinite(out)))
    print("KERNEL_OK")
</pallas_src>

<mosaic_0001>
module attributes {stable_mosaic.version = 11 : i64} {
  func.func @_convt2x2_kernel(%arg0: i32, %arg1: memref<1x8x256xf32, #tpu.memory_space<vmem>>, %arg2: memref<32x8xbf16, #tpu.memory_space<vmem>>, %arg3: memref<32x1xf32, #tpu.memory_space<vmem>>, %arg4: memref<1x32x256xbf16, #tpu.memory_space<vmem>>) attributes {dimension_semantics = [#tpu.dimension_semantics<parallel>], iteration_bounds = array<i64: 2>, scalar_prefetch = 0 : i64, scratch_operands = 0 : i64, tpu.core_type = #tpu.core_type<tc>, window_params = [{transform_indices = @transform_0, window_bounds = array<i64: 1, 8, 256>}, {pipeline_mode = #tpu.pipeline_mode<synchronous>, transform_indices = @transform_1, window_bounds = array<i64: 32, 8>}, {pipeline_mode = #tpu.pipeline_mode<synchronous>, transform_indices = @transform_2, window_bounds = array<i64: 32, 1>}, {transform_indices = @transform_3, window_bounds = array<i64: 1, 32, 256>}]} {
    %c0 = arith.constant 0 : index
    %c0_0 = arith.constant 0 : index
    %c0_1 = arith.constant 0 : index
    %0 = vector.load %arg1[%c0, %c0_0, %c0_1] : memref<1x8x256xf32, #tpu.memory_space<vmem>>, vector<1x8x256xf32>
    %1 = vector.shape_cast %0 : vector<1x8x256xf32> to vector<8x256xf32>
    %2 = arith.truncf %1 : vector<8x256xf32> to vector<8x256xbf16>
    %c0_2 = arith.constant 0 : index
    %c0_3 = arith.constant 0 : index
    %3 = vector.load %arg2[%c0_2, %c0_3] : memref<32x8xbf16, #tpu.memory_space<vmem>>, vector<32x8xbf16>
    %cst = arith.constant dense<0.000000e+00> : vector<32x256xf32>
    %4 = tpu.matmul %3, %2, %cst {dimension_numbers = #tpu.dot_dimension_numbers<[1], [0], [0], [1], [0, 0, 1, 1], [], []>} : vector<32x8xbf16>, vector<8x256xbf16>, vector<32x256xf32> -> vector<32x256xf32>
    %c0_4 = arith.constant 0 : index
    %c0_5 = arith.constant 0 : index
    %5 = vector.load %arg3[%c0_4, %c0_5] : memref<32x1xf32, #tpu.memory_space<vmem>>, vector<32x1xf32>
    %6 = vector.broadcast %5 : vector<32x1xf32> to vector<32x256xf32>
    %7 = arith.addf %4, %6 : vector<32x256xf32>
    %8 = arith.truncf %7 : vector<32x256xf32> to vector<32x256xbf16>
    %c0_6 = arith.constant 0 : index
    %c0_7 = arith.constant 0 : index
    %c0_8 = arith.constant 0 : index
    %9 = vector.load %arg4[%c0_6, %c0_7, %c0_8] : memref<1x32x256xbf16, #tpu.memory_space<vmem>>, vector<1x32x256xbf16>
    %10 = vector.shape_cast %9 : vector<1x32x256xbf16> to vector<32x256xbf16>
    %11 = vector.shape_cast %8 : vector<32x256xbf16> to vector<1x32x256xbf16>
    tpu.vector_store %arg4[%c0_6, %c0_7, %c0_8], %11 {strides = array<i32>} : memref<1x32x256xbf16, #tpu.memory_space<vmem>>, vector<1x32x256xbf16>,
    return
  }
  func.func @transform_0(%arg0: i32) -> (i32, i32, i32) {
    %c0_i32 = arith.constant 0 : i32
    %c0_i32_0 = arith.constant 0 : i32
    %c0_i32_1 = arith.constant 0 : i32
    return %arg0, %c0_i32, %c0_i32_0 : i32, i32, i32
  }
  func.func @transform_1(%arg0: i32) -> (i32, i32) {
    %c0_i32 = arith.constant 0 : i32
    %c0_i32_0 = arith.constant 0 : i32
    %c0_i32_1 = arith.constant 0 : i32
    return %c0_i32, %c0_i32_0 : i32, i32
  }
  func.func @transform_2(%arg0: i32) -> (i32, i32) {
    %c0_i32 = arith.constant 0 : i32
    %c0_i32_0 = arith.constant 0 : i32
    %c0_i32_1 = arith.constant 0 : i32
    return %c0_i32, %c0_i32_0 : i32, i32
  }
  func.func @transform_3(%arg0: i32) -> (i32, i32, i32) {
    %c0_i32 = arith.constant 0 : i32
    %c0_i32_0 = arith.constant 0 : i32
    %c0_i32_1 = arith.constant 0 : i32
    return %arg0, %c0_i32, %c0_i32_0 : i32, i32, i32
  }
}

module attributes {stable_mosaic.version = 11 : i64} {
  func.func @_conv3x3_fused_kernel(%arg0: i32, %arg1: memref<1x8x1024xbf16, #tpu.memory_space<vmem>>, %arg2: memref<2x1024xbf16, #tpu.memory_space<vmem>>, %arg3: memref<8x1xf32, #tpu.memory_space<vmem>>, %arg4: memref<8x1xf32, #tpu.memory_space<vmem>>, %arg5: memref<4x72xbf16, #tpu.memory_space<vmem>>, %arg6: memref<4x1xf32, #tpu.memory_space<vmem>>, %arg7: memref<1x4x1024xbf16, #tpu.memory_space<vmem>>, %arg8: memref<1x4x2xf32, #tpu.memory_space<vmem>>, %arg9: memref<8x1090xbf16, #tpu.memory_space<vmem>>, %arg10: memref<72x1024xbf16, #tpu.memory_space<vmem>>) attributes {dimension_semantics = [#tpu.dimension_semantics<parallel>], iteration_bounds = array<i64: 2>, scalar_prefetch = 0 : i64, scratch_operands = 2 : i64, tpu.core_type = #tpu.core_type<tc>, window_params = [{transform_indices = @transform_0, window_bounds = array<i64: 1, 8, 1024>}, {pipeline_mode = #tpu.pipeline_mode<synchronous>, transform_indices = @transform_1, window_bounds = array<i64: 2, 1024>}, {pipeline_mode = #tpu.pipeline_mode<synchronous>, transform_indices = @transform_2, window_bounds = array<i64: 8, 1>}, {pipeline_mode = #tpu.pipeline_mode<synchronous>, transform_indices = @transform_3, window_bounds = array<i64: 8, 1>}, {pipeline_mode = #tpu.pipeline_mode<synchronous>, transform_indices = @transform_4, window_bounds = array<i64: 4, 72>}, {pipeline_mode = #tpu.pipeline_mode<synchronous>, transform_indices = @transform_5, window_bounds = array<i64: 4, 1>}, {transform_indices = @transform_6, window_bounds = array<i64: 1, 4, 1024>}, {transform_indices = @transform_7, window_bounds = array<i64: 1, 4, 2>}]} {
    %c0 = arith.constant 0 : index
    %c0_0 = arith.constant 0 : index
    %c0_1 = arith.constant 0 : index
    %0 = vector.load %arg1[%c0, %c0_0, %c0_1] : memref<1x8x1024xbf16, #tpu.memory_space<vmem>>, vector<1x8x1024xbf16>
    %1 = vector.shape_cast %0 : vector<1x8x1024xbf16> to vector<8x1024xbf16>
    %cst = arith.constant 0.000000e+00 : bf16
    %2 = vector.broadcast %cst : bf16 to vector<8x33xbf16>
    %c0_2 = arith.constant 0 : index
    %c0_3 = arith.constant 0 : index
    %3 = vector.load %arg9[%c0_2, %c0_3] : memref<8x1090xbf16, #tpu.memory_space<vmem>>, vector<8x33xbf16>
    tpu.vector_store %arg9[%c0_2, %c0_3], %2 {strides = array<i32>} : memref<8x1090xbf16, #tpu.memory_space<vmem>>, vector<8x33xbf16>,
    %cst_4 = arith.constant 0.000000e+00 : bf16
    %4 = vector.broadcast %cst_4 : bf16 to vector<8x33xbf16>
    %c0_5 = arith.constant 0 : index
    %c1057 = arith.constant 1057 : index
    %5 = vector.load %arg9[%c0_5, %c1057] : memref<8x1090xbf16, #tpu.memory_space<vmem>>, vector<8x33xbf16>
    tpu.vector_store %arg9[%c0_5, %c1057], %4 {strides = array<i32>} : memref<8x1090xbf16, #tpu.memory_space<vmem>>, vector<8x33xbf16>,
    %c0_6 = arith.constant 0 : index
    %c33 = arith.constant 33 : index
    %6 = vector.load %arg9[%c0_6, %c33] : memref<8x1090xbf16, #tpu.memory_space<vmem>>, vector<8x1024xbf16>
    tpu.vector_store %arg9[%c0_6, %c33], %1 {strides = array<i32>} : memref<8x1090xbf16, #tpu.memory_space<vmem>>, vector<8x1024xbf16>,
    %c0_7 = arith.constant 0 : index
    %c0_8 = arith.constant 0 : index
    %7 = vector.load %arg2[%c0_7, %c0_8] : memref<2x1024xbf16, #tpu.memory_space<vmem>>, vector<1x1024xbf16>
    %c1 = arith.constant 1 : index
    %c0_9 = arith.constant 0 : index
    %8 = vector.load %arg2[%c1, %c0_9] : memref<2x1024xbf16, #tpu.memory_space<vmem>>, vector<1x1024xbf16>
    %c0_10 = arith.constant 0 : index
    %c0_11 = arith.constant 0 : index
    %9 = vector.load %arg9[%c0_10, %c0_11] : memref<8x1090xbf16, #tpu.memory_space<vmem>>, vector<8x1024xbf16>
    %10 = vector.broadcast %7 : vector<1x1024xbf16> to vector<8x1024xbf16>
    %11 = arith.mulf %9, %10 : vector<8x1024xbf16>
    %c0_12 = arith.constant 0 : index
    %c0_13 = arith.constant 0 : index
    %12 = vector.load %arg10[%c0_12, %c0_13] : memref<72x1024xbf16, #tpu.memory_space<vmem>>, vector<8x1024xbf16>
    tpu.vector_store %arg10[%c0_12, %c0_13], %11 {strides = array<i32>} : memref<72x1024xbf16, #tpu.memory_space<vmem>>, vector<8x1024xbf16>,
    %c0_14 = arith.constant 0 : index
    %c1_15 = arith.constant 1 : index
    %13 = vector.load %arg9[%c0_14, %c1_15] : memref<8x1090xbf16, #tpu.memory_space<vmem>>, vector<8x1024xbf16>
    %c8 = arith.constant 8 : index
    %c0_16 = arith.constant 0 : index
    %14 = vector.load %arg10[%c8, %c0_16] : memref<72x1024xbf16, #tpu.memory_space<vmem>>, vector<8x1024xbf16>
    tpu.vector_store %arg10[%c8, %c0_16], %13 {strides = array<i32>} : memref<72x1024xbf16, #tpu.memory_space<vmem>>, vector<8x1024xbf16>,
    %c0_17 = arith.constant 0 : index
    %c2 = arith.constant 2 : index
    %15 = vector.load %arg9[%c0_17, %c2] : memref<8x1090xbf16, #tpu.memory_space<vmem>>, vector<8x1024xbf16>
    %16 = vector.broadcast %8 : vector<1x1024xbf16> to vector<8x1024xbf16>
    %17 = arith.mulf %15, %16 : vector<8x1024xbf16>
    %c16 = arith.constant 16 : index
    %c0_18 = arith.constant 0 : index
    %18 = vector.load %arg10[%c16, %c0_18] : memref<72x1024xbf16, #tpu.memory_space<vmem>>, vector<8x1024xbf16>
    tpu.vector_store %arg10[%c16, %c0_18], %17 {strides = array<i32>} : memref<72x1024xbf16, #tpu.memory_space<vmem>>, vector<8x1024xbf16>,
    %c0_19 = arith.constant 0 : index
    %c32 = arith.constant 32 : index
    %19 = vector.load %arg9[%c0_19, %c32] : memref<8x1090xbf16, #tpu.memory_space<vmem>>, vector<8x1024xbf16>
    %20 = vector.broadcast %7 : vector<1x1024xbf16> to vector<8x1024xbf16>
    %21 = arith.mulf %19, %20 : vector<8x1024xbf16>
    %c24 = arith.constant 24 : index
    %c0_20 = arith.constant 0 : index
    %22 = vector.load %arg10[%c24, %c0_20] : memref<72x1024xbf16, #tpu.memory_space<vmem>>, vector<8x1024xbf16>
    tpu.vector_store %arg10[%c24, %c0_20], %21 {strides = array<i32>} : memref<72x1024xbf16, #tpu.memory_space<vmem>>, vector<8x1024xbf16>,
    %c0_21 = arith.constant 0 : index
    %c33_22 = arith.constant 33 : index
    %23 = vector.load %arg9[%c0_21, %c33_22] : memref<8x1090xbf16, #tpu.memory_space<vmem>>, vector<8x1024xbf16>
    %c32_23 = arith.constant 32 : index
    %c0_24 = arith.constant 0 : index
    %24 = vector.load %arg10[%c32_23, %c0_24] : memref<72x1024xbf16, #tpu.memory_space<vmem>>, vector<8x1024xbf16>
    tpu.vector_store %arg10[%c32_23, %c0_24], %23 {strides = array<i32>} : memref<72x1024xbf16, #tpu.memory_space<vmem>>, vector<8x1024xbf16>,
    %c0_25 = arith.constant 0 : index
    %c34 = arith.constant 34 : index
    %25 = vector.load %arg9[%c0_25, %c34] : memref<8x1090xbf16, #tpu.memory_space<vmem>>, vector<8x1024xbf16>
    %26 = vector.broadcast %8 : vector<1x1024xbf16> to vector<8x1024xbf16>
    %27 = arith.mulf %25, %26 : vector<8x1024xbf16>
    %c40 = arith.constant 40 : index
    %c0_26 = arith.constant 0 : index
    %28 = vector.load %arg10[%c40, %c0_26] : memref<72x1024xbf16, #tpu.memory_space<vmem>>, vector<8x1024xbf16>
    tpu.vector_store %arg10[%c40, %c0_26], %27 {strides = array<i32>} : memref<72x1024xbf16, #tpu.memory_space<vmem>>, vector<8x1024xbf16>,
    %c0_27 = arith.constant 0 : index
    %c64 = arith.constant 64 : index
    %29 = vector.load %arg9[%c0_27, %c64] : memref<8x1090xbf16, #tpu.memory_space<vmem>>, vector<8x1024xbf16>
    %30 = vector.broadcast %7 : vector<1x1024xbf16> to vector<8x1024xbf16>
    %31 = arith.mulf %29, %30 : vector<8x1024xbf16>
    %c48 = arith.constant 48 : index
    %c0_28 = arith.constant 0 : index
    %32 = vector.load %arg10[%c48, %c0_28] : memref<72x1024xbf16, #tpu.memory_space<vmem>>, vector<8x1024xbf16>
    tpu.vector_store %arg10[%c48, %c0_28], %31 {strides = array<i32>} : memref<72x1024xbf16, #tpu.memory_space<vmem>>, vector<8x1024xbf16>,
    %c0_29 = arith.constant 0 : index
    %c65 = arith.constant 65 : index
    %33 = vector.load %arg9[%c0_29, %c65] : memref<8x1090xbf16, #tpu.memory_space<vmem>>, vector<8x1024xbf16>
    %c56 = arith.constant 56 : index
    %c0_30 = arith.constant 0 : index
    %34 = vector.load %arg10[%c56, %c0_30] : memref<72x1024xbf16, #tpu.memory_space<vmem>>, vector<8x1024xbf16>
    tpu.vector_store %arg10[%c56, %c0_30], %33 {strides = array<i32>} : memref<72x1024xbf16, #tpu.memory_space<vmem>>, vector<8x1024xbf16>,
    %c0_31 = arith.constant 0 : index
    %c66 = arith.constant 66 : index
    %35 = vector.load %arg9[%c0_31, %c66] : memref<8x1090xbf16, #tpu.memory_space<vmem>>, vector<8x1024xbf16>
    %36 = vector.broadcast %8 : vector<1x1024xbf16> to vector<8x1024xbf16>
    %37 = arith.mulf %35, %36 : vector<8x1024xbf16>
    %c64_32 = arith.constant 64 : index
    %c0_33 = arith.constant 0 : index
    %38 = vector.load %arg10[%c64_32, %c0_33] : memref<72x1024xbf16, #tpu.memory_space<vmem>>, vector<8x1024xbf16>
    tpu.vector_store %arg10[%c64_32, %c0_33], %37 {strides = array<i32>} : memref<72x1024xbf16, #tpu.memory_space<vmem>>, vector<8x1024xbf16>,
    %c0_34 = arith.constant 0 : index
    %c0_35 = arith.constant 0 : index
    %39 = vector.load %arg5[%c0_34, %c0_35] : memref<4x72xbf16, #tpu.memory_space<vmem>>, vector<4x72xbf16>
    %c0_36 = arith.constant 0 : index
    %c0_37 = arith.constant 0 : index
    %40 = vector.load %arg10[%c0_36, %c0_37] : memref<72x1024xbf16, #tpu.memory_space<vmem>>, vector<72x1024xbf16>
    %cst_38 = arith.constant dense<0.000000e+00> : vector<4x1024xf32>
    %41 = tpu.matmul %39, %40, %cst_38 {dimension_numbers = #tpu.dot_dimension_numbers<[1], [0], [0], [1], [0, 0, 1, 1], [], []>} : vector<4x72xbf16>, vector<72x1024xbf16>, vector<4x1024xf32> -> vector<4x1024xf32>
    %c0_39 = arith.constant 0 : index
    %c0_40 = arith.constant 0 : index
    %42 = vector.load %arg6[%c0_39, %c0_40] : memref<4x1xf32, #tpu.memory_space<vmem>>, vector<4x1xf32>
    %43 = vector.broadcast %42 : vector<4x1xf32> to vector<4x1024xf32>
    %44 = arith.addf %41, %43 : vector<4x1024xf32>
    %cst_41 = arith.constant dense<0.000000e+00> : vector<4xf32>
    %45 = vector.multi_reduction <add>, %44, %cst_41 [1] : vector<4x1024xf32> to vector<4xf32>
    %46 = vector.shape_cast %45 : vector<4xf32> to vector<4x1xf32>
    %c0_42 = arith.constant 0 : index
    %c0_43 = arith.constant 0 : index
    %c0_44 = arith.constant 0 : index
    %47 = vector.load %arg8[%c0_42, %c0_43, %c0_44] : memref<1x4x2xf32, #tpu.memory_space<vmem>>, vector<1x4x1xf32>
    %48 = vector.shape_cast %47 : vector<1x4x1xf32> to vector<4x1xf32>
    %49 = vector.shape_cast %46 : vector<4x1xf32> to vector<1x4x1xf32>
    tpu.vector_store %arg8[%c0_42, %c0_43, %c0_44], %49 {strides = array<i32>} : memref<1x4x2xf32, #tpu.memory_space<vmem>>, vector<1x4x1xf32>,
    %50 = arith.mulf %44, %44 : vector<4x1024xf32>
    %cst_45 = arith.constant dense<0.000000e+00> : vector<4xf32>
    %51 = vector.multi_reduction <add>, %50, %cst_45 [1] : vector<4x1024xf32> to vector<4xf32>
    %52 = vector.shape_cast %51 : vector<4xf32> to vector<4x1xf32>
    %c0_46 = arith.constant 0 : index
    %c0_47 = arith.constant 0 : index
    %c1_48 = arith.constant 1 : index
    %53 = vector.load %arg8[%c0_46, %c0_47, %c1_48] : memref<1x4x2xf32, #tpu.memory_space<vmem>>, vector<1x4x1xf32>
    %54 = vector.shape_cast %53 : vector<1x4x1xf32> to vector<4x1xf32>
    %55 = vector.shape_cast %52 : vector<4x1xf32> to vector<1x4x1xf32>
    tpu.vector_store %arg8[%c0_46, %c0_47, %c1_48], %55 {strides = array<i32>} : memref<1x4x2xf32, #tpu.memory_space<vmem>>, vector<1x4x1xf32>,
    %56 = arith.truncf %44 : vector<4x1024xf32> to vector<4x1024xbf16>
    %c0_49 = arith.constant 0 : index
    %c0_50 = arith.constant 0 : index
    %c0_51 = arith.constant 0 : index
    %57 = vector.load %arg7[%c0_49, %c0_50, %c0_51] : memref<1x4x1024xbf16, #tpu.memory_space<vmem>>, vector<1x4x1024xbf16>
    %58 = vector.shape_cast %57 : vector<1x4x1024xbf16> to vector<4x1024xbf16>
    %59 = vector.shape_cast %56 : vector<4x1024xbf16> to vector<1x4x1024xbf16>
    tpu.vector_store %arg7[%c0_49, %c0_50, %c0_51], %59 {strides = array<i32>} : memref<1x4x1024xbf16, #tpu.memory_space<vmem>>, vector<1x4x1024xbf16>,
    return
  }
  func.func @transform_0(%arg0: i32) -> (i32, i32, i32) {
    %c0_i32 = arith.constant 0 : i32
    %c0_i32_0 = arith.constant 0 : i32
    %c0_i32_1 = arith.constant 0 : i32
    return %arg0, %c0_i32, %c0_i32_0 : i32, i32, i32
  }
  func.func @transform_1(%arg0: i32) -> (i32, i32) {
    %c0_i32 = arith.constant 0 : i32
    %c0_i32_0 = arith.constant 0 : i32
    %c0_i32_1 = arith.constant 0 : i32
    return %c0_i32, %c0_i32_0 : i32, i32
  }
  func.func @transform_2(%arg0: i32) -> (i32, i32) {
    %c0_i32 = arith.constant 0 : i32
    %c0_i32_0 = arith.constant 0 : i32
    %c0_i32_1 = arith.constant 0 : i32
    return %c0_i32, %c0_i32_0 : i32, i32
  }
  func.func @transform_3(%arg0: i32) -> (i32, i32) {
    %c0_i32 = arith.constant 0 : i32
    %c0_i32_0 = arith.constant 0 : i32
    %c0_i32_1 = arith.constant 0 : i32
    return %c0_i32, %c0_i32_0 : i32, i32
  }
  func.func @transform_4(%arg0: i32) -> (i32, i32) {
    %c0_i32 = arith.constant 0 : i32
    %c0_i32_0 = arith.constant 0 : i32
    %c0_i32_1 = arith.constant 0 : i32
    return %c0_i32, %c0_i32_0 : i32, i32
  }
  func.func @transform_5(%arg0: i32) -> (i32, i32) {
    %c0_i32 = arith.constant 0 : i32
    %c0_i32_0 = arith.constant 0 : i32
    %c0_i32_1 = arith.constant 0 : i32
    return %c0_i32, %c0_i32_0 : i32, i32
  }
  func.func @transform_6(%arg0: i32) -> (i32, i32, i32) {
    %c0_i32 = arith.constant 0 : i32
    %c0_i32_0 = arith.constant 0 : i32
    %c0_i32_1 = arith.constant 0 : i32
    return %arg0, %c0_i32, %c0_i32_0 : i32, i32, i32
  }
  func.func @transform_7(%arg0: i32) -> (i32, i32, i32) {
    %c0_i32 = arith.constant 0 : i32
    %c0_i32_0 = arith.constant 0 : i32
    %c0_i32_1 = arith.constant 0 : i32
    return %arg0, %c0_i32, %c0_i32_0 : i32, i32, i32
  }
}

module attributes {stable_mosaic.version = 11 : i64} {
  func.func @_conv3x3_fused_kernel(%arg0: i32, %arg1: memref<1x4x1024xbf16, #tpu.memory_space<vmem>>, %arg2: memref<2x1024xbf16, #tpu.memory_space<vmem>>, %arg3: memref<4x1xf32, #tpu.memory_space<vmem>>, %arg4: memref<4x1xf32, #tpu.memory_space<vmem>>, %arg5: memref<4x36xbf16, #tpu.memory_space<vmem>>, %arg6: memref<4x1xf32, #tpu.memory_space<vmem>>, %arg7: memref<1x4x1024xbf16, #tpu.memory_space<vmem>>, %arg8: memref<1x4x2xf32, #tpu.memory_space<vmem>>, %arg9: memref<4x1090xbf16, #tpu.memory_space<vmem>>, %arg10: memref<36x1024xbf16, #tpu.memory_space<vmem>>) attributes {dimension_semantics = [#tpu.dimension_semantics<parallel>], iteration_bounds = array<i64: 2>, scalar_prefetch = 0 : i64, scratch_operands = 2 : i64, tpu.core_type = #tpu.core_type<tc>, window_params = [{transform_indices = @transform_0, window_bounds = array<i64: 1, 4, 1024>}, {pipeline_mode = #tpu.pipeline_mode<synchronous>, transform_indices = @transform_1, window_bounds = array<i64: 2, 1024>}, {pipeline_mode = #tpu.pipeline_mode<synchronous>, transform_indices = @transform_2, window_bounds = array<i64: 4, 1>}, {pipeline_mode = #tpu.pipeline_mode<synchronous>, transform_indices = @transform_3, window_bounds = array<i64: 4, 1>}, {pipeline_mode = #tpu.pipeline_mode<synchronous>, transform_indices = @transform_4, window_bounds = array<i64: 4, 36>}, {pipeline_mode = #tpu.pipeline_mode<synchronous>, transform_indices = @transform_5, window_bounds = array<i64: 4, 1>}, {transform_indices = @transform_6, window_bounds = array<i64: 1, 4, 1024>}, {transform_indices = @transform_7, window_bounds = array<i64: 1, 4, 2>}]} {
    %c0 = arith.constant 0 : index
    %c0_0 = arith.constant 0 : index
    %c0_1 = arith.constant 0 : index
    %0 = vector.load %arg1[%c0, %c0_0, %c0_1] : memref<1x4x1024xbf16, #tpu.memory_space<vmem>>, vector<1x4x1024xbf16>
    %1 = vector.shape_cast %0 : vector<1x4x1024xbf16> to vector<4x1024xbf16>
    %2 = arith.extf %1 : vector<4x1024xbf16> to vector<4x1024xf32>
    %c0_2 = arith.constant 0 : index
    %c0_3 = arith.constant 0 : index
    %3 = vector.load %arg3[%c0_2, %c0_3] : memref<4x1xf32, #tpu.memory_space<vmem>>, vector<4x1xf32>
    %4 = vector.broadcast %3 : vector<4x1xf32> to vector<4x1024xf32>
    %5 = arith.mulf %2, %4 : vector<4x1024xf32>
    %c0_4 = arith.constant 0 : index
    %c0_5 = arith.constant 0 : index
    %6 = vector.load %arg4[%c0_4, %c0_5] : memref<4x1xf32, #tpu.memory_space<vmem>>, vector<4x1xf32>
    %7 = vector.broadcast %6 : vector<4x1xf32> to vector<4x1024xf32>
    %8 = arith.addf %5, %7 : vector<4x1024xf32>
    %cst = arith.constant 0.000000e+00 : f32
    %9 = vector.broadcast %cst : f32 to vector<4x1024xf32>
    %10 = arith.maximumf %8, %9 : vector<4x1024xf32>
    %11 = arith.truncf %10 : vector<4x1024xf32> to vector<4x1024xbf16>
    %cst_6 = arith.constant 0.000000e+00 : bf16
    %12 = vector.broadcast %cst_6 : bf16 to vector<4x33xbf16>
    %c0_7 = arith.constant 0 : index
    %c0_8 = arith.constant 0 : index
    %13 = vector.load %arg9[%c0_7, %c0_8] : memref<4x1090xbf16, #tpu.memory_space<vmem>>, vector<4x33xbf16>
    tpu.vector_store %arg9[%c0_7, %c0_8], %12 {strides = array<i32>} : memref<4x1090xbf16, #tpu.memory_space<vmem>>, vector<4x33xbf16>,
    %cst_9 = arith.constant 0.000000e+00 : bf16
    %14 = vector.broadcast %cst_9 : bf16 to vector<4x33xbf16>
    %c0_10 = arith.constant 0 : index
    %c1057 = arith.constant 1057 : index
    %15 = vector.load %arg9[%c0_10, %c1057] : memref<4x1090xbf16, #tpu.memory_space<vmem>>, vector<4x33xbf16>
    tpu.vector_store %arg9[%c0_10, %c1057], %14 {strides = array<i32>} : memref<4x1090xbf16, #tpu.memory_space<vmem>>, vector<4x33xbf16>,
    %c0_11 = arith.constant 0 : index
    %c33 = arith.constant 33 : index
    %16 = vector.load %arg9[%c0_11, %c33] : memref<4x1090xbf16, #tpu.memory_space<vmem>>, vector<4x1024xbf16>
    tpu.vector_store %arg9[%c0_11, %c33], %11 {strides = array<i32>} : memref<4x1090xbf16, #tpu.memory_space<vmem>>, vector<4x1024xbf16>,
    %c0_12 = arith.constant 0 : index
    %c0_13 = arith.constant 0 : index
    %17 = vector.load %arg2[%c0_12, %c0_13] : memref<2x1024xbf16, #tpu.memory_space<vmem>>, vector<1x1024xbf16>
    %c1 = arith.constant 1 : index
    %c0_14 = arith.constant 0 : index
    %18 = vector.load %arg2[%c1, %c0_14] : memref<2x1024xbf16, #tpu.memory_space<vmem>>, vector<1x1024xbf16>
    %c0_15 = arith.constant 0 : index
    %c0_16 = arith.constant 0 : index
    %19 = vector.load %arg9[%c0_15, %c0_16] : memref<4x1090xbf16, #tpu.memory_space<vmem>>, vector<4x1024xbf16>
    %20 = vector.broadcast %17 : vector<1x1024xbf16> to vector<4x1024xbf16>
    %21 = arith.mulf %19, %20 : vector<4x1024xbf16>
    %c0_17 = arith.constant 0 : index
    %c0_18 = arith.constant 0 : index
    %22 = vector.load %arg10[%c0_17, %c0_18] : memref<36x1024xbf16, #tpu.memory_space<vmem>>, vector<4x1024xbf16>
    tpu.vector_store %arg10[%c0_17, %c0_18], %21 {strides = array<i32>} : memref<36x1024xbf16, #tpu.memory_space<vmem>>, vector<4x1024xbf16>,
    %c0_19 = arith.constant 0 : index
    %c1_20 = arith.constant 1 : index
    %23 = vector.load %arg9[%c0_19, %c1_20] : memref<4x1090xbf16, #tpu.memory_space<vmem>>, vector<4x1024xbf16>
    %c4 = arith.constant 4 : index
    %c0_21 = arith.constant 0 : index
    %24 = vector.load %arg10[%c4, %c0_21] : memref<36x1024xbf16, #tpu.memory_space<vmem>>, vector<4x1024xbf16>
    tpu.vector_store %arg10[%c4, %c0_21], %23 {strides = array<i32>} : memref<36x1024xbf16, #tpu.memory_space<vmem>>, vector<4x1024xbf16>,
    %c0_22 = arith.constant 0 : index
    %c2 = arith.constant 2 : index
    %25 = vector.load %arg9[%c0_22, %c2] : memref<4x1090xbf16, #tpu.memory_space<vmem>>, vector<4x1024xbf16>
    %26 = vector.broadcast %18 : vector<1x1024xbf16> to vector<4x1024xbf16>
    %27 = arith.mulf %25, %26 : vector<4x1024xbf16>
    %c8 = arith.constant 8 : index
    %c0_23 = arith.constant 0 : index
    %28 = vector.load %arg10[%c8, %c0_23] : memref<36x1024xbf16, #tpu.memory_space<vmem>>, vector<4x1024xbf16>
    tpu.vector_store %arg10[%c8, %c0_23], %27 {strides = array<i32>} : memref<36x1024xbf16, #tpu.memory_space<vmem>>, vector<4x1024xbf16>,
    %c0_24 = arith.constant 0 : index
    %c32 = arith.constant 32 : index
    %29 = vector.load %arg9[%c0_24, %c32] : memref<4x1090xbf16, #tpu.memory_space<vmem>>, vector<4x1024xbf16>
    %30 = vector.broadcast %17 : vector<1x1024xbf16> to vector<4x1024xbf16>
    %31 = arith.mulf %29, %30 : vector<4x1024xbf16>
    %c12 = arith.constant 12 : index
    %c0_25 = arith.constant 0 : index
    %32 = vector.load %arg10[%c12, %c0_25] : memref<36x1024xbf16, #tpu.memory_space<vmem>>, vector<4x1024xbf16>
    tpu.vector_store %arg10[%c12, %c0_25], %31 {strides = array<i32>} : memref<36x1024xbf16, #tpu.memory_space<vmem>>, vector<4x1024xbf16>,
    %c0_26 = arith.constant 0 : index
    %c33_27 = arith.constant 33 : index
    %33 = vector.load %arg9[%c0_26, %c33_27] : memref<4x1090xbf16, #tpu.memory_space<vmem>>, vector<4x1024xbf16>
    %c16 = arith.constant 16 : index
    %c0_28 = arith.constant 0 : index
    %34 = vector.load %arg10[%c16, %c0_28] : memref<36x1024xbf16, #tpu.memory_space<vmem>>, vector<4x1024xbf16>
    tpu.vector_store %arg10[%c16, %c0_28], %33 {strides = array<i32>} : memref<36x1024xbf16, #tpu.memory_space<vmem>>, vector<4x1024xbf16>,
    %c0_29 = arith.constant 0 : index
    %c34 = arith.constant 34 : index
    %35 = vector.load %arg9[%c0_29, %c34] : memref<4x1090xbf16, #tpu.memory_space<vmem>>, vector<4x1024xbf16>
    %36 = vector.broadcast %18 : vector<1x1024xbf16> to vector<4x1024xbf16>
    %37 = arith.mulf %35, %36 : vector<4x1024xbf16>
    %c20 = arith.constant 20 : index
    %c0_30 = arith.constant 0 : index
    %38 = vector.load %arg10[%c20, %c0_30] : memref<36x1024xbf16, #tpu.memory_space<vmem>>, vector<4x1024xbf16>
    tpu.vector_store %arg10[%c20, %c0_30], %37 {strides = array<i32>} : memref<36x1024xbf16, #tpu.memory_space<vmem>>, vector<4x1024xbf16>,
    %c0_31 = arith.constant 0 : index
    %c64 = arith.constant 64 : index
    %39 = vector.load %arg9[%c0_31, %c64] : memref<4x1090xbf16, #tpu.memory_space<vmem>>, vector<4x1024xbf16>
    %40 = vector.broadcast %17 : vector<1x1024xbf16> to vector<4x1024xbf16>
    %41 = arith.mulf %39, %40 : vector<4x1024xbf16>
    %c24 = arith.constant 24 : index
    %c0_32 = arith.constant 0 : index
    %42 = vector.load %arg10[%c24, %c0_32] : memref<36x1024xbf16, #tpu.memory_space<vmem>>, vector<4x1024xbf16>
    tpu.vector_store %arg10[%c24, %c0_32], %41 {strides = array<i32>} : memref<36x1024xbf16, #tpu.memory_space<vmem>>, vector<4x1024xbf16>,
    %c0_33 = arith.constant 0 : index
    %c65 = arith.constant 65 : index
    %43 = vector.load %arg9[%c0_33, %c65] : memref<4x1090xbf16, #tpu.memory_space<vmem>>, vector<4x1024xbf16>
    %c28 = arith.constant 28 : index
    %c0_34 = arith.constant 0 : index
    %44 = vector.load %arg10[%c28, %c0_34] : memref<36x1024xbf16, #tpu.memory_space<vmem>>, vector<4x1024xbf16>
    tpu.vector_store %arg10[%c28, %c0_34], %43 {strides = array<i32>} : memref<36x1024xbf16, #tpu.memory_space<vmem>>, vector<4x1024xbf16>,
    %c0_35 = arith.constant 0 : index
    %c66 = arith.constant 66 : index
    %45 = vector.load %arg9[%c0_35, %c66] : memref<4x1090xbf16, #tpu.memory_space<vmem>>, vector<4x1024xbf16>
    %46 = vector.broadcast %18 : vector<1x1024xbf16> to vector<4x1024xbf16>
    %47 = arith.mulf %45, %46 : vector<4x1024xbf16>
    %c32_36 = arith.constant 32 : index
    %c0_37 = arith.constant 0 : index
    %48 = vector.load %arg10[%c32_36, %c0_37] : memref<36x1024xbf16, #tpu.memory_space<vmem>>, vector<4x1024xbf16>
    tpu.vector_store %arg10[%c32_36, %c0_37], %47 {strides = array<i32>} : memref<36x1024xbf16, #tpu.memory_space<vmem>>, vector<4x1024xbf16>,
    %c0_38 = arith.constant 0 : index
    %c0_39 = arith.constant 0 : index
    %49 = vector.load %arg5[%c0_38, %c0_39] : memref<4x36xbf16, #tpu.memory_space<vmem>>, vector<4x36xbf16>
    %c0_40 = arith.constant 0 : index
    %c0_41 = arith.constant 0 : index
    %50 = vector.load %arg10[%c0_40, %c0_41] : memref<36x1024xbf16, #tpu.memory_space<vmem>>, vector<36x1024xbf16>
    %cst_42 = arith.constant dense<0.000000e+00> : vector<4x1024xf32>
    %51 = tpu.matmul %49, %50, %cst_42 {dimension_numbers = #tpu.dot_dimension_numbers<[1], [0], [0], [1], [0, 0, 1, 1], [], []>} : vector<4x36xbf16>, vector<36x1024xbf16>, vector<4x1024xf32> -> vector<4x1024xf32>
    %c0_43 = arith.constant 0 : index
    %c0_44 = arith.constant 0 : index
    %52 = vector.load %arg6[%c0_43, %c0_44] : memref<4x1xf32, #tpu.memory_space<vmem>>, vector<4x1xf32>
    %53 = vector.broadcast %52 : vector<4x1xf32> to vector<4x1024xf32>
    %54 = arith.addf %51, %53 : vector<4x1024xf32>
    %cst_45 = arith.constant dense<0.000000e+00> : vector<4xf32>
    %55 = vector.multi_reduction <add>, %54, %cst_45 [1] : vector<4x1024xf32> to vector<4xf32>
    %56 = vector.shape_cast %55 : vector<4xf32> to vector<4x1xf32>
    %c0_46 = arith.constant 0 : index
    %c0_47 = arith.constant 0 : index
    %c0_48 = arith.constant 0 : index
    %57 = vector.load %arg8[%c0_46, %c0_47, %c0_48] : memref<1x4x2xf32, #tpu.memory_space<vmem>>, vector<1x4x1xf32>
    %58 = vector.shape_cast %57 : vector<1x4x1xf32> to vector<4x1xf32>
    %59 = vector.shape_cast %56 : vector<4x1xf32> to vector<1x4x1xf32>
    tpu.vector_store %arg8[%c0_46, %c0_47, %c0_48], %59 {strides = array<i32>} : memref<1x4x2xf32, #tpu.memory_space<vmem>>, vector<1x4x1xf32>,
    %60 = arith.mulf %54, %54 : vector<4x1024xf32>
    %cst_49 = arith.constant dense<0.000000e+00> : vector<4xf32>
    %61 = vector.multi_reduction <add>, %60, %cst_49 [1] : vector<4x1024xf32> to vector<4xf32>
    %62 = vector.shape_cast %61 : vector<4xf32> to vector<4x1xf32>
    %c0_50 = arith.constant 0 : index
    %c0_51 = arith.constant 0 : index
    %c1_52 = arith.constant 1 : index
    %63 = vector.load %arg8[%c0_50, %c0_51, %c1_52] : memref<1x4x2xf32, #tpu.memory_space<vmem>>, vector<1x4x1xf32>
    %64 = vector.shape_cast %63 : vector<1x4x1xf32> to vector<4x1xf32>
    %65 = vector.shape_cast %62 : vector<4x1xf32> to vector<1x4x1xf32>
    tpu.vector_store %arg8[%c0_50, %c0_51, %c1_52], %65 {strides = array<i32>} : memref<1x4x2xf32, #tpu.memory_space<vmem>>, vector<1x4x1xf32>,
    %66 = arith.truncf %54 : vector<4x1024xf32> to vector<4x1024xbf16>
    %c0_53 = arith.constant 0 : index
    %c0_54 = arith.constant 0 : index
    %c0_55 = arith.constant 0 : index
    %67 = vector.load %arg7[%c0_53, %c0_54, %c0_55] : memref<1x4x1024xbf16, #tpu.memory_space<vmem>>, vector<1x4x1024xbf16>
    %68 = vector.shape_cast %67 : vector<1x4x1024xbf16> to vector<4x1024xbf16>
    %69 = vector.shape_cast %66 : vector<4x1024xbf16> to vector<1x4x1024xbf16>
    tpu.vector_store %arg7[%c0_53, %c0_54, %c0_55], %69 {strides = array<i32>} : memref<1x4x1024xbf16, #tpu.memory_space<vmem>>, vector<1x4x1024xbf16>,
    return
  }
  func.func @transform_0(%arg0: i32) -> (i32, i32, i32) {
    %c0_i32 = arith.constant 0 : i32
    %c0_i32_0 = arith.constant 0 : i32
    %c0_i32_1 = arith.constant 0 : i32
    return %arg0, %c0_i32, %c0_i32_0 : i32, i32, i32
  }
  func.func @transform_1(%arg0: i32) -> (i32, i32) {
    %c0_i32 = arith.constant 0 : i32
    %c0_i32_0 = arith.constant 0 : i32
    %c0_i32_1 = arith.constant 0 : i32
    return %c0_i32, %c0_i32_0 : i32, i32
  }
  func.func @transform_2(%arg0: i32) -> (i32, i32) {
    %c0_i32 = arith.constant 0 : i32
    %c0_i32_0 = arith.constant 0 : i32
    %c0_i32_1 = arith.constant 0 : i32
    return %c0_i32, %c0_i32_0 : i32, i32
  }
  func.func @transform_3(%arg0: i32) -> (i32, i32) {
    %c0_i32 = arith.constant 0 : i32
    %c0_i32_0 = arith.constant 0 : i32
    %c0_i32_1 = arith.constant 0 : i32
    return %c0_i32, %c0_i32_0 : i32, i32
  }
  func.func @transform_4(%arg0: i32) -> (i32, i32) {
    %c0_i32 = arith.constant 0 : i32
    %c0_i32_0 = arith.constant 0 : i32
    %c0_i32_1 = arith.constant 0 : i32
    return %c0_i32, %c0_i32_0 : i32, i32
  }
  func.func @transform_5(%arg0: i32) -> (i32, i32) {
    %c0_i32 = arith.constant 0 : i32
    %c0_i32_0 = arith.constant 0 : i32
    %c0_i32_1 = arith.constant 0 : i32
    return %c0_i32, %c0_i32_0 : i32, i32
  }
  func.func @transform_6(%arg0: i32) -> (i32, i32, i32) {
    %c0_i32 = arith.constant 0 : i32
    %c0_i32_0 = arith.constant 0 : i32
    %c0_i32_1 = arith.constant 0 : i32
    return %arg0, %c0_i32, %c0_i32_0 : i32, i32, i32
  }
  func.func @transform_7(%arg0: i32) -> (i32, i32, i32) {
    %c0_i32 = arith.constant 0 : i32
    %c0_i32_0 = arith.constant 0 : i32
    %c0_i32_1 = arith.constant 0 : i32
    return %arg0, %c0_i32, %c0_i32_0 : i32, i32, i32
  }
}

module attributes {stable_mosaic.version = 11 : i64} {
  func.func @_bn_relu_kernel(%arg0: i32, %arg1: memref<1x4x1024xbf16, #tpu.memory_space<vmem>>, %arg2: memref<4x1xf32, #tpu.memory_space<vmem>>, %arg3: memref<4x1xf32, #tpu.memory_space<vmem>>, %arg4: memref<1x4x1024xf32, #tpu.memory_space<vmem>>) attributes {dimension_semantics = [#tpu.dimension_semantics<parallel>], iteration_bounds = array<i64: 2>, scalar_prefetch = 0 : i64, scratch_operands = 0 : i64, tpu.core_type = #tpu.core_type<tc>, window_params = [{transform_indices = @transform_0, window_bounds = array<i64: 1, 4, 1024>}, {pipeline_mode = #tpu.pipeline_mode<synchronous>, transform_indices = @transform_1, window_bounds = array<i64: 4, 1>}, {pipeline_mode = #tpu.pipeline_mode<synchronous>, transform_indices = @transform_2, window_bounds = array<i64: 4, 1>}, {transform_indices = @transform_3, window_bounds = array<i64: 1, 4, 1024>}]} {
    %c0 = arith.constant 0 : index
    %c0_0 = arith.constant 0 : index
    %c0_1 = arith.constant 0 : index
    %0 = vector.load %arg1[%c0, %c0_0, %c0_1] : memref<1x4x1024xbf16, #tpu.memory_space<vmem>>, vector<1x4x1024xbf16>
    %1 = vector.shape_cast %0 : vector<1x4x1024xbf16> to vector<4x1024xbf16>
    %2 = arith.extf %1 : vector<4x1024xbf16> to vector<4x1024xf32>
    %c0_2 = arith.constant 0 : index
    %c0_3 = arith.constant 0 : index
    %3 = vector.load %arg2[%c0_2, %c0_3] : memref<4x1xf32, #tpu.memory_space<vmem>>, vector<4x1xf32>
    %4 = vector.broadcast %3 : vector<4x1xf32> to vector<4x1024xf32>
    %5 = arith.mulf %2, %4 : vector<4x1024xf32>
    %c0_4 = arith.constant 0 : index
    %c0_5 = arith.constant 0 : index
    %6 = vector.load %arg3[%c0_4, %c0_5] : memref<4x1xf32, #tpu.memory_space<vmem>>, vector<4x1xf32>
    %7 = vector.broadcast %6 : vector<4x1xf32> to vector<4x1024xf32>
    %8 = arith.addf %5, %7 : vector<4x1024xf32>
    %cst = arith.constant 0.000000e+00 : f32
    %9 = vector.broadcast %cst : f32 to vector<4x1024xf32>
    %10 = arith.maximumf %8, %9 : vector<4x1024xf32>
    %c0_6 = arith.constant 0 : index
    %c0_7 = arith.constant 0 : index
    %c0_8 = arith.constant 0 : index
    %11 = vector.load %arg4[%c0_6, %c0_7, %c0_8] : memref<1x4x1024xf32, #tpu.memory_space<vmem>>, vector<1x4x1024xf32>
    %12 = vector.shape_cast %11 : vector<1x4x1024xf32> to vector<4x1024xf32>
    %13 = vector.shape_cast %10 : vector<4x1024xf32> to vector<1x4x1024xf32>
    tpu.vector_store %arg4[%c0_6, %c0_7, %c0_8], %13 {strides = array<i32>} : memref<1x4x1024xf32, #tpu.memory_space<vmem>>, vector<1x4x1024xf32>,
    return
  }
  func.func @transform_0(%arg0: i32) -> (i32, i32, i32) {
    %c0_i32 = arith.constant 0 : i32
    %c0_i32_0 = arith.constant 0 : i32
    %c0_i32_1 = arith.constant 0 : i32
    return %arg0, %c0_i32, %c0_i32_0 : i32, i32, i32
  }
  func.func @transform_1(%arg0: i32) -> (i32, i32) {
    %c0_i32 = arith.constant 0 : i32
    %c0_i32_0 = arith.constant 0 : i32
    %c0_i32_1 = arith.constant 0 : i32
    return %c0_i32, %c0_i32_0 : i32, i32
  }
  func.func @transform_2(%arg0: i32) -> (i32, i32) {
    %c0_i32 = arith.constant 0 : i32
    %c0_i32_0 = arith.constant 0 : i32
    %c0_i32_1 = arith.constant 0 : i32
    return %c0_i32, %c0_i32_0 : i32, i32
  }
  func.func @transform_3(%arg0: i32) -> (i32, i32, i32) {
    %c0_i32 = arith.constant 0 : i32
    %c0_i32_0 = arith.constant 0 : i32
    %c0_i32_1 = arith.constant 0 : i32
    return %arg0, %c0_i32, %c0_i32_0 : i32, i32, i32
  }
}

</mosaic_0001>

<llo_original>
// kernel: decoder_block_forward.5
$region0: #{decoder_block_forward.5}
  #allocation0 [shape = 'u32[]', space=smem, size = 0x4, offset = 0x4, fixed_abs, tag = 'smem constant byte address 0x4 - core index']
  #allocation1 [shape = 'u32[144,128]{1,0:T(1,128)}', space=vmem, size = 0x12000, scoped, tag = 'internal scratch']
  %s0 = inlined_call_operand.vmem [shape: f32[2,8,256], index: 0, kind: input, shape index: {}]
  %s1 = inlined_call_operand.vmem [shape: bf16[32,8], index: 1, kind: input, shape index: {}]
  %s2 = inlined_call_operand.vmem [shape: f32[32,1], index: 2, kind: input, shape index: {}]
  %s3 = inlined_call_operand.vmem [shape: bf16[2,32,256], index: 3, kind: output, shape index: {}]
  %s4 = sld [smem:[#allocation0]]
  $region45: #{decoder_block_forward.5} parent=0
    _
  %s6 = ssub.s32 1, %s4
  %s7 = scalar_select 0, %s6, %s4
  loop: start=0, step=1, limit=4
  $region2: #{decoder_block_forward.5} parent=0 // loop_pre_header
    _
  $region3: #{decoder_block_forward.5} parent=0 // loop_header
    %s9 = sphi 0, %s13
    %p10 = scmp.ge.s32.totalorder %s9, 4
    %s19 = sphi 0, %s21
    %s22 = sphi 0, %s19
    %s23 = sphi 0, %s22
    %s39 = sphi 0, %s23
    %s43 = sphi 0, %s43
    %s45 = sphi 0, %s43
    %s46 = sphi 0, %s45
    %s60 = sphi 0, %s46
    %s64 = sphi 0, %s64
    %s66 = sphi 0, %s64
    %s67 = sphi 0, %s66
    %s81 = sphi 0, %s67
    %s87 = sphi 0, %s89
    %s90 = sphi 0, %s87
    %s91 = sphi 0, %s90
    %s107 = sphi 0, %s91
  $region4: #{decoder_block_forward.5} parent=0 // loop_header_branch
    %12 = sbr.rel (%p10) target = $region8
  $region5: #{decoder_block_forward.5} parent=0 // loop_body
    %s14 = ssub.s32 %s9, 1
    %s15 = ssub.s32 %s9, 2
    %s16 = sadd.s32 %s9, 1
    %s17 = ssub.s32 %s9, %s16
    %p18 = scmp.eq.s32.totalorder %s17, 0
    %s20 = sadd.s32 %s19, 1
    %s21 = scalar_select %p18, %s19, %s20
    %p24 = pneg %p18
    %p25 = scmp.eq.s32.totalorder %s9, 1
    %p26 = por %p24, %p25
    %p27 = scmp.ne.s32.totalorder %s19, %s22
    %p28 = scmp.eq.s32.totalorder %s9, 0
    %p29 = por %p27, %p28
    %p30 = scmp.ne.s32.totalorder %s19, %s22
    %p31 = scmp.eq.s32.totalorder %s14, 1
    %p32 = por %p30, %p31
    %p33 = scmp.ne.s32.totalorder %s22, %s23
    %p34 = scmp.eq.s32.totalorder %s14, 0
    %p35 = por %p33, %p34
    %p36 = scmp.ne.s32.totalorder %s22, %s23
    %p37 = scmp.eq.s32.totalorder %s15, 1
    %p38 = por %p36, %p37
    %p40 = scmp.ne.s32.totalorder %s23, %s39
    %p41 = scmp.eq.s32.totalorder %s15, 0
    %p42 = por %p40, %p41
    %s44 = sadd.s32 %s43, 1
    %p47 = scmp.eq.s32.totalorder %s9, 1
    %p48 = scmp.ne.s32.totalorder %s43, %s45
    %p49 = scmp.eq.s32.totalorder %s9, 0
    %p50 = por %p48, %p49
    %p51 = scmp.ne.s32.totalorder %s43, %s45
    %p52 = scmp.eq.s32.totalorder %s14, 1
    %p53 = por %p51, %p52
    %p54 = scmp.ne.s32.totalorder %s45, %s46
    %p55 = scmp.eq.s32.totalorder %s14, 0
    %p56 = por %p54, %p55
    %p57 = scmp.ne.s32.totalorder %s45, %s46
    %p58 = scmp.eq.s32.totalorder %s15, 1
    %p59 = por %p57, %p58
    %p61 = scmp.ne.s32.totalorder %s46, %s60
    %p62 = scmp.eq.s32.totalorder %s15, 0
    %p63 = por %p61, %p62
    %s65 = sadd.s32 %s64, 1
    %p68 = scmp.eq.s32.totalorder %s9, 1
    %p69 = scmp.ne.s32.totalorder %s64, %s66
    %p70 = scmp.eq.s32.totalorder %s9, 0
    %p71 = por %p69, %p70
    %p72 = scmp.ne.s32.totalorder %s64, %s66
    %p73 = scmp.eq.s32.totalorder %s14, 1
    %p74 = por %p72, %p73
    %p75 = scmp.ne.s32.totalorder %s66, %s67
    %p76 = scmp.eq.s32.totalorder %s14, 0
    %p77 = por %p75, %p76
    %p78 = scmp.ne.s32.totalorder %s66, %s67
    %p79 = scmp.eq.s32.totalorder %s15, 1
    %p80 = por %p78, %p79
    %p82 = scmp.ne.s32.totalorder %s67, %s81
    %p83 = scmp.eq.s32.totalorder %s15, 0
    %p84 = por %p82, %p83
    %s85 = ssub.s32 %s9, %s16
    %p86 = scmp.eq.s32.totalorder %s85, 0
    %s88 = sadd.s32 %s87, 1
    %s89 = scalar_select %p86, %s87, %s88
    %p92 = pneg %p86
    %p93 = scmp.eq.s32.totalorder %s9, 1
    %p94 = por %p92, %p93
    %p95 = scmp.ne.s32.totalorder %s87, %s90
    %p96 = scmp.eq.s32.totalorder %s9, 0
    %p97 = por %p95, %p96
    %p98 = scmp.ne.s32.totalorder %s87, %s90
    %p99 = scmp.eq.s32.totalorder %s14, 1
    %p100 = por %p98, %p99
    %p101 = scmp.ne.s32.totalorder %s90, %s91
    %p102 = scmp.eq.s32.totalorder %s14, 0
    %p103 = por %p101, %p102
    %p104 = scmp.ne.s32.totalorder %s90, %s91
    %p105 = scmp.eq.s32.totalorder %s15, 1
    %p106 = por %p104, %p105
    %p108 = scmp.ne.s32.totalorder %s91, %s107
    %p109 = scmp.eq.s32.totalorder %s15, 0
    %p110 = por %p108, %p109
    %p111 = scmp.le.s32.totalorder 1, %s9
    %p112 = scmp.lt.s32.totalorder %s9, 3
    %p113 = pnand %p111, %p112
    %p114 = pneg %p113
    // Predicated region
    $region9: #{decoder_block_forward.5} parent=5 // pred_check
      _
    $region10: #{decoder_block_forward.5} parent=5 // pred_check_branch
      %116 = sbr.rel (%p113) target = $region12
    $region11: #{decoder_block_forward.5} parent=5 // pred_region
      %s117 = ssub.s32 %s9, 1
      // Predicated region
      $region13: #{decoder_block_forward.5} parent=11 // pred_check
        %p118 = pneg %p56
      $region14: #{decoder_block_forward.5} parent=11 // pred_check_branch
        %120 = sbr.rel (%p118) target = $region16
      $region15: #{decoder_block_forward.5} parent=11 // pred_region
        _
      $region16: #{decoder_block_forward.5} parent=11 // pred_fallthru
        _
      // Predicated region
      $region17: #{decoder_block_forward.5} parent=11 // pred_check
        %p121 = pneg %p77
      $region18: #{decoder_block_forward.5} parent=11 // pred_check_branch
        %123 = sbr.rel (%p121) target = $region20
      $region19: #{decoder_block_forward.5} parent=11 // pred_region
        _
      $region20: #{decoder_block_forward.5} parent=11 // pred_fallthru
        _
    $region12: #{decoder_block_forward.5} parent=5 // pred_fallthru
      _
    %p124 = scmp.lt.s32.totalorder %s9, 2
    // Predicated region
    $region21: #{decoder_block_forward.5} parent=5 // pred_check
      %p125 = pneg %p124
    $region22: #{decoder_block_forward.5} parent=5 // pred_check_branch
      %127 = sbr.rel (%p125) target = $region24
    $region23: #{decoder_block_forward.5} parent=5 // pred_region
      // Predicated region
      $region25: #{decoder_block_forward.5} parent=23 // pred_check
        %p128 = pneg %p29
      $region26: #{decoder_block_forward.5} parent=23 // pred_check_branch
        %130 = sbr.rel (%p128) target = $region28
      $region27: #{decoder_block_forward.5} parent=23 // pred_region
        %p131 = scmp.lt.s32.totalorder %s9, 1
        %s132 = scalar_select %p131, %s9, 1
        %s133 = smul.addr %s132, 2
        %s134 = smul.addr %s133, 8
        %s135 = scalar_lea.vmem %s0, %s134
      $region28: #{decoder_block_forward.5} parent=23 // pred_fallthru
        _
    $region24: #{decoder_block_forward.5} parent=5 // pred_fallthru
      _
    %p136 = scmp.le.s32.totalorder 1, %s9
    %p137 = scmp.lt.s32.totalorder %s9, 3
    %p138 = pnand %p136, %p137
    %p139 = pneg %p138
    // Predicated region
    $region29: #{decoder_block_forward.5} parent=5 // pred_check
      _
    $region30: #{decoder_block_forward.5} parent=5 // pred_check_branch
      %141 = sbr.rel (%p138) target = $region32
    $region31: #{decoder_block_forward.5} parent=5 // pred_region
      %s142 = ssub.s32 %s9, 1
      %p143 = scmp.lt.s32.totalorder %s14, 1
      %s144 = scalar_select %p143, %s14, 1
      %s145 = smul.addr %s144, 2
      %s146 = smul.addr %s145, 8
      %s147 = scalar_lea.vmem %s0, %s146
      %p148 = pneg %p35
      %p149 = pneg %p32
      %p150 = pneg %p56
      %p151 = pneg %p53
      %p152 = pneg %p77
      %p153 = pneg %p74
      %p154 = pneg %p103
      %p155 = pneg %p100
      %p156 = scmp.lt.s32.totalorder %s14, 1
      %s157 = scalar_select %p156, %s14, 1
      %s158 = smul.addr %s157, 8
      %s159 = smul.addr %s158, 4
      %s160 = scalar_lea.vmem %s3, %s159
      %p161 = scmp.lt.s32.totalorder %s14, 1
      %s162 = scalar_select %p161, %s14, 1
      %s163 = smul.addr %s162, 2
      %s164 = smul.addr %s163, 8
      %s165 = scalar_lea.vmem %s0, %s164
      %p166 = scmp.lt.s32.totalorder %s14, 1
      %s167 = scalar_select %p166, %s14, 1
      %s168 = smul.addr %s167, 8
      %s169 = smul.addr %s168, 4
      %s170 = scalar_lea.vmem %s3, %s169
      %v172 = vld [vmem:[%s165] sm:$0xff]
      %v173 = vld [vmem:[%s165 + $0x8] sm:$0xff]
      %v174 = vpack.c.bf16 %v172, %v172
      %v175 = vpack.c.bf16 %v173, %v173
      %v176 = vld [vmem:[%s1] sm:$0xf]
      %v177 = vld [vmem:[%s1 + $0x4] sm:$0xf]
      %v178 = vld [vmem:[%s1 + $0x8] sm:$0xf]
      %v179 = vld [vmem:[%s1 + $0xc] sm:$0xf]
      %v180 = vld [vmem:[%s2] sm:$0xff]
      %v181 = vld [vmem:[%s2 + $0x8] sm:$0xff]
      %v182 = vld [vmem:[%s2 + $0x10] sm:$0xff]
      %v183 = vld [vmem:[%s2 + $0x18] sm:$0xff]
      %185 = vset.pattern.permute.xlu0 0
      %186 = vperm.xlu0 %185, %v180
      %v187 = vpop.permute.xlu0 %186
      %190 = vset.pattern.permute.xlu0 0
      %191 = vperm.xlu0 %190, %v181
      %v192 = vpop.permute.xlu0 %191
      %195 = vset.pattern.permute.xlu0 0
      %196 = vperm.xlu0 %195, %v182
      %v197 = vpop.permute.xlu0 %196
      %200 = vset.pattern.permute.xlu0 0
      %201 = vperm.xlu0 %200, %v183
      %v202 = vpop.permute.xlu0 %201
      %v208 = vunpack.c.l.b16 %v176
      %v209 = vunpack.c.l.b16 %v177
      %v210 = vunpack.c.l.b16 %v178
      %v211 = vunpack.c.l.b16 %v179
      %v212 = vpack.c.b16 %v209, %v208
      %v213 = vpack.c.b16 %v211, %v210
      %vm214 = vcmask 64512
      %v216 = vsel %vm214, %v212, 0
      %v219 = vsel %vm214, %v213, 0
      %vm221 = vcmask 1043456
      %v223 = vsel %vm221, %v174, 0
      %v226 = vsel %vm221, %v175, 0
      %228 = vmatprep.subr.bf16.mxu0 %v226
      %229 = vmatpush1.bf16.msra.mxu0 %v223
      %230 = vmatprep.subr.bf16.mxu0 0
      %231 = vmatpush1.bf16.msra.mxu0 0
      %232 = vmatprep.subr.bf16.mxu0 0
      %233 = vmatpush1.bf16.msra.mxu0 0
      %234 = vmatprep.subr.bf16.mxu0 0
      %235 = vmatpush1.bf16.msra.mxu0 0
      %236 = vmatprep.subr.bf16.mxu0 0
      %237 = vmatpush1.bf16.msra.mxu0 0
      %238 = vmatprep.subr.bf16.mxu0 0
      %239 = vmatpush1.bf16.msra.mxu0 0
      %240 = vmatprep.subr.bf16.mxu0 0
      %241 = vmatpush1.bf16.msra.mxu0 0
      %242 = vmatprep.subr.bf16.mxu0 0
      %243 = vmatpush1.bf16.msra.mxu0 0
      %244 = vmatprep.subr.bf16.mxu0 0
      %245 = vmatpush1.bf16.msra.mxu0 0
      %246 = vmatprep.subr.bf16.mxu0 0
      %247 = vmatpush1.bf16.msra.mxu0 0
      %248 = vmatprep.subr.bf16.mxu0 0
      %249 = vmatpush1.bf16.msra.mxu0 0
      %250 = vmatprep.subr.bf16.mxu0 0
      %251 = vmatpush1.bf16.msra.mxu0 0
      %252 = vmatprep.subr.bf16.mxu0 0
      %253 = vmatpush1.bf16.msra.mxu0 0
      %254 = vmatprep.subr.bf16.mxu0 0
      %255 = vmatpush1.bf16.msra.mxu0 0
      %256 = vmatprep.subr.bf16.mxu0 0
      %257 = vmatpush1.bf16.msra.mxu0 0
      %258 = vmatprep.subr.bf16.mxu0 0
      %259 = vmatpush1.bf16.msra.mxu0 0
      %260 = vmatprep.mubr.bf16.mxu0 0
      %261 = vmatmul.mubr.bf16.gmra.mrb[0].mxu0 %v216
      %v262 = vpop.f32.mrb[0].mxu0
      %v263 = vadd.f32 %v187, %v262
      %v264 = vpop.f32.mrb[0].mxu0
      %v265 = vadd.f32 %v187, %v264
      %v266 = vpop.f32.mrb[0].mxu0
      %v267 = vadd.f32 %v192, %v266
      %v268 = vpop.f32.mrb[0].mxu0
      %v269 = vadd.f32 %v192, %v268
      %270 = vmatprep.mubr.bf16.mxu0 0
      %271 = vmatmul.mubr.bf16.gmra.mrb[0].mxu0 %v219
      %v272 = vpop.f32.mrb[0].mxu0
      %v273 = vadd.f32 %v197, %v272
      %v274 = vpop.f32.mrb[0].mxu0
      %v275 = vadd.f32 %v197, %v274
      %v276 = vpop.f32.mrb[0].mxu0
      %v277 = vadd.f32 %v202, %v276
      %v278 = vpop.f32.mrb[0].mxu0
      %v279 = vadd.f32 %v202, %v278
      %280 = vdwg.mxu0
      %v281 = vpack.c.bf16 %v267, %v263
      %v282 = vpack.c.bf16 %v269, %v265
      %v283 = vpack.c.bf16 %v277, %v273
      %v284 = vpack.c.bf16 %v279, %v275
      %v289 = vunpack.c.l.b16 %v281
      %v290 = vunpack.c.l.b16 %v282
      %v291 = vunpack.c.h.b16 %v281
      %v292 = vunpack.c.h.b16 %v282
      %v293 = vunpack.c.l.b16 %v283
      %v294 = vunpack.c.l.b16 %v284
      %v295 = vunpack.c.h.b16 %v283
      %v296 = vunpack.c.h.b16 %v284
      %v297 = vpack.c.b16 %v290, %v289
      %v298 = vpack.c.b16 %v292, %v291
      %v299 = vpack.c.b16 %v294, %v293
      %v300 = vpack.c.b16 %v296, %v295
      %305 = vst [vmem:[%s170] sm:$0xff] %v297
      %306 = vst [vmem:[%s170 + $0x8] sm:$0xff] %v298
      %307 = vst [vmem:[%s170 + $0x10] sm:$0xff] %v299
      %308 = vst [vmem:[%s170 + $0x18] sm:$0xff] %v300
      %p309 = scmp.lt.s32.totalorder %s14, 1
      %s310 = scalar_select %p309, %s14, 1
      %s311 = smul.addr %s310, 8
      %s312 = smul.addr %s311, 4
      %s313 = scalar_lea.vmem %s3, %s312
      // Predicated region
      $region33: #{decoder_block_forward.5} parent=31 // pred_check
        %p314 = pneg %p100
      $region34: #{decoder_block_forward.5} parent=31 // pred_check_branch
        %316 = sbr.rel (%p314) target = $region36
      $region35: #{decoder_block_forward.5} parent=31 // pred_region
        _
      $region36: #{decoder_block_forward.5} parent=31 // pred_fallthru
        _
    $region32: #{decoder_block_forward.5} parent=5 // pred_fallthru
      _
    %p317 = scmp.le.s32.totalorder 2, %s9
    // Predicated region
    $region37: #{decoder_block_forward.5} parent=5 // pred_check
      %p318 = pneg %p317
    $region38: #{decoder_block_forward.5} parent=5 // pred_check_branch
      %320 = sbr.rel (%p318) target = $region40
    $region39: #{decoder_block_forward.5} parent=5 // pred_region
      %s321 = ssub.s32 %s9, 2
      // Predicated region
      $region41: #{decoder_block_forward.5} parent=39 // pred_check
        %p322 = pneg %p106
      $region42: #{decoder_block_forward.5} parent=39 // pred_check_branch
        %324 = sbr.rel (%p322) target = $region44
      $region43: #{decoder_block_forward.5} parent=39 // pred_region
        %p325 = scmp.lt.s32.totalorder %s15, 1
        %s326 = scalar_select %p325, %s15, 1
        %s327 = smul.addr %s326, 8
        %s328 = smul.addr %s327, 4
        %s329 = scalar_lea.vmem %s3, %s328
      $region44: #{decoder_block_forward.5} parent=39 // pred_fallthru
        _
    $region40: #{decoder_block_forward.5} parent=5 // pred_fallthru
      _
  $region6: #{decoder_block_forward.5} parent=0 // loop_footer
    %s13 = sadd.s32 1, %s9
  $region7: #{decoder_block_forward.5} parent=0 // loop_footer_branch
    %8 = sbr.rel target = $region3
  $region8: #{decoder_block_forward.5} parent=0 // loop_exit
    _

// kernel: decoder_block_forward.9
$region0: #{decoder_block_forward.9}
  #allocation0 [shape = 'u32[]', space=smem, size = 0x4, offset = 0x4, fixed_abs, tag = 'smem constant byte address 0x4 - core index']
  #allocation1 [shape = 'u32[144,128]{1,0:T(1,128)}', space=vmem, size = 0x12000, scoped, tag = 'internal scratch']
  %s0 = inlined_call_operand.vmem [shape: bf16[2,4,1024], index: 0, kind: input, shape index: {}]
  %s1 = inlined_call_operand.vmem [shape: f32[4,1], index: 1, kind: input, shape index: {}]
  %s2 = inlined_call_operand.vmem [shape: f32[4,1], index: 2, kind: input, shape index: {}]
  %s3 = inlined_call_operand.vmem [shape: f32[2,4,1024], index: 3, kind: output, shape index: {}]
  %s4 = sld [smem:[#allocation0]]
  $region45: #{decoder_block_forward.9} parent=0
    _
  %s6 = ssub.s32 1, %s4
  %s7 = scalar_select 0, %s6, %s4
  loop: start=0, step=1, limit=4
  $region2: #{decoder_block_forward.9} parent=0 // loop_pre_header
    _
  $region3: #{decoder_block_forward.9} parent=0 // loop_header
    %s9 = sphi 0, %s13
    %p10 = scmp.ge.s32.totalorder %s9, 4
    %s19 = sphi 0, %s21
    %s22 = sphi 0, %s19
    %s23 = sphi 0, %s22
    %s39 = sphi 0, %s23
    %s43 = sphi 0, %s43
    %s45 = sphi 0, %s43
    %s46 = sphi 0, %s45
    %s60 = sphi 0, %s46
    %s64 = sphi 0, %s64
    %s66 = sphi 0, %s64
    %s67 = sphi 0, %s66
    %s81 = sphi 0, %s67
    %s87 = sphi 0, %s89
    %s90 = sphi 0, %s87
    %s91 = sphi 0, %s90
    %s107 = sphi 0, %s91
  $region4: #{decoder_block_forward.9} parent=0 // loop_header_branch
    %12 = sbr.rel (%p10) target = $region8
  $region5: #{decoder_block_forward.9} parent=0 // loop_body
    %s14 = ssub.s32 %s9, 1
    %s15 = ssub.s32 %s9, 2
    %s16 = sadd.s32 %s9, 1
    %s17 = ssub.s32 %s9, %s16
    %p18 = scmp.eq.s32.totalorder %s17, 0
    %s20 = sadd.s32 %s19, 1
    %s21 = scalar_select %p18, %s19, %s20
    %p24 = pneg %p18
    %p25 = scmp.eq.s32.totalorder %s9, 1
    %p26 = por %p24, %p25
    %p27 = scmp.ne.s32.totalorder %s19, %s22
    %p28 = scmp.eq.s32.totalorder %s9, 0
    %p29 = por %p27, %p28
    %p30 = scmp.ne.s32.totalorder %s19, %s22
    %p31 = scmp.eq.s32.totalorder %s14, 1
    %p32 = por %p30, %p31
    %p33 = scmp.ne.s32.totalorder %s22, %s23
    %p34 = scmp.eq.s32.totalorder %s14, 0
    %p35 = por %p33, %p34
    %p36 = scmp.ne.s32.totalorder %s22, %s23
    %p37 = scmp.eq.s32.totalorder %s15, 1
    %p38 = por %p36, %p37
    %p40 = scmp.ne.s32.totalorder %s23, %s39
    %p41 = scmp.eq.s32.totalorder %s15, 0
    %p42 = por %p40, %p41
    %s44 = sadd.s32 %s43, 1
    %p47 = scmp.eq.s32.totalorder %s9, 1
    %p48 = scmp.ne.s32.totalorder %s43, %s45
    %p49 = scmp.eq.s32.totalorder %s9, 0
    %p50 = por %p48, %p49
    %p51 = scmp.ne.s32.totalorder %s43, %s45
    %p52 = scmp.eq.s32.totalorder %s14, 1
    %p53 = por %p51, %p52
    %p54 = scmp.ne.s32.totalorder %s45, %s46
    %p55 = scmp.eq.s32.totalorder %s14, 0
    %p56 = por %p54, %p55
    %p57 = scmp.ne.s32.totalorder %s45, %s46
    %p58 = scmp.eq.s32.totalorder %s15, 1
    %p59 = por %p57, %p58
    %p61 = scmp.ne.s32.totalorder %s46, %s60
    %p62 = scmp.eq.s32.totalorder %s15, 0
    %p63 = por %p61, %p62
    %s65 = sadd.s32 %s64, 1
    %p68 = scmp.eq.s32.totalorder %s9, 1
    %p69 = scmp.ne.s32.totalorder %s64, %s66
    %p70 = scmp.eq.s32.totalorder %s9, 0
    %p71 = por %p69, %p70
    %p72 = scmp.ne.s32.totalorder %s64, %s66
    %p73 = scmp.eq.s32.totalorder %s14, 1
    %p74 = por %p72, %p73
    %p75 = scmp.ne.s32.totalorder %s66, %s67
    %p76 = scmp.eq.s32.totalorder %s14, 0
    %p77 = por %p75, %p76
    %p78 = scmp.ne.s32.totalorder %s66, %s67
    %p79 = scmp.eq.s32.totalorder %s15, 1
    %p80 = por %p78, %p79
    %p82 = scmp.ne.s32.totalorder %s67, %s81
    %p83 = scmp.eq.s32.totalorder %s15, 0
    %p84 = por %p82, %p83
    %s85 = ssub.s32 %s9, %s16
    %p86 = scmp.eq.s32.totalorder %s85, 0
    %s88 = sadd.s32 %s87, 1
    %s89 = scalar_select %p86, %s87, %s88
    %p92 = pneg %p86
    %p93 = scmp.eq.s32.totalorder %s9, 1
    %p94 = por %p92, %p93
    %p95 = scmp.ne.s32.totalorder %s87, %s90
    %p96 = scmp.eq.s32.totalorder %s9, 0
    %p97 = por %p95, %p96
    %p98 = scmp.ne.s32.totalorder %s87, %s90
    %p99 = scmp.eq.s32.totalorder %s14, 1
    %p100 = por %p98, %p99
    %p101 = scmp.ne.s32.totalorder %s90, %s91
    %p102 = scmp.eq.s32.totalorder %s14, 0
    %p103 = por %p101, %p102
    %p104 = scmp.ne.s32.totalorder %s90, %s91
    %p105 = scmp.eq.s32.totalorder %s15, 1
    %p106 = por %p104, %p105
    %p108 = scmp.ne.s32.totalorder %s91, %s107
    %p109 = scmp.eq.s32.totalorder %s15, 0
    %p110 = por %p108, %p109
    %p111 = scmp.le.s32.totalorder 1, %s9
    %p112 = scmp.lt.s32.totalorder %s9, 3
    %p113 = pnand %p111, %p112
    %p114 = pneg %p113
    // Predicated region
    $region9: #{decoder_block_forward.9} parent=5 // pred_check
      _
    $region10: #{decoder_block_forward.9} parent=5 // pred_check_branch
      %116 = sbr.rel (%p113) target = $region12
    $region11: #{decoder_block_forward.9} parent=5 // pred_region
      %s117 = ssub.s32 %s9, 1
      // Predicated region
      $region13: #{decoder_block_forward.9} parent=11 // pred_check
        %p118 = pneg %p56
      $region14: #{decoder_block_forward.9} parent=11 // pred_check_branch
        %120 = sbr.rel (%p118) target = $region16
      $region15: #{decoder_block_forward.9} parent=11 // pred_region
        _
      $region16: #{decoder_block_forward.9} parent=11 // pred_fallthru
        _
      // Predicated region
      $region17: #{decoder_block_forward.9} parent=11 // pred_check
        %p121 = pneg %p77
      $region18: #{decoder_block_forward.9} parent=11 // pred_check_branch
        %123 = sbr.rel (%p121) target = $region20
      $region19: #{decoder_block_forward.9} parent=11 // pred_region
        _
      $region20: #{decoder_block_forward.9} parent=11 // pred_fallthru
        _
    $region12: #{decoder_block_forward.9} parent=5 // pred_fallthru
      _
    %p124 = scmp.lt.s32.totalorder %s9, 2
    // Predicated region
    $region21: #{decoder_block_forward.9} parent=5 // pred_check
      %p125 = pneg %p124
    $region22: #{decoder_block_forward.9} parent=5 // pred_check_branch
      %127 = sbr.rel (%p125) target = $region24
    $region23: #{decoder_block_forward.9} parent=5 // pred_region
      // Predicated region
      $region25: #{decoder_block_forward.9} parent=23 // pred_check
        %p128 = pneg %p29
      $region26: #{decoder_block_forward.9} parent=23 // pred_check_branch
        %130 = sbr.rel (%p128) target = $region28
      $region27: #{decoder_block_forward.9} parent=23 // pred_region
        %p131 = scmp.lt.s32.totalorder %s9, 1
        %s132 = scalar_select %p131, %s9, 1
        %s133 = smul.addr %s132, 8
        %s134 = smul.addr %s133, 2
        %s135 = scalar_lea.vmem %s0, %s134
      $region28: #{decoder_block_forward.9} parent=23 // pred_fallthru
        _
    $region24: #{decoder_block_forward.9} parent=5 // pred_fallthru
      _
    %p136 = scmp.le.s32.totalorder 1, %s9
    %p137 = scmp.lt.s32.totalorder %s9, 3
    %p138 = pnand %p136, %p137
    %p139 = pneg %p138
    // Predicated region
    $region29: #{decoder_block_forward.9} parent=5 // pred_check
      _
    $region30: #{decoder_block_forward.9} parent=5 // pred_check_branch
      %141 = sbr.rel (%p138) target = $region32
    $region31: #{decoder_block_forward.9} parent=5 // pred_region
      %s142 = ssub.s32 %s9, 1
      %p143 = scmp.lt.s32.totalorder %s14, 1
      %s144 = scalar_select %p143, %s14, 1
      %s145 = smul.addr %s144, 8
      %s146 = smul.addr %s145, 2
      %s147 = scalar_lea.vmem %s0, %s146
      %p148 = pneg %p35
      %p149 = pneg %p32
      %p150 = pneg %p56
      %p151 = pneg %p53
      %p152 = pneg %p77
      %p153 = pneg %p74
      %p154 = pneg %p103
      %p155 = pneg %p100
      %p156 = scmp.lt.s32.totalorder %s14, 1
      %s157 = scalar_select %p156, %s14, 1
      %s158 = smul.addr %s157, 8
      %s159 = smul.addr %s158, 4
      %s160 = scalar_lea.vmem %s3, %s159
      %p161 = scmp.lt.s32.totalorder %s14, 1
      %s162 = scalar_select %p161, %s14, 1
      %s163 = smul.addr %s162, 8
      %s164 = smul.addr %s163, 2
      %s165 = scalar_lea.vmem %s0, %s164
      %p166 = scmp.lt.s32.totalorder %s14, 1
      %s167 = scalar_select %p166, %s14, 1
      %s168 = smul.addr %s167, 8
      %s169 = smul.addr %s168, 4
      %s170 = scalar_lea.vmem %s3, %s169
      %v171 = vld [vmem:[%s165] sm:$0xff]
      %v172 = vld [vmem:[%s165 + $0x8] sm:$0xff]
      %v173 = vunpack.c.l.bf16 %v171
      %v174 = vunpack.c.h.bf16 %v171
      %v175 = vunpack.c.l.bf16 %v172
      %v176 = vunpack.c.h.bf16 %v172
      %v177 = vld [vmem:[%s1] sm:$0xf]
      %179 = vset.pattern.permute.xlu0 0
      %180 = vperm.xlu0 %179, %v177
      %v181 = vpop.permute.xlu0 %180
      %v183 = vunpack.c.l.s4 839922192
      %v184 = vunpack.c.0.s8 %v183
      %v185 = vlaneseq
      %v186 = vshrl.u32 %v185, 7
      %v187 = vsub.s32 %v184, %v186
      %v188 = vrot.slane %v181, %v187
      %v190 = vmul.f32 %v173, %v188
      %v191 = vmul.f32 %v174, %v188
      %v192 = vmul.f32 %v175, %v188
      %v193 = vmul.f32 %v176, %v188
      %v194 = vld [vmem:[%s2] sm:$0xf]
      %196 = vset.pattern.permute.xlu0 0
      %197 = vperm.xlu0 %196, %v194
      %v198 = vpop.permute.xlu0 %197
      %v200 = vunpack.c.l.s4 839922192
      %v201 = vunpack.c.0.s8 %v200
      %v202 = vlaneseq
      %v203 = vshrl.u32 %v202, 7
      %v204 = vsub.s32 %v201, %v203
      %v205 = vrot.slane %v198, %v204
      %v207 = vadd.f32 %v190, %v205
      %v208 = vadd.f32 %v191, %v205
      %v209 = vadd.f32 %v192, %v205
      %v210 = vadd.f32 %v193, %v205
      %v211 = vmax.f32 %v207, 0.0
      %v212 = vmax.f32 %v208, 0.0
      %v213 = vmax.f32 %v209, 0.0
      %v214 = vmax.f32 %v210, 0.0
      %215 = vst [vmem:[%s170] sm:$0xff] %v211
      %216 = vst [vmem:[%s170 + $0x8] sm:$0xff] %v212
      %217 = vst [vmem:[%s170 + $0x10] sm:$0xff] %v213
      %218 = vst [vmem:[%s170 + $0x18] sm:$0xff] %v214
      %p219 = scmp.lt.s32.totalorder %s14, 1
      %s220 = scalar_select %p219, %s14, 1
      %s221 = smul.addr %s220, 8
      %s222 = smul.addr %s221, 4
      %s223 = scalar_lea.vmem %s3, %s222
      // Predicated region
      $region33: #{decoder_block_forward.9} parent=31 // pred_check
        %p224 = pneg %p100
      $region34: #{decoder_block_forward.9} parent=31 // pred_check_branch
        %226 = sbr.rel (%p224) target = $region36
      $region35: #{decoder_block_forward.9} parent=31 // pred_region
        _
      $region36: #{decoder_block_forward.9} parent=31 // pred_fallthru
        _
    $region32: #{decoder_block_forward.9} parent=5 // pred_fallthru
      _
    %p227 = scmp.le.s32.totalorder 2, %s9
    // Predicated region
    $region37: #{decoder_block_forward.9} parent=5 // pred_check
      %p228 = pneg %p227
    $region38: #{decoder_block_forward.9} parent=5 // pred_check_branch
      %230 = sbr.rel (%p228) target = $region40
    $region39: #{decoder_block_forward.9} parent=5 // pred_region
      %s231 = ssub.s32 %s9, 2
      // Predicated region
      $region41: #{decoder_block_forward.9} parent=39 // pred_check
        %p232 = pneg %p106
      $region42: #{decoder_block_forward.9} parent=39 // pred_check_branch
        %234 = sbr.rel (%p232) target = $region44
      $region43: #{decoder_block_forward.9} parent=39 // pred_region
        %p235 = scmp.lt.s32.totalorder %s15, 1
        %s236 = scalar_select %p235, %s15, 1
        %s237 = smul.addr %s236, 8
        %s238 = smul.addr %s237, 4
        %s239 = scalar_lea.vmem %s3, %s238
      $region44: #{decoder_block_forward.9} parent=39 // pred_fallthru
        _
    $region40: #{decoder_block_forward.9} parent=5 // pred_fallthru
      _
  $region6: #{decoder_block_forward.9} parent=0 // loop_footer
    %s13 = sadd.s32 1, %s9
  $region7: #{decoder_block_forward.9} parent=0 // loop_footer_branch
    %8 = sbr.rel target = $region3
  $region8: #{decoder_block_forward.9} parent=0 // loop_exit
    _

// kernel: decoder_block_forward.6
$region0: #{decoder_block_forward.6}
  #allocation0 [shape = 'u32[]', space=smem, size = 0x4, offset = 0x4, fixed_abs, tag = 'smem constant byte address 0x4 - core index']
  #allocation1 [shape = 'u32[144,128]{1,0:T(1,128)}', space=vmem, size = 0x12000, scoped, tag = 'internal scratch']
  #allocation2 [shape = 'bf16[8,1090]{1,0:T(8,128)(2,1)}', space=vmem, size = 0x4800, scoped, tag = 'scratch operand']
  #allocation3 [shape = 'bf16[72,1024]{1,0:T(8,128)(2,1)}', space=vmem, size = 0x24000, scoped, tag = 'scratch operand']
  %s0 = inlined_call_operand.vmem [shape: bf16[2,8,1024], index: 0, kind: input, shape index: {}]
  %s1 = inlined_call_operand.vmem [shape: bf16[2,1024], index: 1, kind: input, shape index: {}]
  %s2 = inlined_call_operand.vmem [shape: f32[8,1], index: 2, kind: input, shape index: {}]
  %s3 = inlined_call_operand.vmem [shape: f32[8,1], index: 3, kind: input, shape index: {}]
  %s4 = inlined_call_operand.vmem [shape: bf16[4,72], index: 4, kind: input, shape index: {}]
  %s5 = inlined_call_operand.vmem [shape: f32[4,1], index: 5, kind: input, shape index: {}]
  %s6 = inlined_call_operand.vmem [shape: bf16[2,4,1024], index: 6, kind: output, shape index: {0}]
  %s7 = inlined_call_operand.vmem [shape: f32[2,4,2], index: 7, kind: output, shape index: {1}]
  %8 = xla_tuple %s6, %s7
  %s9 = sld [smem:[#allocation0]]
  $region65: #{decoder_block_forward.6} parent=0
    _
  %s11 = ssub.s32 1, %s9
  %s12 = scalar_select 0, %s11, %s9
  loop: start=0, step=1, limit=4
  $region2: #{decoder_block_forward.6} parent=0 // loop_pre_header
    _
  $region3: #{decoder_block_forward.6} parent=0 // loop_header
    %s14 = sphi 0, %s18
    %p15 = scmp.ge.s32.totalorder %s14, 4
    %s24 = sphi 0, %s26
    %s27 = sphi 0, %s24
    %s28 = sphi 0, %s27
    %s44 = sphi 0, %s28
    %s48 = sphi 0, %s48
    %s50 = sphi 0, %s48
    %s51 = sphi 0, %s50
    %s65 = sphi 0, %s51
    %s69 = sphi 0, %s69
    %s71 = sphi 0, %s69
    %s72 = sphi 0, %s71
    %s86 = sphi 0, %s72
    %s90 = sphi 0, %s90
    %s92 = sphi 0, %s90
    %s93 = sphi 0, %s92
    %s107 = sphi 0, %s93
    %s111 = sphi 0, %s111
    %s113 = sphi 0, %s111
    %s114 = sphi 0, %s113
    %s128 = sphi 0, %s114
    %s132 = sphi 0, %s132
    %s134 = sphi 0, %s132
    %s135 = sphi 0, %s134
    %s149 = sphi 0, %s135
    %s155 = sphi 0, %s157
    %s158 = sphi 0, %s155
    %s159 = sphi 0, %s158
    %s175 = sphi 0, %s159
    %s181 = sphi 0, %s183
    %s184 = sphi 0, %s181
    %s185 = sphi 0, %s184
    %s201 = sphi 0, %s185
  $region4: #{decoder_block_forward.6} parent=0 // loop_header_branch
    %17 = sbr.rel (%p15) target = $region8
  $region5: #{decoder_block_forward.6} parent=0 // loop_body
    %s19 = ssub.s32 %s14, 1
    %s20 = ssub.s32 %s14, 2
    %s21 = sadd.s32 %s14, 1
    %s22 = ssub.s32 %s14, %s21
    %p23 = scmp.eq.s32.totalorder %s22, 0
    %s25 = sadd.s32 %s24, 1
    %s26 = scalar_select %p23, %s24, %s25
    %p29 = pneg %p23
    %p30 = scmp.eq.s32.totalorder %s14, 1
    %p31 = por %p29, %p30
    %p32 = scmp.ne.s32.totalorder %s24, %s27
    %p33 = scmp.eq.s32.totalorder %s14, 0
    %p34 = por %p32, %p33
    %p35 = scmp.ne.s32.totalorder %s24, %s27
    %p36 = scmp.eq.s32.totalorder %s19, 1
    %p37 = por %p35, %p36
    %p38 = scmp.ne.s32.totalorder %s27, %s28
    %p39 = scmp.eq.s32.totalorder %s19, 0
    %p40 = por %p38, %p39
    %p41 = scmp.ne.s32.totalorder %s27, %s28
    %p42 = scmp.eq.s32.totalorder %s20, 1
    %p43 = por %p41, %p42
    %p45 = scmp.ne.s32.totalorder %s28, %s44
    %p46 = scmp.eq.s32.totalorder %s20, 0
    %p47 = por %p45, %p46
    %s49 = sadd.s32 %s48, 1
    %p52 = scmp.eq.s32.totalorder %s14, 1
    %p53 = scmp.ne.s32.totalorder %s48, %s50
    %p54 = scmp.eq.s32.totalorder %s14, 0
    %p55 = por %p53, %p54
    %p56 = scmp.ne.s32.totalorder %s48, %s50
    %p57 = scmp.eq.s32.totalorder %s19, 1
    %p58 = por %p56, %p57
    %p59 = scmp.ne.s32.totalorder %s50, %s51
    %p60 = scmp.eq.s32.totalorder %s19, 0
    %p61 = por %p59, %p60
    %p62 = scmp.ne.s32.totalorder %s50, %s51
    %p63 = scmp.eq.s32.totalorder %s20, 1
    %p64 = por %p62, %p63
    %p66 = scmp.ne.s32.totalorder %s51, %s65
    %p67 = scmp.eq.s32.totalorder %s20, 0
    %p68 = por %p66, %p67
    %s70 = sadd.s32 %s69, 1
    %p73 = scmp.eq.s32.totalorder %s14, 1
    %p74 = scmp.ne.s32.totalorder %s69, %s71
    %p75 = scmp.eq.s32.totalorder %s14, 0
    %p76 = por %p74, %p75
    %p77 = scmp.ne.s32.totalorder %s69, %s71
    %p78 = scmp.eq.s32.totalorder %s19, 1
    %p79 = por %p77, %p78
    %p80 = scmp.ne.s32.totalorder %s71, %s72
    %p81 = scmp.eq.s32.totalorder %s19, 0
    %p82 = por %p80, %p81
    %p83 = scmp.ne.s32.totalorder %s71, %s72
    %p84 = scmp.eq.s32.totalorder %s20, 1
    %p85 = por %p83, %p84
    %p87 = scmp.ne.s32.totalorder %s72, %s86
    %p88 = scmp.eq.s32.totalorder %s20, 0
    %p89 = por %p87, %p88
    %s91 = sadd.s32 %s90, 1
    %p94 = scmp.eq.s32.totalorder %s14, 1
    %p95 = scmp.ne.s32.totalorder %s90, %s92
    %p96 = scmp.eq.s32.totalorder %s14, 0
    %p97 = por %p95, %p96
    %p98 = scmp.ne.s32.totalorder %s90, %s92
    %p99 = scmp.eq.s32.totalorder %s19, 1
    %p100 = por %p98, %p99
    %p101 = scmp.ne.s32.totalorder %s92, %s93
    %p102 = scmp.eq.s32.totalorder %s19, 0
    %p103 = por %p101, %p102
    %p104 = scmp.ne.s32.totalorder %s92, %s93
    %p105 = scmp.eq.s32.totalorder %s20, 1
    %p106 = por %p104, %p105
    %p108 = scmp.ne.s32.totalorder %s93, %s107
    %p109 = scmp.eq.s32.totalorder %s20, 0
    %p110 = por %p108, %p109
    %s112 = sadd.s32 %s111, 1
    %p115 = scmp.eq.s32.totalorder %s14, 1
    %p116 = scmp.ne.s32.totalorder %s111, %s113
    %p117 = scmp.eq.s32.totalorder %s14, 0
    %p118 = por %p116, %p117
    %p119 = scmp.ne.s32.totalorder %s111, %s113
    %p120 = scmp.eq.s32.totalorder %s19, 1
    %p121 = por %p119, %p120
    %p122 = scmp.ne.s32.totalorder %s113, %s114
    %p123 = scmp.eq.s32.totalorder %s19, 0
    %p124 = por %p122, %p123
    %p125 = scmp.ne.s32.totalorder %s113, %s114
    %p126 = scmp.eq.s32.totalorder %s20, 1
    %p127 = por %p125, %p126
    %p129 = scmp.ne.s32.totalorder %s114, %s128
    %p130 = scmp.eq.s32.totalorder %s20, 0
    %p131 = por %p129, %p130
    %s133 = sadd.s32 %s132, 1
    %p136 = scmp.eq.s32.totalorder %s14, 1
    %p137 = scmp.ne.s32.totalorder %s132, %s134
    %p138 = scmp.eq.s32.totalorder %s14, 0
    %p139 = por %p137, %p138
    %p140 = scmp.ne.s32.totalorder %s132, %s134
    %p141 = scmp.eq.s32.totalorder %s19, 1
    %p142 = por %p140, %p141
    %p143 = scmp.ne.s32.totalorder %s134, %s135
    %p144 = scmp.eq.s32.totalorder %s19, 0
    %p145 = por %p143, %p144
    %p146 = scmp.ne.s32.totalorder %s134, %s135
    %p147 = scmp.eq.s32.totalorder %s20, 1
    %p148 = por %p146, %p147
    %p150 = scmp.ne.s32.totalorder %s135, %s149
    %p151 = scmp.eq.s32.totalorder %s20, 0
    %p152 = por %p150, %p151
    %s153 = ssub.s32 %s14, %s21
    %p154 = scmp.eq.s32.totalorder %s153, 0
    %s156 = sadd.s32 %s155, 1
    %s157 = scalar_select %p154, %s155, %s156
    %p160 = pneg %p154
    %p161 = scmp.eq.s32.totalorder %s14, 1
    %p162 = por %p160, %p161
    %p163 = scmp.ne.s32.totalorder %s155, %s158
    %p164 = scmp.eq.s32.totalorder %s14, 0
    %p165 = por %p163, %p164
    %p166 = scmp.ne.s32.totalorder %s155, %s158
    %p167 = scmp.eq.s32.totalorder %s19, 1
    %p168 = por %p166, %p167
    %p169 = scmp.ne.s32.totalorder %s158, %s159
    %p170 = scmp.eq.s32.totalorder %s19, 0
    %p171 = por %p169, %p170
    %p172 = scmp.ne.s32.totalorder %s158, %s159
    %p173 = scmp.eq.s32.totalorder %s20, 1
    %p174 = por %p172, %p173
    %p176 = scmp.ne.s32.totalorder %s159, %s175
    %p177 = scmp.eq.s32.totalorder %s20, 0
    %p178 = por %p176, %p177
    %s179 = ssub.s32 %s14, %s21
    %p180 = scmp.eq.s32.totalorder %s179, 0
    %s182 = sadd.s32 %s181, 1
    %s183 = scalar_select %p180, %s181, %s182
    %p186 = pneg %p180
    %p187 = scmp.eq.s32.totalorder %s14, 1
    %p188 = por %p186, %p187
    %p189 = scmp.ne.s32.totalorder %s181, %s184
    %p190 = scmp.eq.s32.totalorder %s14, 0
    %p191 = por %p189, %p190
    %p192 = scmp.ne.s32.totalorder %s181, %s184
    %p193 = scmp.eq.s32.totalorder %s19, 1
    %p194 = por %p192, %p193
    %p195 = scmp.ne.s32.totalorder %s184, %s185
    %p196 = scmp.eq.s32.totalorder %s19, 0
    %p197 = por %p195, %p196
    %p198 = scmp.ne.s32.totalorder %s184, %s185
    %p199 = scmp.eq.s32.totalorder %s20, 1
    %p200 = por %p198, %p199
    %p202 = scmp.ne.s32.totalorder %s185, %s201
    %p203 = scmp.eq.s32.totalorder %s20, 0
    %p204 = por %p202, %p203
    %p205 = scmp.le.s32.totalorder 1, %s14
    %p206 = scmp.lt.s32.totalorder %s14, 3
    %p207 = pnand %p205, %p206
    %p208 = pneg %p207
    // Predicated region
    $region9: #{decoder_block_forward.6} parent=5 // pred_check
      _
    $region10: #{decoder_block_forward.6} parent=5 // pred_check_branch
      %210 = sbr.rel (%p207) target = $region12
    $region11: #{decoder_block_forward.6} parent=5 // pred_region
      %s211 = ssub.s32 %s14, 1
      // Predicated region
      $region13: #{decoder_block_forward.6} parent=11 // pred_check
        %p212 = pneg %p61
      $region14: #{decoder_block_forward.6} parent=11 // pred_check_branch
        %214 = sbr.rel (%p212) target = $region16
      $region15: #{decoder_block_forward.6} parent=11 // pred_region
        _
      $region16: #{decoder_block_forward.6} parent=11 // pred_fallthru
        _
      // Predicated region
      $region17: #{decoder_block_forward.6} parent=11 // pred_check
        %p215 = pneg %p82
      $region18: #{decoder_block_forward.6} parent=11 // pred_check_branch
        %217 = sbr.rel (%p215) target = $region20
      $region19: #{decoder_block_forward.6} parent=11 // pred_region
        _
      $region20: #{decoder_block_forward.6} parent=11 // pred_fallthru
        _
      // Predicated region
      $region21: #{decoder_block_forward.6} parent=11 // pred_check
        %p218 = pneg %p103
      $region22: #{decoder_block_forward.6} parent=11 // pred_check_branch
        %220 = sbr.rel (%p218) target = $region24
      $region23: #{decoder_block_forward.6} parent=11 // pred_region
        _
      $region24: #{decoder_block_forward.6} parent=11 // pred_fallthru
        _
      // Predicated region
      $region25: #{decoder_block_forward.6} parent=11 // pred_check
        %p221 = pneg %p124
      $region26: #{decoder_block_forward.6} parent=11 // pred_check_branch
        %223 = sbr.rel (%p221) target = $region28
      $region27: #{decoder_block_forward.6} parent=11 // pred_region
        _
      $region28: #{decoder_block_forward.6} parent=11 // pred_fallthru
        _
      // Predicated region
      $region29: #{decoder_block_forward.6} parent=11 // pred_check
        %p224 = pneg %p145
      $region30: #{decoder_block_forward.6} parent=11 // pred_check_branch
        %226 = sbr.rel (%p224) target = $region32
      $region31: #{decoder_block_forward.6} parent=11 // pred_region
        _
      $region32: #{decoder_block_forward.6} parent=11 // pred_fallthru
        _
    $region12: #{decoder_block_forward.6} parent=5 // pred_fallthru
      _
    %p227 = scmp.lt.s32.totalorder %s14, 2
    // Predicated region
    $region33: #{decoder_block_forward.6} parent=5 // pred_check
      %p228 = pneg %p227
    $region34: #{decoder_block_forward.6} parent=5 // pred_check_branch
      %230 = sbr.rel (%p228) target = $region36
    $region35: #{decoder_block_forward.6} parent=5 // pred_region
      // Predicated region
      $region37: #{decoder_block_forward.6} parent=35 // pred_check
        %p231 = pneg %p34
      $region38: #{decoder_block_forward.6} parent=35 // pred_check_branch
        %233 = sbr.rel (%p231) target = $region40
      $region39: #{decoder_block_forward.6} parent=35 // pred_region
        %p234 = scmp.lt.s32.totalorder %s14, 1
        %s235 = scalar_select %p234, %s14, 1
        %s236 = smul.addr %s235, 8
        %s237 = smul.addr %s236, 4
        %s238 = scalar_lea.vmem %s0, %s237
      $region40: #{decoder_block_forward.6} parent=35 // pred_fallthru
        _
    $region36: #{decoder_block_forward.6} parent=5 // pred_fallthru
      _
    %p239 = scmp.le.s32.totalorder 1, %s14
    %p240 = scmp.lt.s32.totalorder %s14, 3
    %p241 = pnand %p239, %p240
    %p242 = pneg %p241
    // Predicated region
    $region41: #{decoder_block_forward.6} parent=5 // pred_check
      _
    $region42: #{decoder_block_forward.6} parent=5 // pred_check_branch
      %244 = sbr.rel (%p241) target = $region44
    $region43: #{decoder_block_forward.6} parent=5 // pred_region
      %s245 = ssub.s32 %s14, 1
      %p246 = scmp.lt.s32.totalorder %s19, 1
      %s247 = scalar_select %p246, %s19, 1
      %s248 = smul.addr %s247, 8
      %s249 = smul.addr %s248, 4
      %s250 = scalar_lea.vmem %s0, %s249
      %p251 = pneg %p40
      %p252 = pneg %p37
      %p253 = pneg %p61
      %p254 = pneg %p58
      %p255 = pneg %p82
      %p256 = pneg %p79
      %p257 = pneg %p103
      %p258 = pneg %p100
      %p259 = pneg %p124
      %p260 = pneg %p121
      %p261 = pneg %p145
      %p262 = pneg %p142
      %p263 = pneg %p171
      %p264 = pneg %p168
      %p265 = scmp.lt.s32.totalorder %s19, 1
      %s266 = scalar_select %p265, %s19, 1
      %s267 = smul.addr %s266, 8
      %s268 = smul.addr %s267, 2
      %s269 = scalar_lea.vmem %s6, %s268
      %p270 = pneg %p197
      %p271 = pneg %p194
      %p272 = scmp.lt.s32.totalorder %s19, 1
      %s273 = scalar_select %p272, %s19, 1
      %s274 = smul.addr %s273, 4
      %s275 = scalar_lea.vmem %s7, %s274
      %p276 = scmp.lt.s32.totalorder %s19, 1
      %s277 = scalar_select %p276, %s19, 1
      %s278 = smul.addr %s277, 8
      %s279 = smul.addr %s278, 4
      %s280 = scalar_lea.vmem %s0, %s279
      %p281 = scmp.lt.s32.totalorder %s19, 1
      %s282 = scalar_select %p281, %s19, 1
      %s283 = smul.addr %s282, 8
      %s284 = smul.addr %s283, 2
      %s285 = scalar_lea.vmem %s6, %s284
      %p286 = scmp.lt.s32.totalorder %s19, 1
      %s287 = scalar_select %p286, %s19, 1
      %s288 = smul.addr %s287, 4
      %s289 = scalar_lea.vmem %s7, %s288
      %v291 = vld [vmem:[%s280] sm:$0xff]
      %v292 = vld [vmem:[%s280 + $0x8] sm:$0xff]
      %v293 = vld [vmem:[%s280 + $0x10] sm:$0xff]
      %v294 = vld [vmem:[%s280 + $0x18] sm:$0xff]
      %vm295 = vcmask 265216
      %296 = vst.msk [vmem:[#allocation2] sm:$0xf] %vm295, 0
      %vm297 = vcmask 535816
      %298 = vst.msk [vmem:[#allocation2 + $0x20] sm:$0xf] %vm297, 0
      %303 = vrot.lane.b32.xlu0 %v291, 33
      %v304 = vpop.permute.xlu0 %303
      %305 = vrot.lane.b32.xlu0 %v292, 33
      %v306 = vpop.permute.xlu0 %305
      %307 = vrot.lane.b32.xlu0 %v293, 33
      %v308 = vpop.permute.xlu0 %307
      %309 = vrot.lane.b32.xlu0 %v294, 33
      %v310 = vpop.permute.xlu0 %309
      %v311 = vrot.slane %v304, 4
      %v312 = vrot.slane %v306, 4
      %v313 = vrot.slane %v308, 4
      %v314 = vrot.slane %v310, 4
      %vm315 = vcmask 269312
      %v316 = vsel %vm315, %v311, %v304
      %vm317 = vcmask 1043456
      %v318 = vsel %vm317, %v311, %v312
      %v319 = vsel %vm315, %v318, %v306
      %v320 = vsel %vm317, %v312, %v313
      %v321 = vsel %vm315, %v320, %v308
      %v322 = vsel %vm317, %v313, %v314
      %v323 = vsel %vm315, %v322, %v310
      %vm329 = vcmask 1043720
      %vm330 = vcmask 1047556
      %vm331 = vmor %vm330, %vm329
      %332 = vst.msk [vmem:[#allocation2] sm:$0xff] %vm331, %v316
      %333 = vst [vmem:[#allocation2 + $0x8] sm:$0xff] %v319
      %334 = vst [vmem:[#allocation2 + $0x10] sm:$0xff] %v321
      %335 = vst [vmem:[#allocation2 + $0x18] sm:$0xff] %v323
      %336 = vst.msk [vmem:[#allocation2 + $0x20] sm:$0xf] %vm295, %v314
      %v337 = vld [vmem:[%s1] sm:$0xff]
      %v338 = vld [vmem:[#allocation2] sm:$0xff]
      %v339 = vld [vmem:[#allocation2 + $0x8] sm:$0xff]
      %v340 = vld [vmem:[#allocation2 + $0x10] sm:$0xff]
      %v341 = vld [vmem:[#allocation2 + $0x18] sm:$0xff]
      %v343 = vcombine.high %v337, %v337
      %v345 = vunpack.c.l.s4 1966171168
      %v346 = vunpack.c.0.s8 %v345
      %v347 = vlaneseq
      %v348 = vshrl.u32 %v347, 7
      %v349 = vsub.s32 %v346, %v348
      %v350 = vrot.slane %v337, %v349
      %v352 = vunpack.c.l.s4 1966171168
      %v353 = vunpack.c.0.s8 %v352
      %v354 = vlaneseq
      %v355 = vshrl.u32 %v354, 7
      %v356 = vsub.s32 %v353, %v355
      %v357 = vrot.slane %v343, %v356
      %v358 = vcombine.high %v350, %v350
      %v359 = vcombine.high %v357, %v357
      %v361 = vunpack.c.l.s4 1966171168
      %v362 = vunpack.c.0.s8 %v361
      %v363 = vlaneseq
      %v364 = vshrl.u32 %v363, 7
      %v365 = vsub.s32 %v362, %v364
      %v366 = vrot.slane %v350, %v365
      %v368 = vunpack.c.l.s4 1966171168
      %v369 = vunpack.c.0.s8 %v368
      %v370 = vlaneseq
      %v371 = vshrl.u32 %v370, 7
      %v372 = vsub.s32 %v369, %v371
      %v373 = vrot.slane %v357, %v372
      %v375 = vunpack.c.l.s4 1966171168
      %v376 = vunpack.c.0.s8 %v375
      %v377 = vlaneseq
      %v378 = vshrl.u32 %v377, 7
      %v379 = vsub.s32 %v376, %v378
      %v380 = vrot.slane %v358, %v379
      %v382 = vunpack.c.l.s4 1966171168
      %v383 = vunpack.c.0.s8 %v382
      %v384 = vlaneseq
      %v385 = vshrl.u32 %v384, 7
      %v386 = vsub.s32 %v383, %v385
      %v387 = vrot.slane %v359, %v386
      %v388 = vcombine.high %v366, %v366
      %v389 = vcombine.high %v373, %v373
      %v390 = vcombine.high %v380, %v380
      %v391 = vcombine.high %v387, %v387
      %v393 = vpack.i.b16 %v366, %v366
      %v395 = vlaneseq
      %v396 = vshrl.u32 %v395, 7
      %v397 = vsub.s32 0, %v396
      %v398 = vrot.slane %v393, %v397
      %v400 = vpack.i.b16 %v380, %v380
      %v402 = vlaneseq
      %v403 = vshrl.u32 %v402, 7
      %v404 = vsub.s32 0, %v403
      %v405 = vrot.slane %v400, %v404
      %v407 = vpack.i.b16 %v388, %v388
      %v409 = vlaneseq
      %v410 = vshrl.u32 %v409, 7
      %v411 = vsub.s32 0, %v410
      %v412 = vrot.slane %v407, %v411
      %v414 = vpack.i.b16 %v390, %v390
      %v416 = vlaneseq
      %v417 = vshrl.u32 %v416, 7
      %v418 = vsub.s32 0, %v417
      %v419 = vrot.slane %v414, %v418
      %v421 = vpack.i.b16 %v373, %v373
      %v423 = vlaneseq
      %v424 = vshrl.u32 %v423, 7
      %v425 = vsub.s32 0, %v424
      %v426 = vrot.slane %v421, %v425
      %v428 = vpack.i.b16 %v387, %v387
      %v430 = vlaneseq
      %v431 = vshrl.u32 %v430, 7
      %v432 = vsub.s32 0, %v431
      %v433 = vrot.slane %v428, %v432
      %v435 = vpack.i.b16 %v389, %v389
      %v437 = vlaneseq
      %v438 = vshrl.u32 %v437, 7
      %v439 = vsub.s32 0, %v438
      %v440 = vrot.slane %v435, %v439
      %v442 = vpack.i.b16 %v391, %v391
      %v444 = vlaneseq
      %v445 = vshrl.u32 %v444, 7
      %v446 = vsub.s32 0, %v445
      %v447 = vrot.slane %v442, %v446
      %v456 = vunpack.c.l.b16 %v398
      %v457 = vunpack.c.l.b16 %v405
      %v458 = vunpack.c.l.b16 %v412
      %v459 = vunpack.c.l.b16 %v419
      %v460 = vunpack.c.l.b16 %v426
      %v461 = vunpack.c.l.b16 %v433
      %v462 = vunpack.c.l.b16 %v440
      %v463 = vunpack.c.l.b16 %v447
      %v464 = vpack.c.b16 %v457, %v456
      %v465 = vpack.c.b16 %v459, %v458
      %v466 = vpack.c.b16 %v461, %v460
      %v467 = vpack.c.b16 %v463, %v462
      %v472 = vmul.bf16 %v338, %v464
      %v473 = vmul.bf16 %v339, %v465
      %v474 = vmul.bf16 %v340, %v466
      %v475 = vmul.bf16 %v341, %v467
      %476 = vst [vmem:[#allocation3] sm:$0xff] %v472
      %477 = vst [vmem:[#allocation3 + $0x8] sm:$0xff] %v473
      %478 = vst [vmem:[#allocation3 + $0x10] sm:$0xff] %v474
      %479 = vst [vmem:[#allocation3 + $0x18] sm:$0xff] %v475
      %v480 = vld [vmem:[#allocation2] sm:$0xff]
      %v481 = vld [vmem:[#allocation2 + $0x8] sm:$0xff]
      %v482 = vld [vmem:[#allocation2 + $0x10] sm:$0xff]
      %v483 = vld [vmem:[#allocation2 + $0x18] sm:$0xff]
      %v484 = vld [vmem:[#allocation2 + $0x20] sm:$0xf]
      %490 = vrot.lane.b32.xlu0 %v480, 127
      %v491 = vpop.permute.xlu0 %490
      %492 = vrot.lane.b32.xlu0 %v481, 127
      %v493 = vpop.permute.xlu0 %492
      %494 = vrot.lane.b32.xlu0 %v482, 127
      %v495 = vpop.permute.xlu0 %494
      %496 = vrot.lane.b32.xlu0 %v483, 127
      %v497 = vpop.permute.xlu0 %496
      %498 = vrot.lane.b32.xlu0 %v484, 127
      %v499 = vpop.permute.xlu0 %498
      %v500 = vrot.slane %v491, 4
      %v501 = vrot.slane %v493, 4
      %v502 = vrot.slane %v495, 4
      %v503 = vrot.slane %v497, 4
      %v504 = vrot.slane %v499, 4
      %v505 = vsel %vm317, %v500, %v501
      %vm506 = vcmask 1039360
      %v507 = vsel %vm506, %v491, %v505
      %v508 = vsel %vm317, %v501, %v502
      %v509 = vsel %vm506, %v493, %v508
      %v510 = vsel %vm317, %v502, %v503
      %v511 = vsel %vm506, %v495, %v510
      %v512 = vsel %vm317, %v503, %v504
      %v513 = vsel %vm506, %v497, %v512
      %518 = vst [vmem:[#allocation3 + $0x20] sm:$0xff] %v507
      %519 = vst [vmem:[#allocation3 + $0x28] sm:$0xff] %v509
      %520 = vst [vmem:[#allocation3 + $0x30] sm:$0xff] %v511
      %521 = vst [vmem:[#allocation3 + $0x38] sm:$0xff] %v513
      %v522 = vld [vmem:[#allocation2] sm:$0xff]
      %v523 = vld [vmem:[#allocation2 + $0x8] sm:$0xff]
      %v524 = vld [vmem:[#allocation2 + $0x10] sm:$0xff]
      %v525 = vld [vmem:[#allocation2 + $0x18] sm:$0xff]
      %v526 = vld [vmem:[#allocation2 + $0x20] sm:$0xf]
      %v527 = vshrl.u32 %v366, 16
      %v528 = vpack.i.b16 %v527, %v527
      %v530 = vlaneseq
      %v531 = vshrl.u32 %v530, 7
      %v532 = vsub.s32 0, %v531
      %v533 = vrot.slane %v528, %v532
      %v534 = vshrl.u32 %v380, 16
      %v535 = vpack.i.b16 %v534, %v534
      %v537 = vlaneseq
      %v538 = vshrl.u32 %v537, 7
      %v539 = vsub.s32 0, %v538
      %v540 = vrot.slane %v535, %v539
      %v541 = vshrl.u32 %v388, 16
      %v542 = vpack.i.b16 %v541, %v541
      %v544 = vlaneseq
      %v545 = vshrl.u32 %v544, 7
      %v546 = vsub.s32 0, %v545
      %v547 = vrot.slane %v542, %v546
      %v548 = vshrl.u32 %v390, 16
      %v549 = vpack.i.b16 %v548, %v548
      %v551 = vlaneseq
      %v552 = vshrl.u32 %v551, 7
      %v553 = vsub.s32 0, %v552
      %v554 = vrot.slane %v549, %v553
      %v555 = vshrl.u32 %v373, 16
      %v556 = vpack.i.b16 %v555, %v555
      %v558 = vlaneseq
      %v559 = vshrl.u32 %v558, 7
      %v560 = vsub.s32 0, %v559
      %v561 = vrot.slane %v556, %v560
      %v562 = vshrl.u32 %v387, 16
      %v563 = vpack.i.b16 %v562, %v562
      %v565 = vlaneseq
      %v566 = vshrl.u32 %v565, 7
      %v567 = vsub.s32 0, %v566
      %v568 = vrot.slane %v563, %v567
      %v569 = vshrl.u32 %v389, 16
      %v570 = vpack.i.b16 %v569, %v569
      %v572 = vlaneseq
      %v573 = vshrl.u32 %v572, 7
      %v574 = vsub.s32 0, %v573
      %v575 = vrot.slane %v570, %v574
      %v576 = vshrl.u32 %v391, 16
      %v577 = vpack.i.b16 %v576, %v576
      %v579 = vlaneseq
      %v580 = vshrl.u32 %v579, 7
      %v581 = vsub.s32 0, %v580
      %v582 = vrot.slane %v577, %v581
      %v591 = vunpack.c.l.b16 %v533
      %v592 = vunpack.c.l.b16 %v540
      %v593 = vunpack.c.l.b16 %v547
      %v594 = vunpack.c.l.b16 %v554
      %v595 = vunpack.c.l.b16 %v561
      %v596 = vunpack.c.l.b16 %v568
      %v597 = vunpack.c.l.b16 %v575
      %v598 = vunpack.c.l.b16 %v582
      %v599 = vpack.c.b16 %v592, %v591
      %v600 = vpack.c.b16 %v594, %v593
      %v601 = vpack.c.b16 %v596, %v595
      %v602 = vpack.c.b16 %v598, %v597
      %603 = vrot.lane.b32.xlu0 %v599, 2
      %v604 = vpop.permute.xlu0 %603
      %605 = vrot.lane.b32.xlu0 %v600, 2
      %v606 = vpop.permute.xlu0 %605
      %607 = vrot.lane.b32.xlu0 %v601, 2
      %v608 = vpop.permute.xlu0 %607
      %609 = vrot.lane.b32.xlu0 %v602, 2
      %v610 = vpop.permute.xlu0 %609
      %v611 = vrot.slane %v604, 4
      %v612 = vrot.slane %v606, 4
      %v613 = vrot.slane %v608, 4
      %v614 = vrot.slane %v610, 4
      %vm615 = vcmask 15360
      %v616 = vsel %vm615, %v611, %v604
      %v617 = vsel %vm317, %v611, %v612
      %v618 = vsel %vm615, %v617, %v606
      %v619 = vsel %vm317, %v612, %v613
      %v620 = vsel %vm615, %v619, %v608
      %v621 = vsel %vm317, %v613, %v614
      %v622 = vsel %vm615, %v621, %v610
      %v628 = vmul.bf16 %v522, %v616
      %v629 = vmul.bf16 %v523, %v618
      %v630 = vmul.bf16 %v524, %v620
      %v631 = vmul.bf16 %v525, %v622
      %v632 = vmul.bf16 %v526, %v614
      %638 = vrot.lane.b32.xlu0 %v628, 126
      %v639 = vpop.permute.xlu0 %638
      %640 = vrot.lane.b32.xlu0 %v629, 126
      %v641 = vpop.permute.xlu0 %640
      %642 = vrot.lane.b32.xlu0 %v630, 126
      %v643 = vpop.permute.xlu0 %642
      %644 = vrot.lane.b32.xlu0 %v631, 126
      %v645 = vpop.permute.xlu0 %644
      %646 = vrot.lane.b32.xlu0 %v632, 126
      %v647 = vpop.permute.xlu0 %646
      %v648 = vrot.slane %v639, 4
      %v649 = vrot.slane %v641, 4
      %v650 = vrot.slane %v643, 4
      %v651 = vrot.slane %v645, 4
      %v652 = vrot.slane %v647, 4
      %v653 = vsel %vm317, %v648, %v649
      %vm654 = vcmask 1031168
      %v655 = vsel %vm654, %v639, %v653
      %v656 = vsel %vm317, %v649, %v650
      %v657 = vsel %vm654, %v641, %v656
      %v658 = vsel %vm317, %v650, %v651
      %v659 = vsel %vm654, %v643, %v658
      %v660 = vsel %vm317, %v651, %v652
      %v661 = vsel %vm654, %v645, %v660
      %666 = vst [vmem:[#allocation3 + $0x40] sm:$0xff] %v655
      %667 = vst [vmem:[#allocation3 + $0x48] sm:$0xff] %v657
      %668 = vst [vmem:[#allocation3 + $0x50] sm:$0xff] %v659
      %669 = vst [vmem:[#allocation3 + $0x58] sm:$0xff] %v661
      %v670 = vld [vmem:[#allocation2] sm:$0xff]
      %v671 = vld [vmem:[#allocation2 + $0x8] sm:$0xff]
      %v672 = vld [vmem:[#allocation2 + $0x10] sm:$0xff]
      %v673 = vld [vmem:[#allocation2 + $0x18] sm:$0xff]
      %v674 = vld [vmem:[#allocation2 + $0x20] sm:$0xf]
      %675 = vrot.lane.b32.xlu0 %v464, 32
      %v676 = vpop.permute.xlu0 %675
      %677 = vrot.lane.b32.xlu0 %v465, 32
      %v678 = vpop.permute.xlu0 %677
      %679 = vrot.lane.b32.xlu0 %v466, 32
      %v680 = vpop.permute.xlu0 %679
      %681 = vrot.lane.b32.xlu0 %v467, 32
      %v682 = vpop.permute.xlu0 %681
      %v683 = vrot.slane %v676, 4
      %v684 = vrot.slane %v678, 4
      %v685 = vrot.slane %v680, 4
      %v686 = vrot.slane %v682, 4
      %vm687 = vcmask 261120
      %v688 = vsel %vm687, %v683, %v676
      %v689 = vsel %vm317, %v683, %v684
      %v690 = vsel %vm687, %v689, %v678
      %v691 = vsel %vm317, %v684, %v685
      %v692 = vsel %vm687, %v691, %v680
      %v693 = vsel %vm317, %v685, %v686
      %v694 = vsel %vm687, %v693, %v682
      %v700 = vmul.bf16 %v670, %v688
      %v701 = vmul.bf16 %v671, %v690
      %v702 = vmul.bf16 %v672, %v692
      %v703 = vmul.bf16 %v673, %v694
      %v704 = vmul.bf16 %v674, %v686
      %710 = vrot.lane.b32.xlu0 %v700, 96
      %v711 = vpop.permute.xlu0 %710
      %712 = vrot.lane.b32.xlu0 %v701, 96
      %v713 = vpop.permute.xlu0 %712
      %714 = vrot.lane.b32.xlu0 %v702, 96
      %v715 = vpop.permute.xlu0 %714
      %716 = vrot.lane.b32.xlu0 %v703, 96
      %v717 = vpop.permute.xlu0 %716
      %718 = vrot.lane.b32.xlu0 %v704, 96
      %v719 = vpop.permute.xlu0 %718
      %v720 = vrot.slane %v711, 4
      %v721 = vrot.slane %v713, 4
      %v722 = vrot.slane %v715, 4
      %v723 = vrot.slane %v717, 4
      %v724 = vrot.slane %v719, 4
      %v725 = vsel %vm317, %v720, %v721
      %vm726 = vcmask 785408
      %v727 = vsel %vm726, %v711, %v725
      %v728 = vsel %vm317, %v721, %v722
      %v729 = vsel %vm726, %v713, %v728
      %v730 = vsel %vm317, %v722, %v723
      %v731 = vsel %vm726, %v715, %v730
      %v732 = vsel %vm317, %v723, %v724
      %v733 = vsel %vm726, %v717, %v732
      %738 = vst [vmem:[#allocation3 + $0x60] sm:$0xff] %v727
      %739 = vst [vmem:[#allocation3 + $0x68] sm:$0xff] %v729
      %740 = vst [vmem:[#allocation3 + $0x70] sm:$0xff] %v731
      %741 = vst [vmem:[#allocation3 + $0x78] sm:$0xff] %v733
      %v742 = vld [vmem:[#allocation2] sm:$0xff]
      %v743 = vld [vmem:[#allocation2 + $0x8] sm:$0xff]
      %v744 = vld [vmem:[#allocation2 + $0x10] sm:$0xff]
      %v745 = vld [vmem:[#allocation2 + $0x18] sm:$0xff]
      %v746 = vld [vmem:[#allocation2 + $0x20] sm:$0xf]
      %752 = vrot.lane.b32.xlu0 %v742, 95
      %v753 = vpop.permute.xlu0 %752
      %754 = vrot.lane.b32.xlu0 %v743, 95
      %v755 = vpop.permute.xlu0 %754
      %756 = vrot.lane.b32.xlu0 %v744, 95
      %v757 = vpop.permute.xlu0 %756
      %758 = vrot.lane.b32.xlu0 %v745, 95
      %v759 = vpop.permute.xlu0 %758
      %760 = vrot.lane.b32.xlu0 %v746, 95
      %v761 = vpop.permute.xlu0 %760
      %v762 = vrot.slane %v753, 4
      %v763 = vrot.slane %v755, 4
      %v764 = vrot.slane %v757, 4
      %v765 = vrot.slane %v759, 4
      %v766 = vrot.slane %v761, 4
      %v767 = vsel %vm317, %v762, %v763
      %vm768 = vcmask 777216
      %v769 = vsel %vm768, %v753, %v767
      %v770 = vsel %vm317, %v763, %v764
      %v771 = vsel %vm768, %v755, %v770
      %v772 = vsel %vm317, %v764, %v765
      %v773 = vsel %vm768, %v757, %v772
      %v774 = vsel %vm317, %v765, %v766
      %v775 = vsel %vm768, %v759, %v774
      %780 = vst [vmem:[#allocation3 + $0x80] sm:$0xff] %v769
      %781 = vst [vmem:[#allocation3 + $0x88] sm:$0xff] %v771
      %782 = vst [vmem:[#allocation3 + $0x90] sm:$0xff] %v773
      %783 = vst [vmem:[#allocation3 + $0x98] sm:$0xff] %v775
      %v784 = vld [vmem:[#allocation2] sm:$0xff]
      %v785 = vld [vmem:[#allocation2 + $0x8] sm:$0xff]
      %v786 = vld [vmem:[#allocation2 + $0x10] sm:$0xff]
      %v787 = vld [vmem:[#allocation2 + $0x18] sm:$0xff]
      %v788 = vld [vmem:[#allocation2 + $0x20] sm:$0xf]
      %789 = vrot.lane.b32.xlu0 %v599, 34
      %v790 = vpop.permute.xlu0 %789
      %791 = vrot.lane.b32.xlu0 %v600, 34
      %v792 = vpop.permute.xlu0 %791
      %793 = vrot.lane.b32.xlu0 %v601, 34
      %v794 = vpop.permute.xlu0 %793
      %795 = vrot.lane.b32.xlu0 %v602, 34
      %v796 = vpop.permute.xlu0 %795
      %v797 = vrot.slane %v790, 4
      %v798 = vrot.slane %v792, 4
      %v799 = vrot.slane %v794, 4
      %v800 = vrot.slane %v796, 4
      %vm801 = vcmask 277504
      %v802 = vsel %vm801, %v797, %v790
      %v803 = vsel %vm317, %v797, %v798
      %v804 = vsel %vm801, %v803, %v792
      %v805 = vsel %vm317, %v798, %v799
      %v806 = vsel %vm801, %v805, %v794
      %v807 = vsel %vm317, %v799, %v800
      %v808 = vsel %vm801, %v807, %v796
      %v814 = vmul.bf16 %v784, %v802
      %v815 = vmul.bf16 %v785, %v804
      %v816 = vmul.bf16 %v786, %v806
      %v817 = vmul.bf16 %v787, %v808
      %v818 = vmul.bf16 %v788, %v800
      %824 = vrot.lane.b32.xlu0 %v814, 94
      %v825 = vpop.permute.xlu0 %824
      %826 = vrot.lane.b32.xlu0 %v815, 94
      %v827 = vpop.permute.xlu0 %826
      %828 = vrot.lane.b32.xlu0 %v816, 94
      %v829 = vpop.permute.xlu0 %828
      %830 = vrot.lane.b32.xlu0 %v817, 94
      %v831 = vpop.permute.xlu0 %830
      %832 = vrot.lane.b32.xlu0 %v818, 94
      %v833 = vpop.permute.xlu0 %832
      %v834 = vrot.slane %v825, 4
      %v835 = vrot.slane %v827, 4
      %v836 = vrot.slane %v829, 4
      %v837 = vrot.slane %v831, 4
      %v838 = vrot.slane %v833, 4
      %v839 = vsel %vm317, %v834, %v835
      %vm840 = vcmask 769024
      %v841 = vsel %vm840, %v825, %v839
      %v842 = vsel %vm317, %v835, %v836
      %v843 = vsel %vm840, %v827, %v842
      %v844 = vsel %vm317, %v836, %v837
      %v845 = vsel %vm840, %v829, %v844
      %v846 = vsel %vm317, %v837, %v838
      %v847 = vsel %vm840, %v831, %v846
      %852 = vst [vmem:[#allocation3 + $0xa0] sm:$0xff] %v841
      %853 = vst [vmem:[#allocation3 + $0xa8] sm:$0xff] %v843
      %854 = vst [vmem:[#allocation3 + $0xb0] sm:$0xff] %v845
      %855 = vst [vmem:[#allocation3 + $0xb8] sm:$0xff] %v847
      %v856 = vld [vmem:[#allocation2] sm:$0xff]
      %v857 = vld [vmem:[#allocation2 + $0x8] sm:$0xff]
      %v858 = vld [vmem:[#allocation2 + $0x10] sm:$0xff]
      %v859 = vld [vmem:[#allocation2 + $0x18] sm:$0xff]
      %v860 = vld [vmem:[#allocation2 + $0x20] sm:$0xf]
      %861 = vrot.lane.b32.xlu0 %v464, 64
      %v862 = vpop.permute.xlu0 %861
      %863 = vrot.lane.b32.xlu0 %v465, 64
      %v864 = vpop.permute.xlu0 %863
      %865 = vrot.lane.b32.xlu0 %v466, 64
      %v866 = vpop.permute.xlu0 %865
      %867 = vrot.lane.b32.xlu0 %v467, 64
      %v868 = vpop.permute.xlu0 %867
      %v869 = vrot.slane %v862, 4
      %v870 = vrot.slane %v864, 4
      %v871 = vrot.slane %v866, 4
      %v872 = vrot.slane %v868, 4
      %vm873 = vcmask 523264
      %v874 = vsel %vm873, %v869, %v862
      %v875 = vsel %vm317, %v869, %v870
      %v876 = vsel %vm873, %v875, %v864
      %v877 = vsel %vm317, %v870, %v871
      %v878 = vsel %vm873, %v877, %v866
      %v879 = vsel %vm317, %v871, %v872
      %v880 = vsel %vm873, %v879, %v868
      %v886 = vmul.bf16 %v856, %v874
      %v887 = vmul.bf16 %v857, %v876
      %v888 = vmul.bf16 %v858, %v878
      %v889 = vmul.bf16 %v859, %v880
      %v890 = vmul.bf16 %v860, %v872
      %896 = vrot.lane.b32.xlu0 %v886, 64
      %v897 = vpop.permute.xlu0 %896
      %898 = vrot.lane.b32.xlu0 %v887, 64
      %v899 = vpop.permute.xlu0 %898
      %900 = vrot.lane.b32.xlu0 %v888, 64
      %v901 = vpop.permute.xlu0 %900
      %902 = vrot.lane.b32.xlu0 %v889, 64
      %v903 = vpop.permute.xlu0 %902
      %904 = vrot.lane.b32.xlu0 %v890, 64
      %v905 = vpop.permute.xlu0 %904
      %v906 = vrot.slane %v897, 4
      %v907 = vrot.slane %v899, 4
      %v908 = vrot.slane %v901, 4
      %v909 = vrot.slane %v903, 4
      %v910 = vrot.slane %v905, 4
      %v911 = vsel %vm317, %v906, %v907
      %v912 = vsel %vm873, %v897, %v911
      %v913 = vsel %vm317, %v907, %v908
      %v914 = vsel %vm873, %v899, %v913
      %v915 = vsel %vm317, %v908, %v909
      %v916 = vsel %vm873, %v901, %v915
      %v917 = vsel %vm317, %v909, %v910
      %v918 = vsel %vm873, %v903, %v917
      %923 = vst [vmem:[#allocation3 + $0xc0] sm:$0xff] %v912
      %924 = vst [vmem:[#allocation3 + $0xc8] sm:$0xff] %v914
      %925 = vst [vmem:[#allocation3 + $0xd0] sm:$0xff] %v916
      %926 = vst [vmem:[#allocation3 + $0xd8] sm:$0xff] %v918
      %v927 = vld [vmem:[#allocation2] sm:$0xff]
      %v928 = vld [vmem:[#allocation2 + $0x8] sm:$0xff]
      %v929 = vld [vmem:[#allocation2 + $0x10] sm:$0xff]
      %v930 = vld [vmem:[#allocation2 + $0x18] sm:$0xff]
      %v931 = vld [vmem:[#allocation2 + $0x20] sm:$0xf]
      %937 = vrot.lane.b32.xlu0 %v927, 63
      %v938 = vpop.permute.xlu0 %937
      %939 = vrot.lane.b32.xlu0 %v928, 63
      %v940 = vpop.permute.xlu0 %939
      %941 = vrot.lane.b32.xlu0 %v929, 63
      %v942 = vpop.permute.xlu0 %941
      %943 = vrot.lane.b32.xlu0 %v930, 63
      %v944 = vpop.permute.xlu0 %943
      %945 = vrot.lane.b32.xlu0 %v931, 63
      %v946 = vpop.permute.xlu0 %945
      %v947 = vrot.slane %v938, 4
      %v948 = vrot.slane %v940, 4
      %v949 = vrot.slane %v942, 4
      %v950 = vrot.slane %v944, 4
      %v951 = vrot.slane %v946, 4
      %v952 = vsel %vm317, %v947, %v948
      %vm953 = vcmask 515072
      %v954 = vsel %vm953, %v938, %v952
      %v955 = vsel %vm317, %v948, %v949
      %v956 = vsel %vm953, %v940, %v955
      %v957 = vsel %vm317, %v949, %v950
      %v958 = vsel %vm953, %v942, %v957
      %v959 = vsel %vm317, %v950, %v951
      %v960 = vsel %vm953, %v944, %v959
      %965 = vst [vmem:[#allocation3 + $0xe0] sm:$0xff] %v954
      %966 = vst [vmem:[#allocation3 + $0xe8] sm:$0xff] %v956
      %967 = vst [vmem:[#allocation3 + $0xf0] sm:$0xff] %v958
      %968 = vst [vmem:[#allocation3 + $0xf8] sm:$0xff] %v960
      %v969 = vld [vmem:[#allocation2] sm:$0xff]
      %v970 = vld [vmem:[#allocation2 + $0x8] sm:$0xff]
      %v971 = vld [vmem:[#allocation2 + $0x10] sm:$0xff]
      %v972 = vld [vmem:[#allocation2 + $0x18] sm:$0xff]
      %v973 = vld [vmem:[#allocation2 + $0x20] sm:$0xf]
      %974 = vrot.lane.b32.xlu0 %v599, 66
      %v975 = vpop.permute.xlu0 %974
      %976 = vrot.lane.b32.xlu0 %v600, 66
      %v977 = vpop.permute.xlu0 %976
      %978 = vrot.lane.b32.xlu0 %v601, 66
      %v979 = vpop.permute.xlu0 %978
      %980 = vrot.lane.b32.xlu0 %v602, 66
      %v981 = vpop.permute.xlu0 %980
      %v982 = vrot.slane %v975, 4
      %v983 = vrot.slane %v977, 4
      %v984 = vrot.slane %v979, 4
      %v985 = vrot.slane %v981, 4
      %vm986 = vcmask 539648
      %v987 = vsel %vm986, %v982, %v975
      %v988 = vsel %vm317, %v982, %v983
      %v989 = vsel %vm986, %v988, %v977
      %v990 = vsel %vm317, %v983, %v984
      %v991 = vsel %vm986, %v990, %v979
      %v992 = vsel %vm317, %v984, %v985
      %v993 = vsel %vm986, %v992, %v981
      %v999 = vmul.bf16 %v969, %v987
      %v1000 = vmul.bf16 %v970, %v989
      %v1001 = vmul.bf16 %v971, %v991
      %v1002 = vmul.bf16 %v972, %v993
      %v1003 = vmul.bf16 %v973, %v985
      %1009 = vrot.lane.b32.xlu0 %v999, 62
      %v1010 = vpop.permute.xlu0 %1009
      %1011 = vrot.lane.b32.xlu0 %v1000, 62
      %v1012 = vpop.permute.xlu0 %1011
      %1013 = vrot.lane.b32.xlu0 %v1001, 62
      %v1014 = vpop.permute.xlu0 %1013
      %1015 = vrot.lane.b32.xlu0 %v1002, 62
      %v1016 = vpop.permute.xlu0 %1015
      %1017 = vrot.lane.b32.xlu0 %v1003, 62
      %v1018 = vpop.permute.xlu0 %1017
      %v1019 = vrot.slane %v1010, 4
      %v1020 = vrot.slane %v1012, 4
      %v1021 = vrot.slane %v1014, 4
      %v1022 = vrot.slane %v1016, 4
      %v1023 = vrot.slane %v1018, 4
      %v1024 = vsel %vm317, %v1019, %v1020
      %vm1025 = vcmask 506880
      %v1026 = vsel %vm1025, %v1010, %v1024
      %v1027 = vsel %vm317, %v1020, %v1021
      %v1028 = vsel %vm1025, %v1012, %v1027
      %v1029 = vsel %vm317, %v1021, %v1022
      %v1030 = vsel %vm1025, %v1014, %v1029
      %v1031 = vsel %vm317, %v1022, %v1023
      %v1032 = vsel %vm1025, %v1016, %v1031
      %1037 = vst [vmem:[#allocation3 + $0x100] sm:$0xff] %v1026
      %1038 = vst [vmem:[#allocation3 + $0x108] sm:$0xff] %v1028
      %1039 = vst [vmem:[#allocation3 + $0x110] sm:$0xff] %v1030
      %1040 = vst [vmem:[#allocation3 + $0x118] sm:$0xff] %v1032
      %v1041 = vld [vmem:[%s4] sm:$0x3]
      %v1042 = vld [vmem:[#allocation3] sm:$0xff]
      %v1043 = vld [vmem:[#allocation3 + $0x8] sm:$0xff]
      %v1044 = vld [vmem:[#allocation3 + $0x10] sm:$0xff]
      %v1045 = vld [vmem:[#allocation3 + $0x18] sm:$0xff]
      %v1046 = vld [vmem:[#allocation3 + $0x20] sm:$0xff]
      %v1047 = vld [vmem:[#allocation3 + $0x28] sm:$0xff]
      %v1048 = vld [vmem:[#allocation3 + $0x30] sm:$0xff]
      %v1049 = vld [vmem:[#allocation3 + $0x38] sm:$0xff]
      %v1050 = vld [vmem:[#allocation3 + $0x40] sm:$0xff]
      %v1051 = vld [vmem:[#allocation3 + $0x48] sm:$0xff]
      %v1052 = vld [vmem:[#allocation3 + $0x50] sm:$0xff]
      %v1053 = vld [vmem:[#allocation3 + $0x58] sm:$0xff]
      %v1054 = vld [vmem:[#allocation3 + $0x60] sm:$0xff]
      %v1055 = vld [vmem:[#allocation3 + $0x68] sm:$0xff]
      %v1056 = vld [vmem:[#allocation3 + $0x70] sm:$0xff]
      %v1057 = vld [vmem:[#allocation3 + $0x78] sm:$0xff]
      %v1058 = vld [vmem:[#allocation3 + $0x80] sm:$0xff]
      %v1059 = vld [vmem:[#allocation3 + $0x88] sm:$0xff]
      %v1060 = vld [vmem:[#allocation3 + $0x90] sm:$0xff]
      %v1061 = vld [vmem:[#allocation3 + $0x98] sm:$0xff]
      %v1062 = vld [vmem:[#allocation3 + $0xa0] sm:$0xff]
      %v1063 = vld [vmem:[#allocation3 + $0xa8] sm:$0xff]
      %v1064 = vld [vmem:[#allocation3 + $0xb0] sm:$0xff]
      %v1065 = vld [vmem:[#allocation3 + $0xb8] sm:$0xff]
      %v1066 = vld [vmem:[#allocation3 + $0xc0] sm:$0xff]
      %v1067 = vld [vmem:[#allocation3 + $0xc8] sm:$0xff]
      %v1068 = vld [vmem:[#allocation3 + $0xd0] sm:$0xff]
      %v1069 = vld [vmem:[#allocation3 + $0xd8] sm:$0xff]
      %v1070 = vld [vmem:[#allocation3 + $0xe0] sm:$0xff]
      %v1071 = vld [vmem:[#allocation3 + $0xe8] sm:$0xff]
      %v1072 = vld [vmem:[#allocation3 + $0xf0] sm:$0xff]
      %v1073 = vld [vmem:[#allocation3 + $0xf8] sm:$0xff]
      %v1074 = vld [vmem:[#allocation3 + $0x100] sm:$0xff]
      %v1075 = vld [vmem:[#allocation3 + $0x108] sm:$0xff]
      %v1076 = vld [vmem:[#allocation3 + $0x110] sm:$0xff]
      %v1077 = vld [vmem:[#allocation3 + $0x118] sm:$0xff]
      %v1078 = vld [vmem:[%s5] sm:$0xf]
      %1080 = vset.pattern.permute.xlu0 0
      %1081 = vperm.xlu0 %1080, %v1078
      %v1082 = vpop.permute.xlu0 %1081
      %v1120 = vunpack.c.l.b16 %v1042
      %v1121 = vunpack.c.h.b16 %v1042
      %v1122 = vunpack.c.l.b16 %v1043
      %v1123 = vunpack.c.h.b16 %v1043
      %v1124 = vunpack.c.l.b16 %v1044
      %v1125 = vunpack.c.h.b16 %v1044
      %v1126 = vunpack.c.l.b16 %v1045
      %v1127 = vunpack.c.h.b16 %v1045
      %v1128 = vunpack.c.l.b16 %v1046
      %v1129 = vunpack.c.h.b16 %v1046
      %v1130 = vunpack.c.l.b16 %v1047
      %v1131 = vunpack.c.h.b16 %v1047
      %v1132 = vunpack.c.l.b16 %v1048
      %v1133 = vunpack.c.h.b16 %v1048
      %v1134 = vunpack.c.l.b16 %v1049
      %v1135 = vunpack.c.h.b16 %v1049
      %v1136 = vunpack.c.l.b16 %v1050
      %v1137 = vunpack.c.h.b16 %v1050
      %v1138 = vunpack.c.l.b16 %v1051
      %v1139 = vunpack.c.h.b16 %v1051
      %v1140 = vunpack.c.l.b16 %v1052
      %v1141 = vunpack.c.h.b16 %v1052
      %v1142 = vunpack.c.l.b16 %v1053
      %v1143 = vunpack.c.h.b16 %v1053
      %v1144 = vunpack.c.l.b16 %v1054
      %v1145 = vunpack.c.h.b16 %v1054
      %v1146 = vunpack.c.l.b16 %v1055
      %v1147 = vunpack.c.h.b16 %v1055
      %v1148 = vunpack.c.l.b16 %v1056
      %v1149 = vunpack.c.h.b16 %v1056
      %v1150 = vunpack.c.l.b16 %v1057
      %v1151 = vunpack.c.h.b16 %v1057
      %v1152 = vunpack.c.l.b16 %v1058
      %v1153 = vunpack.c.h.b16 %v1058
      %v1154 = vunpack.c.l.b16 %v1059
      %v1155 = vunpack.c.h.b16 %v1059
      %v1156 = vunpack.c.l.b16 %v1060
      %v1157 = vunpack.c.h.b16 %v1060
      %v1158 = vunpack.c.l.b16 %v1061
      %v1159 = vunpack.c.h.b16 %v1061
      %v1160 = vunpack.c.l.b16 %v1062
      %v1161 = vunpack.c.h.b16 %v1062
      %v1162 = vunpack.c.l.b16 %v1063
      %v1163 = vunpack.c.h.b16 %v1063
      %v1164 = vunpack.c.l.b16 %v1064
      %v1165 = vunpack.c.h.b16 %v1064
      %v1166 = vunpack.c.l.b16 %v1065
      %v1167 = vunpack.c.h.b16 %v1065
      %v1168 = vunpack.c.l.b16 %v1066
      %v1169 = vunpack.c.h.b16 %v1066
      %v1170 = vunpack.c.l.b16 %v1067
      %v1171 = vunpack.c.h.b16 %v1067
      %v1172 = vunpack.c.l.b16 %v1068
      %v1173 = vunpack.c.h.b16 %v1068
      %v1174 = vunpack.c.l.b16 %v1069
      %v1175 = vunpack.c.h.b16 %v1069
      %v1176 = vunpack.c.l.b16 %v1070
      %v1177 = vunpack.c.h.b16 %v1070
      %v1178 = vunpack.c.l.b16 %v1071
      %v1179 = vunpack.c.h.b16 %v1071
      %v1180 = vunpack.c.l.b16 %v1072
      %v1181 = vunpack.c.h.b16 %v1072
      %v1182 = vunpack.c.l.b16 %v1073
      %v1183 = vunpack.c.h.b16 %v1073
      %v1184 = vunpack.c.l.b16 %v1074
      %v1185 = vunpack.c.h.b16 %v1074
      %v1186 = vunpack.c.l.b16 %v1075
      %v1187 = vunpack.c.h.b16 %v1075
      %v1188 = vunpack.c.l.b16 %v1076
      %v1189 = vunpack.c.h.b16 %v1076
      %v1190 = vunpack.c.l.b16 %v1077
      %v1191 = vunpack.c.h.b16 %v1077
      %v1192 = vpack.c.b16 %v1128, %v1120
      %v1193 = vpack.c.b16 %v1129, %v1121
      %v1194 = vpack.c.b16 %v1130, %v1122
      %v1195 = vpack.c.b16 %v1131, %v1123
      %v1196 = vpack.c.b16 %v1132, %v1124
      %v1197 = vpack.c.b16 %v1133, %v1125
      %v1198 = vpack.c.b16 %v1134, %v1126
      %v1199 = vpack.c.b16 %v1135, %v1127
      %v1200 = vpack.c.b16 %v1144, %v1136
      %v1201 = vpack.c.b16 %v1145, %v1137
      %v1202 = vpack.c.b16 %v1146, %v1138
      %v1203 = vpack.c.b16 %v1147, %v1139
      %v1204 = vpack.c.b16 %v1148, %v1140
      %v1205 = vpack.c.b16 %v1149, %v1141
      %v1206 = vpack.c.b16 %v1150, %v1142
      %v1207 = vpack.c.b16 %v1151, %v1143
      %v1208 = vpack.c.b16 %v1160, %v1152
      %v1209 = vpack.c.b16 %v1161, %v1153
      %v1210 = vpack.c.b16 %v1162, %v1154
      %v1211 = vpack.c.b16 %v1163, %v1155
      %v1212 = vpack.c.b16 %v1164, %v1156
      %v1213 = vpack.c.b16 %v1165, %v1157
      %v1214 = vpack.c.b16 %v1166, %v1158
      %v1215 = vpack.c.b16 %v1167, %v1159
      %v1216 = vpack.c.b16 %v1176, %v1168
      %v1217 = vpack.c.b16 %v1177, %v1169
      %v1218 = vpack.c.b16 %v1178, %v1170
      %v1219 = vpack.c.b16 %v1179, %v1171
      %v1220 = vpack.c.b16 %v1180, %v1172
      %v1221 = vpack.c.b16 %v1181, %v1173
      %v1222 = vpack.c.b16 %v1182, %v1174
      %v1223 = vpack.c.b16 %v1183, %v1175
      %v1224 = vpack.c.b16 %v1184, %v1184
      %v1225 = vpack.c.b16 %v1185, %v1185
      %v1226 = vpack.c.b16 %v1186, %v1186
      %v1227 = vpack.c.b16 %v1187, %v1187
      %v1228 = vpack.c.b16 %v1188, %v1188
      %v1229 = vpack.c.b16 %v1189, %v1189
      %v1230 = vpack.c.b16 %v1190, %v1190
      %v1231 = vpack.c.b16 %v1191, %v1191
      %vm1264 = vcmask 588800
      %v1266 = vsel %vm1264, %v1041, 0
      %vm1268 = vcmask 1043456
      %v1270 = vsel %vm1268, %v1224, 0
      %v1273 = vsel %vm1268, %v1225, 0
      %v1276 = vsel %vm1268, %v1226, 0
      %v1279 = vsel %vm1268, %v1227, 0
      %v1282 = vsel %vm1268, %v1228, 0
      %v1285 = vsel %vm1268, %v1229, 0
      %v1288 = vsel %vm1268, %v1230, 0
      %v1291 = vsel %vm1268, %v1231, 0
      %1293 = vmatprep.subr.bf16.mxu0 %v1193
      %1294 = vmatpush1.bf16.msra.mxu0 %v1192
      %1295 = vmatprep.subr.bf16.mxu0 %v1201
      %1296 = vmatpush1.bf16.msra.mxu0 %v1200
      %1297 = vmatprep.subr.bf16.mxu0 %v1209
      %1298 = vmatpush1.bf16.msra.mxu0 %v1208
      %1299 = vmatprep.subr.bf16.mxu0 %v1217
      %1300 = vmatpush1.bf16.msra.mxu0 %v1216
      %1301 = vmatprep.subr.bf16.mxu0 %v1273
      %1302 = vmatpush1.bf16.msra.mxu0 %v1270
      %1303 = vmatprep.subr.bf16.mxu0 0
      %1304 = vmatpush1.bf16.msra.mxu0 0
      %1305 = vmatprep.subr.bf16.mxu0 0
      %1306 = vmatpush1.bf16.msra.mxu0 0
      %1307 = vmatprep.subr.bf16.mxu0 0
      %1308 = vmatpush1.bf16.msra.mxu0 0
      %1309 = vmatprep.subr.bf16.mxu0 0
      %1310 = vmatpush1.bf16.msra.mxu0 0
      %1311 = vmatprep.subr.bf16.mxu0 0
      %1312 = vmatpush1.bf16.msra.mxu0 0
      %1313 = vmatprep.subr.bf16.mxu0 0
      %1314 = vmatpush1.bf16.msra.mxu0 0
      %1315 = vmatprep.subr.bf16.mxu0 0
      %1316 = vmatpush1.bf16.msra.mxu0 0
      %1317 = vmatprep.subr.bf16.mxu0 0
      %1318 = vmatpush1.bf16.msra.mxu0 0
      %1319 = vmatprep.subr.bf16.mxu0 0
      %1320 = vmatpush1.bf16.msra.mxu0 0
      %1321 = vmatprep.subr.bf16.mxu0 0
      %1322 = vmatpush1.bf16.msra.mxu0 0
      %1323 = vmatprep.subr.bf16.mxu0 0
      %1324 = vmatpush1.bf16.msra.mxu0 0
      %1325 = vmatprep.mubr.bf16.mxu0 0
      %1326 = vmatmul.mubr.bf16.gmra.mrb[0].mxu0 %v1266
      %v1327 = vpop.f32.mrb[0].mxu0
      %v1328 = vadd.f32 %v1082, %v1327
      %v1329 = vpop.f32.mrb[0].mxu0
      %v1330 = vadd.f32 %v1082, %v1329
      %v1331 = vpop.f32.mrb[0].mxu0
      %v1332 = vpop.f32.mrb[0].mxu0
      %1333 = vdwg.mxu0
      %1334 = vmatprep.subr.bf16.mxu0 %v1195
      %1335 = vmatpush1.bf16.msra.mxu0 %v1194
      %1336 = vmatprep.subr.bf16.mxu0 %v1203
      %1337 = vmatpush1.bf16.msra.mxu0 %v1202
      %1338 = vmatprep.subr.bf16.mxu0 %v1211
      %1339 = vmatpush1.bf16.msra.mxu0 %v1210
      %1340 = vmatprep.subr.bf16.mxu0 %v1219
      %1341 = vmatpush1.bf16.msra.mxu0 %v1218
      %1342 = vmatprep.subr.bf16.mxu0 %v1279
      %1343 = vmatpush1.bf16.msra.mxu0 %v1276
      %1344 = vmatprep.subr.bf16.mxu0 0
      %1345 = vmatpush1.bf16.msra.mxu0 0
      %1346 = vmatprep.subr.bf16.mxu0 0
      %1347 = vmatpush1.bf16.msra.mxu0 0
      %1348 = vmatprep.subr.bf16.mxu0 0
      %1349 = vmatpush1.bf16.msra.mxu0 0
      %1350 = vmatprep.subr.bf16.mxu0 0
      %1351 = vmatpush1.bf16.msra.mxu0 0
      %1352 = vmatprep.subr.bf16.mxu0 0
      %1353 = vmatpush1.bf16.msra.mxu0 0
      %1354 = vmatprep.subr.bf16.mxu0 0
      %1355 = vmatpush1.bf16.msra.mxu0 0
      %1356 = vmatprep.subr.bf16.mxu0 0
      %1357 = vmatpush1.bf16.msra.mxu0 0
      %1358 = vmatprep.subr.bf16.mxu0 0
      %1359 = vmatpush1.bf16.msra.mxu0 0
      %1360 = vmatprep.subr.bf16.mxu0 0
      %1361 = vmatpush1.bf16.msra.mxu0 0
      %1362 = vmatprep.subr.bf16.mxu0 0
      %1363 = vmatpush1.bf16.msra.mxu0 0
      %1364 = vmatprep.subr.bf16.mxu0 0
      %1365 = vmatpush1.bf16.msra.mxu0 0
      %1366 = vmatprep.mubr.bf16.mxu0 0
      %1367 = vmatmul.mubr.bf16.gmra.mrb[0].mxu0 %v1266
      %v1368 = vpop.f32.mrb[0].mxu0
      %v1369 = vadd.f32 %v1082, %v1368
      %v1370 = vpop.f32.mrb[0].mxu0
      %v1371 = vadd.f32 %v1082, %v1370
      %v1372 = vpop.f32.mrb[0].mxu0
      %v1373 = vpop.f32.mrb[0].mxu0
      %1374 = vdwg.mxu0
      %1375 = vmatprep.subr.bf16.mxu0 %v1197
      %1376 = vmatpush1.bf16.msra.mxu0 %v1196
      %1377 = vmatprep.subr.bf16.mxu0 %v1205
      %1378 = vmatpush1.bf16.msra.mxu0 %v1204
      %1379 = vmatprep.subr.bf16.mxu0 %v1213
      %1380 = vmatpush1.bf16.msra.mxu0 %v1212
      %1381 = vmatprep.subr.bf16.mxu0 %v1221
      %1382 = vmatpush1.bf16.msra.mxu0 %v1220
      %1383 = vmatprep.subr.bf16.mxu0 %v1285
      %1384 = vmatpush1.bf16.msra.mxu0 %v1282
      %1385 = vmatprep.subr.bf16.mxu0 0
      %1386 = vmatpush1.bf16.msra.mxu0 0
      %1387 = vmatprep.subr.bf16.mxu0 0
      %1388 = vmatpush1.bf16.msra.mxu0 0
      %1389 = vmatprep.subr.bf16.mxu0 0
      %1390 = vmatpush1.bf16.msra.mxu0 0
      %1391 = vmatprep.subr.bf16.mxu0 0
      %1392 = vmatpush1.bf16.msra.mxu0 0
      %1393 = vmatprep.subr.bf16.mxu0 0
      %1394 = vmatpush1.bf16.msra.mxu0 0
      %1395 = vmatprep.subr.bf16.mxu0 0
      %1396 = vmatpush1.bf16.msra.mxu0 0
      %1397 = vmatprep.subr.bf16.mxu0 0
      %1398 = vmatpush1.bf16.msra.mxu0 0
      %1399 = vmatprep.subr.bf16.mxu0 0
      %1400 = vmatpush1.bf16.msra.mxu0 0
      %1401 = vmatprep.subr.bf16.mxu0 0
      %1402 = vmatpush1.bf16.msra.mxu0 0
      %1403 = vmatprep.subr.bf16.mxu0 0
      %1404 = vmatpush1.bf16.msra.mxu0 0
      %1405 = vmatprep.subr.bf16.mxu0 0
      %1406 = vmatpush1.bf16.msra.mxu0 0
      %1407 = vmatprep.mubr.bf16.mxu0 0
      %1408 = vmatmul.mubr.bf16.gmra.mrb[0].mxu0 %v1266
      %v1409 = vpop.f32.mrb[0].mxu0
      %v1410 = vadd.f32 %v1082, %v1409
      %v1411 = vpop.f32.mrb[0].mxu0
      %v1412 = vadd.f32 %v1082, %v1411
      %v1413 = vpop.f32.mrb[0].mxu0
      %v1414 = vpop.f32.mrb[0].mxu0
      %1415 = vdwg.mxu0
      %1416 = vmatprep.subr.bf16.mxu0 %v1199
      %1417 = vmatpush1.bf16.msra.mxu0 %v1198
      %1418 = vmatprep.subr.bf16.mxu0 %v1207
      %1419 = vmatpush1.bf16.msra.mxu0 %v1206
      %1420 = vmatprep.subr.bf16.mxu0 %v1215
      %1421 = vmatpush1.bf16.msra.mxu0 %v1214
      %1422 = vmatprep.subr.bf16.mxu0 %v1223
      %1423 = vmatpush1.bf16.msra.mxu0 %v1222
      %1424 = vmatprep.subr.bf16.mxu0 %v1291
      %1425 = vmatpush1.bf16.msra.mxu0 %v1288
      %1426 = vmatprep.subr.bf16.mxu0 0
      %1427 = vmatpush1.bf16.msra.mxu0 0
      %1428 = vmatprep.subr.bf16.mxu0 0
      %1429 = vmatpush1.bf16.msra.mxu0 0
      %1430 = vmatprep.subr.bf16.mxu0 0
      %1431 = vmatpush1.bf16.msra.mxu0 0
      %1432 = vmatprep.subr.bf16.mxu0 0
      %1433 = vmatpush1.bf16.msra.mxu0 0
      %1434 = vmatprep.subr.bf16.mxu0 0
      %1435 = vmatpush1.bf16.msra.mxu0 0
      %1436 = vmatprep.subr.bf16.mxu0 0
      %1437 = vmatpush1.bf16.msra.mxu0 0
      %1438 = vmatprep.subr.bf16.mxu0 0
      %1439 = vmatpush1.bf16.msra.mxu0 0
      %1440 = vmatprep.subr.bf16.mxu0 0
      %1441 = vmatpush1.bf16.msra.mxu0 0
      %1442 = vmatprep.subr.bf16.mxu0 0
      %1443 = vmatpush1.bf16.msra.mxu0 0
      %1444 = vmatprep.subr.bf16.mxu0 0
      %1445 = vmatpush1.bf16.msra.mxu0 0
      %1446 = vmatprep.subr.bf16.mxu0 0
      %1447 = vmatpush1.bf16.msra.mxu0 0
      %1448 = vmatprep.mubr.bf16.mxu0 0
      %1449 = vmatmul.mubr.bf16.gmra.mrb[0].mxu0 %v1266
      %v1450 = vpop.f32.mrb[0].mxu0
      %v1451 = vadd.f32 %v1082, %v1450
      %v1452 = vpop.f32.mrb[0].mxu0
      %v1453 = vadd.f32 %v1082, %v1452
      %v1454 = vpop.f32.mrb[0].mxu0
      %v1455 = vpop.f32.mrb[0].mxu0
      %1456 = vdwg.mxu0
      %v1457 = vsel %vm1268, %v1328, 0.0
      %v1458 = vsel %vm1268, %v1330, 0.0
      %v1459 = vadd.f32 %v1457, %v1458
      %v1460 = vsel %vm1268, %v1369, 0.0
      %v1461 = vadd.f32 %v1459, %v1460
      %v1462 = vsel %vm1268, %v1371, 0.0
      %v1463 = vadd.f32 %v1461, %v1462
      %v1464 = vsel %vm1268, %v1410, 0.0
      %v1465 = vadd.f32 %v1463, %v1464
      %v1466 = vsel %vm1268, %v1412, 0.0
      %v1467 = vadd.f32 %v1465, %v1466
      %v1468 = vsel %vm1268, %v1451, 0.0
      %v1469 = vadd.f32 %v1467, %v1468
      %v1470 = vsel %vm1268, %v1453, 0.0
      %v1471 = vadd.f32 %v1469, %v1470
      %1472 = vadd.xlane.f32.xlu0 %v1471
      %v1473 = vpop.xlane.xlu0 %1472
      %vm1474 = vcmask 3072
      %1475 = vst.msk [vmem:[%s289] sm:$0xf] %vm1474, %v1473
      %v1476 = vmul.f32 %v1328, %v1328
      %v1477 = vmul.f32 %v1330, %v1330
      %v1478 = vmul.f32 %v1369, %v1369
      %v1479 = vmul.f32 %v1371, %v1371
      %v1480 = vmul.f32 %v1410, %v1410
      %v1481 = vmul.f32 %v1412, %v1412
      %v1482 = vmul.f32 %v1451, %v1451
      %v1483 = vmul.f32 %v1453, %v1453
      %v1484 = vsel %vm1268, %v1476, 0.0
      %v1485 = vsel %vm1268, %v1477, 0.0
      %v1486 = vadd.f32 %v1484, %v1485
      %v1487 = vsel %vm1268, %v1478, 0.0
      %v1488 = vadd.f32 %v1486, %v1487
      %v1489 = vsel %vm1268, %v1479, 0.0
      %v1490 = vadd.f32 %v1488, %v1489
      %v1491 = vsel %vm1268, %v1480, 0.0
      %v1492 = vadd.f32 %v1490, %v1491
      %v1493 = vsel %vm1268, %v1481, 0.0
      %v1494 = vadd.f32 %v1492, %v1493
      %v1495 = vsel %vm1268, %v1482, 0.0
      %v1496 = vadd.f32 %v1494, %v1495
      %v1497 = vsel %vm1268, %v1483, 0.0
      %v1498 = vadd.f32 %v1496, %v1497
      %1499 = vadd.xlane.f32.xlu0 %v1498
      %v1500 = vpop.xlane.xlu0 %1499
      %vm1501 = vcmask 11272
      %1502 = vst.msk [vmem:[%s289] sm:$0xf] %vm1501, %v1500
      %v1503 = vpack.c.bf16 %v1328, %v1328
      %v1504 = vpack.c.bf16 %v1330, %v1330
      %v1505 = vpack.c.bf16 %v1369, %v1369
      %v1506 = vpack.c.bf16 %v1371, %v1371
      %v1507 = vpack.c.bf16 %v1410, %v1410
      %v1508 = vpack.c.bf16 %v1412, %v1412
      %v1509 = vpack.c.bf16 %v1451, %v1451
      %v1510 = vpack.c.bf16 %v1453, %v1453
      %v1519 = vcombine.low %v1503, %v1504
      %v1520 = vcombine.low %v1505, %v1506
      %v1522 = vunpack.c.l.s4 1983009808
      %v1523 = vunpack.c.0.s8 %v1522
      %v1524 = vlaneseq
      %v1525 = vshrl.u32 %v1524, 7
      %v1526 = vsub.s32 %v1523, %v1525
      %v1527 = vrot.slane %v1519, %v1526
      %v1529 = vunpack.c.l.s4 1983009808
      %v1530 = vunpack.c.0.s8 %v1529
      %v1531 = vlaneseq
      %v1532 = vshrl.u32 %v1531, 7
      %v1533 = vsub.s32 %v1530, %v1532
      %v1534 = vrot.slane %v1520, %v1533
      %v1535 = vcombine.low %v1527, %v1534
      %v1536 = vcombine.low %v1507, %v1508
      %v1537 = vcombine.low %v1509, %v1510
      %v1539 = vunpack.c.l.s4 1983009808
      %v1540 = vunpack.c.0.s8 %v1539
      %v1541 = vlaneseq
      %v1542 = vshrl.u32 %v1541, 7
      %v1543 = vsub.s32 %v1540, %v1542
      %v1544 = vrot.slane %v1536, %v1543
      %v1546 = vunpack.c.l.s4 1983009808
      %v1547 = vunpack.c.0.s8 %v1546
      %v1548 = vlaneseq
      %v1549 = vshrl.u32 %v1548, 7
      %v1550 = vsub.s32 %v1547, %v1549
      %v1551 = vrot.slane %v1537, %v1550
      %v1552 = vcombine.low %v1544, %v1551
      %1555 = vst [vmem:[%s285] sm:$0xff] %v1535
      %1556 = vst [vmem:[%s285 + $0x8] sm:$0xff] %v1552
      %p1557 = scmp.lt.s32.totalorder %s19, 1
      %s1558 = scalar_select %p1557, %s19, 1
      %s1559 = smul.addr %s1558, 8
      %s1560 = smul.addr %s1559, 2
      %s1561 = scalar_lea.vmem %s6, %s1560
      %p1562 = scmp.lt.s32.totalorder %s19, 1
      %s1563 = scalar_select %p1562, %s19, 1
      %s1564 = smul.addr %s1563, 4
      %s1565 = scalar_lea.vmem %s7, %s1564
      // Predicated region
      $region45: #{decoder_block_forward.6} parent=43 // pred_check
        %p1566 = pneg %p168
      $region46: #{decoder_block_forward.6} parent=43 // pred_check_branch
        %1568 = sbr.rel (%p1566) target = $region48
      $region47: #{decoder_block_forward.6} parent=43 // pred_region
        _
      $region48: #{decoder_block_forward.6} parent=43 // pred_fallthru
        _
      // Predicated region
      $region49: #{decoder_block_forward.6} parent=43 // pred_check
        %p1569 = pneg %p194
      $region50: #{decoder_block_forward.6} parent=43 // pred_check_branch
        %1571 = sbr.rel (%p1569) target = $region52
      $region51: #{decoder_block_forward.6} parent=43 // pred_region
        _
      $region52: #{decoder_block_forward.6} parent=43 // pred_fallthru
        _
    $region44: #{decoder_block_forward.6} parent=5 // pred_fallthru
      _
    %p1572 = scmp.le.s32.totalorder 2, %s14
    // Predicated region
    $region53: #{decoder_block_forward.6} parent=5 // pred_check
      %p1573 = pneg %p1572
    $region54: #{decoder_block_forward.6} parent=5 // pred_check_branch
      %1575 = sbr.rel (%p1573) target = $region56
    $region55: #{decoder_block_forward.6} parent=5 // pred_region
      %s1576 = ssub.s32 %s14, 2
      // Predicated region
      $region57: #{decoder_block_forward.6} parent=55 // pred_check
        %p1577 = pneg %p174
      $region58: #{decoder_block_forward.6} parent=55 // pred_check_branch
        %1579 = sbr.rel (%p1577) target = $region60
      $region59: #{decoder_block_forward.6} parent=55 // pred_region
        %p1580 = scmp.lt.s32.totalorder %s20, 1
        %s1581 = scalar_select %p1580, %s20, 1
        %s1582 = smul.addr %s1581, 8
        %s1583 = smul.addr %s1582, 2
        %s1584 = scalar_lea.vmem %s6, %s1583
      $region60: #{decoder_block_forward.6} parent=55 // pred_fallthru
        _
      // Predicated region
      $region61: #{decoder_block_forward.6} parent=55 // pred_check
        %p1585 = pneg %p200
      $region62: #{decoder_block_forward.6} parent=55 // pred_check_branch
        %1587 = sbr.rel (%p1585) target = $region64
      $region63: #{decoder_block_forward.6} parent=55 // pred_region
        %p1588 = scmp.lt.s32.totalorder %s20, 1
        %s1589 = scalar_select %p1588, %s20, 1
        %s1590 = smul.addr %s1589, 4
        %s1591 = scalar_lea.vmem %s7, %s1590
      $region64: #{decoder_block_forward.6} parent=55 // pred_fallthru
        _
    $region56: #{decoder_block_forward.6} parent=5 // pred_fallthru
      _
  $region6: #{decoder_block_forward.6} parent=0 // loop_footer
    %s18 = sadd.s32 1, %s14
  $region7: #{decoder_block_forward.6} parent=0 // loop_footer_branch
    %13 = sbr.rel target = $region3
  $region8: #{decoder_block_forward.6} parent=0 // loop_exit
    _

// kernel: decoder_block_forward.7
$region0: #{decoder_block_forward.7}
  #allocation0 [shape = 'u32[]', space=smem, size = 0x4, offset = 0x4, fixed_abs, tag = 'smem constant byte address 0x4 - core index']
  #allocation1 [shape = 'u32[144,128]{1,0:T(1,128)}', space=vmem, size = 0x12000, scoped, tag = 'internal scratch']
  #allocation2 [shape = 'bf16[4,1090]{1,0:T(4,128)(2,1)}', space=vmem, size = 0x2400, scoped, tag = 'scratch operand']
  #allocation3 [shape = 'bf16[36,1024]{1,0:T(8,128)(2,1)}', space=vmem, size = 0x14000, scoped, tag = 'scratch operand']
  %s0 = inlined_call_operand.vmem [shape: bf16[2,4,1024], index: 0, kind: input, shape index: {}]
  %s1 = inlined_call_operand.vmem [shape: bf16[2,1024], index: 1, kind: input, shape index: {}]
  %s2 = inlined_call_operand.vmem [shape: f32[4,1], index: 2, kind: input, shape index: {}]
  %s3 = inlined_call_operand.vmem [shape: f32[4,1], index: 3, kind: input, shape index: {}]
  %s4 = inlined_call_operand.vmem [shape: bf16[4,36], index: 4, kind: input, shape index: {}]
  %s5 = inlined_call_operand.vmem [shape: f32[4,1], index: 5, kind: input, shape index: {}]
  %s6 = inlined_call_operand.vmem [shape: bf16[2,4,1024], index: 6, kind: output, shape index: {0}]
  %s7 = inlined_call_operand.vmem [shape: f32[2,4,2], index: 7, kind: output, shape index: {1}]
  %8 = xla_tuple %s6, %s7
  %s9 = sld [smem:[#allocation0]]
  $region65: #{decoder_block_forward.7} parent=0
    _
  %s11 = ssub.s32 1, %s9
  %s12 = scalar_select 0, %s11, %s9
  loop: start=0, step=1, limit=4
  $region2: #{decoder_block_forward.7} parent=0 // loop_pre_header
    _
  $region3: #{decoder_block_forward.7} parent=0 // loop_header
    %s14 = sphi 0, %s18
    %p15 = scmp.ge.s32.totalorder %s14, 4
    %s24 = sphi 0, %s26
    %s27 = sphi 0, %s24
    %s28 = sphi 0, %s27
    %s44 = sphi 0, %s28
    %s48 = sphi 0, %s48
    %s50 = sphi 0, %s48
    %s51 = sphi 0, %s50
    %s65 = sphi 0, %s51
    %s69 = sphi 0, %s69
    %s71 = sphi 0, %s69
    %s72 = sphi 0, %s71
    %s86 = sphi 0, %s72
    %s90 = sphi 0, %s90
    %s92 = sphi 0, %s90
    %s93 = sphi 0, %s92
    %s107 = sphi 0, %s93
    %s111 = sphi 0, %s111
    %s113 = sphi 0, %s111
    %s114 = sphi 0, %s113
    %s128 = sphi 0, %s114
    %s132 = sphi 0, %s132
    %s134 = sphi 0, %s132
    %s135 = sphi 0, %s134
    %s149 = sphi 0, %s135
    %s155 = sphi 0, %s157
    %s158 = sphi 0, %s155
    %s159 = sphi 0, %s158
    %s175 = sphi 0, %s159
    %s181 = sphi 0, %s183
    %s184 = sphi 0, %s181
    %s185 = sphi 0, %s184
    %s201 = sphi 0, %s185
  $region4: #{decoder_block_forward.7} parent=0 // loop_header_branch
    %17 = sbr.rel (%p15) target = $region8
  $region5: #{decoder_block_forward.7} parent=0 // loop_body
    %s19 = ssub.s32 %s14, 1
    %s20 = ssub.s32 %s14, 2
    %s21 = sadd.s32 %s14, 1
    %s22 = ssub.s32 %s14, %s21
    %p23 = scmp.eq.s32.totalorder %s22, 0
    %s25 = sadd.s32 %s24, 1
    %s26 = scalar_select %p23, %s24, %s25
    %p29 = pneg %p23
    %p30 = scmp.eq.s32.totalorder %s14, 1
    %p31 = por %p29, %p30
    %p32 = scmp.ne.s32.totalorder %s24, %s27
    %p33 = scmp.eq.s32.totalorder %s14, 0
    %p34 = por %p32, %p33
    %p35 = scmp.ne.s32.totalorder %s24, %s27
    %p36 = scmp.eq.s32.totalorder %s19, 1
    %p37 = por %p35, %p36
    %p38 = scmp.ne.s32.totalorder %s27, %s28
    %p39 = scmp.eq.s32.totalorder %s19, 0
    %p40 = por %p38, %p39
    %p41 = scmp.ne.s32.totalorder %s27, %s28
    %p42 = scmp.eq.s32.totalorder %s20, 1
    %p43 = por %p41, %p42
    %p45 = scmp.ne.s32.totalorder %s28, %s44
    %p46 = scmp.eq.s32.totalorder %s20, 0
    %p47 = por %p45, %p46
    %s49 = sadd.s32 %s48, 1
    %p52 = scmp.eq.s32.totalorder %s14, 1
    %p53 = scmp.ne.s32.totalorder %s48, %s50
    %p54 = scmp.eq.s32.totalorder %s14, 0
    %p55 = por %p53, %p54
    %p56 = scmp.ne.s32.totalorder %s48, %s50
    %p57 = scmp.eq.s32.totalorder %s19, 1
    %p58 = por %p56, %p57
    %p59 = scmp.ne.s32.totalorder %s50, %s51
    %p60 = scmp.eq.s32.totalorder %s19, 0
    %p61 = por %p59, %p60
    %p62 = scmp.ne.s32.totalorder %s50, %s51
    %p63 = scmp.eq.s32.totalorder %s20, 1
    %p64 = por %p62, %p63
    %p66 = scmp.ne.s32.totalorder %s51, %s65
    %p67 = scmp.eq.s32.totalorder %s20, 0
    %p68 = por %p66, %p67
    %s70 = sadd.s32 %s69, 1
    %p73 = scmp.eq.s32.totalorder %s14, 1
    %p74 = scmp.ne.s32.totalorder %s69, %s71
    %p75 = scmp.eq.s32.totalorder %s14, 0
    %p76 = por %p74, %p75
    %p77 = scmp.ne.s32.totalorder %s69, %s71
    %p78 = scmp.eq.s32.totalorder %s19, 1
    %p79 = por %p77, %p78
    %p80 = scmp.ne.s32.totalorder %s71, %s72
    %p81 = scmp.eq.s32.totalorder %s19, 0
    %p82 = por %p80, %p81
    %p83 = scmp.ne.s32.totalorder %s71, %s72
    %p84 = scmp.eq.s32.totalorder %s20, 1
    %p85 = por %p83, %p84
    %p87 = scmp.ne.s32.totalorder %s72, %s86
    %p88 = scmp.eq.s32.totalorder %s20, 0
    %p89 = por %p87, %p88
    %s91 = sadd.s32 %s90, 1
    %p94 = scmp.eq.s32.totalorder %s14, 1
    %p95 = scmp.ne.s32.totalorder %s90, %s92
    %p96 = scmp.eq.s32.totalorder %s14, 0
    %p97 = por %p95, %p96
    %p98 = scmp.ne.s32.totalorder %s90, %s92
    %p99 = scmp.eq.s32.totalorder %s19, 1
    %p100 = por %p98, %p99
    %p101 = scmp.ne.s32.totalorder %s92, %s93
    %p102 = scmp.eq.s32.totalorder %s19, 0
    %p103 = por %p101, %p102
    %p104 = scmp.ne.s32.totalorder %s92, %s93
    %p105 = scmp.eq.s32.totalorder %s20, 1
    %p106 = por %p104, %p105
    %p108 = scmp.ne.s32.totalorder %s93, %s107
    %p109 = scmp.eq.s32.totalorder %s20, 0
    %p110 = por %p108, %p109
    %s112 = sadd.s32 %s111, 1
    %p115 = scmp.eq.s32.totalorder %s14, 1
    %p116 = scmp.ne.s32.totalorder %s111, %s113
    %p117 = scmp.eq.s32.totalorder %s14, 0
    %p118 = por %p116, %p117
    %p119 = scmp.ne.s32.totalorder %s111, %s113
    %p120 = scmp.eq.s32.totalorder %s19, 1
    %p121 = por %p119, %p120
    %p122 = scmp.ne.s32.totalorder %s113, %s114
    %p123 = scmp.eq.s32.totalorder %s19, 0
    %p124 = por %p122, %p123
    %p125 = scmp.ne.s32.totalorder %s113, %s114
    %p126 = scmp.eq.s32.totalorder %s20, 1
    %p127 = por %p125, %p126
    %p129 = scmp.ne.s32.totalorder %s114, %s128
    %p130 = scmp.eq.s32.totalorder %s20, 0
    %p131 = por %p129, %p130
    %s133 = sadd.s32 %s132, 1
    %p136 = scmp.eq.s32.totalorder %s14, 1
    %p137 = scmp.ne.s32.totalorder %s132, %s134
    %p138 = scmp.eq.s32.totalorder %s14, 0
    %p139 = por %p137, %p138
    %p140 = scmp.ne.s32.totalorder %s132, %s134
    %p141 = scmp.eq.s32.totalorder %s19, 1
    %p142 = por %p140, %p141
    %p143 = scmp.ne.s32.totalorder %s134, %s135
    %p144 = scmp.eq.s32.totalorder %s19, 0
    %p145 = por %p143, %p144
    %p146 = scmp.ne.s32.totalorder %s134, %s135
    %p147 = scmp.eq.s32.totalorder %s20, 1
    %p148 = por %p146, %p147
    %p150 = scmp.ne.s32.totalorder %s135, %s149
    %p151 = scmp.eq.s32.totalorder %s20, 0
    %p152 = por %p150, %p151
    %s153 = ssub.s32 %s14, %s21
    %p154 = scmp.eq.s32.totalorder %s153, 0
    %s156 = sadd.s32 %s155, 1
    %s157 = scalar_select %p154, %s155, %s156
    %p160 = pneg %p154
    %p161 = scmp.eq.s32.totalorder %s14, 1
    %p162 = por %p160, %p161
    %p163 = scmp.ne.s32.totalorder %s155, %s158
    %p164 = scmp.eq.s32.totalorder %s14, 0
    %p165 = por %p163, %p164
    %p166 = scmp.ne.s32.totalorder %s155, %s158
    %p167 = scmp.eq.s32.totalorder %s19, 1
    %p168 = por %p166, %p167
    %p169 = scmp.ne.s32.totalorder %s158, %s159
    %p170 = scmp.eq.s32.totalorder %s19, 0
    %p171 = por %p169, %p170
    %p172 = scmp.ne.s32.totalorder %s158, %s159
    %p173 = scmp.eq.s32.totalorder %s20, 1
    %p174 = por %p172, %p173
    %p176 = scmp.ne.s32.totalorder %s159, %s175
    %p177 = scmp.eq.s32.totalorder %s20, 0
    %p178 = por %p176, %p177
    %s179 = ssub.s32 %s14, %s21
    %p180 = scmp.eq.s32.totalorder %s179, 0
    %s182 = sadd.s32 %s181, 1
    %s183 = scalar_select %p180, %s181, %s182
    %p186 = pneg %p180
    %p187 = scmp.eq.s32.totalorder %s14, 1
    %p188 = por %p186, %p187
    %p189 = scmp.ne.s32.totalorder %s181, %s184
    %p190 = scmp.eq.s32.totalorder %s14, 0
    %p191 = por %p189, %p190
    %p192 = scmp.ne.s32.totalorder %s181, %s184
    %p193 = scmp.eq.s32.totalorder %s19, 1
    %p194 = por %p192, %p193
    %p195 = scmp.ne.s32.totalorder %s184, %s185
    %p196 = scmp.eq.s32.totalorder %s19, 0
    %p197 = por %p195, %p196
    %p198 = scmp.ne.s32.totalorder %s184, %s185
    %p199 = scmp.eq.s32.totalorder %s20, 1
    %p200 = por %p198, %p199
    %p202 = scmp.ne.s32.totalorder %s185, %s201
    %p203 = scmp.eq.s32.totalorder %s20, 0
    %p204 = por %p202, %p203
    %p205 = scmp.le.s32.totalorder 1, %s14
    %p206 = scmp.lt.s32.totalorder %s14, 3
    %p207 = pnand %p205, %p206
    %p208 = pneg %p207
    // Predicated region
    $region9: #{decoder_block_forward.7} parent=5 // pred_check
      _
    $region10: #{decoder_block_forward.7} parent=5 // pred_check_branch
      %210 = sbr.rel (%p207) target = $region12
    $region11: #{decoder_block_forward.7} parent=5 // pred_region
      %s211 = ssub.s32 %s14, 1
      // Predicated region
      $region13: #{decoder_block_forward.7} parent=11 // pred_check
        %p212 = pneg %p61
      $region14: #{decoder_block_forward.7} parent=11 // pred_check_branch
        %214 = sbr.rel (%p212) target = $region16
      $region15: #{decoder_block_forward.7} parent=11 // pred_region
        _
      $region16: #{decoder_block_forward.7} parent=11 // pred_fallthru
        _
      // Predicated region
      $region17: #{decoder_block_forward.7} parent=11 // pred_check
        %p215 = pneg %p82
      $region18: #{decoder_block_forward.7} parent=11 // pred_check_branch
        %217 = sbr.rel (%p215) target = $region20
      $region19: #{decoder_block_forward.7} parent=11 // pred_region
        _
      $region20: #{decoder_block_forward.7} parent=11 // pred_fallthru
        _
      // Predicated region
      $region21: #{decoder_block_forward.7} parent=11 // pred_check
        %p218 = pneg %p103
      $region22: #{decoder_block_forward.7} parent=11 // pred_check_branch
        %220 = sbr.rel (%p218) target = $region24
      $region23: #{decoder_block_forward.7} parent=11 // pred_region
        _
      $region24: #{decoder_block_forward.7} parent=11 // pred_fallthru
        _
      // Predicated region
      $region25: #{decoder_block_forward.7} parent=11 // pred_check
        %p221 = pneg %p124
      $region26: #{decoder_block_forward.7} parent=11 // pred_check_branch
        %223 = sbr.rel (%p221) target = $region28
      $region27: #{decoder_block_forward.7} parent=11 // pred_region
        _
      $region28: #{decoder_block_forward.7} parent=11 // pred_fallthru
        _
      // Predicated region
      $region29: #{decoder_block_forward.7} parent=11 // pred_check
        %p224 = pneg %p145
      $region30: #{decoder_block_forward.7} parent=11 // pred_check_branch
        %226 = sbr.rel (%p224) target = $region32
      $region31: #{decoder_block_forward.7} parent=11 // pred_region
        _
      $region32: #{decoder_block_forward.7} parent=11 // pred_fallthru
        _
    $region12: #{decoder_block_forward.7} parent=5 // pred_fallthru
      _
    %p227 = scmp.lt.s32.totalorder %s14, 2
    // Predicated region
    $region33: #{decoder_block_forward.7} parent=5 // pred_check
      %p228 = pneg %p227
    $region34: #{decoder_block_forward.7} parent=5 // pred_check_branch
      %230 = sbr.rel (%p228) target = $region36
    $region35: #{decoder_block_forward.7} parent=5 // pred_region
      // Predicated region
      $region37: #{decoder_block_forward.7} parent=35 // pred_check
        %p231 = pneg %p34
      $region38: #{decoder_block_forward.7} parent=35 // pred_check_branch
        %233 = sbr.rel (%p231) target = $region40
      $region39: #{decoder_block_forward.7} parent=35 // pred_region
        %p234 = scmp.lt.s32.totalorder %s14, 1
        %s235 = scalar_select %p234, %s14, 1
        %s236 = smul.addr %s235, 8
        %s237 = smul.addr %s236, 2
        %s238 = scalar_lea.vmem %s0, %s237
      $region40: #{decoder_block_forward.7} parent=35 // pred_fallthru
        _
    $region36: #{decoder_block_forward.7} parent=5 // pred_fallthru
      _
    %p239 = scmp.le.s32.totalorder 1, %s14
    %p240 = scmp.lt.s32.totalorder %s14, 3
    %p241 = pnand %p239, %p240
    %p242 = pneg %p241
    // Predicated region
    $region41: #{decoder_block_forward.7} parent=5 // pred_check
      _
    $region42: #{decoder_block_forward.7} parent=5 // pred_check_branch
      %244 = sbr.rel (%p241) target = $region44
    $region43: #{decoder_block_forward.7} parent=5 // pred_region
      %s245 = ssub.s32 %s14, 1
      %p246 = scmp.lt.s32.totalorder %s19, 1
      %s247 = scalar_select %p246, %s19, 1
      %s248 = smul.addr %s247, 8
      %s249 = smul.addr %s248, 2
      %s250 = scalar_lea.vmem %s0, %s249
      %p251 = pneg %p40
      %p252 = pneg %p37
      %p253 = pneg %p61
      %p254 = pneg %p58
      %p255 = pneg %p82
      %p256 = pneg %p79
      %p257 = pneg %p103
      %p258 = pneg %p100
      %p259 = pneg %p124
      %p260 = pneg %p121
      %p261 = pneg %p145
      %p262 = pneg %p142
      %p263 = pneg %p171
      %p264 = pneg %p168
      %p265 = scmp.lt.s32.totalorder %s19, 1
      %s266 = scalar_select %p265, %s19, 1
      %s267 = smul.addr %s266, 8
      %s268 = smul.addr %s267, 2
      %s269 = scalar_lea.vmem %s6, %s268
      %p270 = pneg %p197
      %p271 = pneg %p194
      %p272 = scmp.lt.s32.totalorder %s19, 1
      %s273 = scalar_select %p272, %s19, 1
      %s274 = smul.addr %s273, 4
      %s275 = scalar_lea.vmem %s7, %s274
      %p276 = scmp.lt.s32.totalorder %s19, 1
      %s277 = scalar_select %p276, %s19, 1
      %s278 = smul.addr %s277, 8
      %s279 = smul.addr %s278, 2
      %s280 = scalar_lea.vmem %s0, %s279
      %p281 = scmp.lt.s32.totalorder %s19, 1
      %s282 = scalar_select %p281, %s19, 1
      %s283 = smul.addr %s282, 8
      %s284 = smul.addr %s283, 2
      %s285 = scalar_lea.vmem %s6, %s284
      %p286 = scmp.lt.s32.totalorder %s19, 1
      %s287 = scalar_select %p286, %s19, 1
      %s288 = smul.addr %s287, 4
      %s289 = scalar_lea.vmem %s7, %s288
      %v291 = vld [vmem:[%s280] sm:$0xff]
      %v292 = vld [vmem:[%s280 + $0x8] sm:$0xff]
      %v293 = vunpack.c.l.bf16 %v291
      %v294 = vunpack.c.h.bf16 %v291
      %v295 = vunpack.c.l.bf16 %v292
      %v296 = vunpack.c.h.bf16 %v292
      %v297 = vld [vmem:[%s2] sm:$0xf]
      %299 = vset.pattern.permute.xlu0 0
      %300 = vperm.xlu0 %299, %v297
      %v301 = vpop.permute.xlu0 %300
      %v303 = vunpack.c.l.s4 839922192
      %v304 = vunpack.c.0.s8 %v303
      %v305 = vlaneseq
      %v306 = vshrl.u32 %v305, 7
      %v307 = vsub.s32 %v304, %v306
      %v308 = vrot.slane %v301, %v307
      %v310 = vmul.f32 %v293, %v308
      %v311 = vmul.f32 %v294, %v308
      %v312 = vmul.f32 %v295, %v308
      %v313 = vmul.f32 %v296, %v308
      %v314 = vld [vmem:[%s3] sm:$0xf]
      %316 = vset.pattern.permute.xlu0 0
      %317 = vperm.xlu0 %316, %v314
      %v318 = vpop.permute.xlu0 %317
      %v320 = vunpack.c.l.s4 839922192
      %v321 = vunpack.c.0.s8 %v320
      %v322 = vlaneseq
      %v323 = vshrl.u32 %v322, 7
      %v324 = vsub.s32 %v321, %v323
      %v325 = vrot.slane %v318, %v324
      %v327 = vadd.f32 %v310, %v325
      %v328 = vadd.f32 %v311, %v325
      %v329 = vadd.f32 %v312, %v325
      %v330 = vadd.f32 %v313, %v325
      %v331 = vmax.f32 %v327, 0.0
      %v332 = vmax.f32 %v328, 0.0
      %v333 = vmax.f32 %v329, 0.0
      %v334 = vmax.f32 %v330, 0.0
      %v339 = vcombine.high %v331, %v331
      %v340 = vcombine.high %v332, %v332
      %v341 = vcombine.high %v333, %v333
      %v342 = vcombine.high %v334, %v334
      %v347 = vpack.c.bf16 %v331, %v331
      %v348 = vpack.c.bf16 %v339, %v339
      %v349 = vpack.c.bf16 %v332, %v332
      %v350 = vpack.c.bf16 %v340, %v340
      %v351 = vpack.c.bf16 %v333, %v333
      %v352 = vpack.c.bf16 %v341, %v341
      %v353 = vpack.c.bf16 %v334, %v334
      %v354 = vpack.c.bf16 %v342, %v342
      %vm355 = vcmask 263168
      %356 = vst.msk [vmem:[#allocation2] sm:$0x3] %vm355, 0
      %vm357 = vcmask 533768
      %358 = vst.msk [vmem:[#allocation2 + $0x10] sm:$0x3] %vm357, 0
      %v367 = vcombine.low %v347, %v348
      %v368 = vcombine.low %v349, %v350
      %v370 = vunpack.c.l.s4 1983009808
      %v371 = vunpack.c.0.s8 %v370
      %v372 = vlaneseq
      %v373 = vshrl.u32 %v372, 7
      %v374 = vsub.s32 %v371, %v373
      %v375 = vrot.slane %v367, %v374
      %v377 = vunpack.c.l.s4 1983009808
      %v378 = vunpack.c.0.s8 %v377
      %v379 = vlaneseq
      %v380 = vshrl.u32 %v379, 7
      %v381 = vsub.s32 %v378, %v380
      %v382 = vrot.slane %v368, %v381
      %v383 = vcombine.low %v375, %v382
      %v384 = vcombine.low %v351, %v352
      %v385 = vcombine.low %v353, %v354
      %v387 = vunpack.c.l.s4 1983009808
      %v388 = vunpack.c.0.s8 %v387
      %v389 = vlaneseq
      %v390 = vshrl.u32 %v389, 7
      %v391 = vsub.s32 %v388, %v390
      %v392 = vrot.slane %v384, %v391
      %v394 = vunpack.c.l.s4 1983009808
      %v395 = vunpack.c.0.s8 %v394
      %v396 = vlaneseq
      %v397 = vshrl.u32 %v396, 7
      %v398 = vsub.s32 %v395, %v397
      %v399 = vrot.slane %v385, %v398
      %v400 = vcombine.low %v392, %v399
      %401 = vrot.lane.b32.xlu0 %v383, 33
      %v402 = vpop.permute.xlu0 %401
      %403 = vrot.lane.b32.xlu0 %v400, 33
      %v404 = vpop.permute.xlu0 %403
      %v405 = vrot.slane %v402, 6
      %v406 = vrot.slane %v404, 6
      %vm407 = vcmask 269312
      %v408 = vsel %vm407, %v405, %v402
      %vm409 = vcmask 1041408
      %v410 = vsel %vm409, %v405, %v406
      %v411 = vsel %vm407, %v410, %v404
      %vm415 = vcmask 1041672
      %vm416 = vcmask 1043458
      %vm417 = vmor %vm416, %vm415
      %vm418 = vcmask 1045508
      %vm419 = vmor %vm418, %vm417
      %vm420 = vcmask 1047558
      %vm421 = vmor %vm420, %vm419
      %422 = vst.msk [vmem:[#allocation2] sm:$0xff] %vm421, %v408
      %423 = vst [vmem:[#allocation2 + $0x8] sm:$0xff] %v411
      %424 = vst.msk [vmem:[#allocation2 + $0x10] sm:$0x3] %vm355, %v406
      %v425 = vld [vmem:[%s1] sm:$0xff]
      %v426 = vld [vmem:[#allocation2] sm:$0xff]
      %v427 = vld [vmem:[#allocation2 + $0x8] sm:$0xff]
      %v429 = vcombine.high %v425, %v425
      %v431 = vunpack.c.l.s4 1966171168
      %v432 = vunpack.c.0.s8 %v431
      %v433 = vlaneseq
      %v434 = vshrl.u32 %v433, 7
      %v435 = vsub.s32 %v432, %v434
      %v436 = vrot.slane %v425, %v435
      %v438 = vunpack.c.l.s4 1966171168
      %v439 = vunpack.c.0.s8 %v438
      %v440 = vlaneseq
      %v441 = vshrl.u32 %v440, 7
      %v442 = vsub.s32 %v439, %v441
      %v443 = vrot.slane %v429, %v442
      %v444 = vcombine.high %v436, %v436
      %v445 = vcombine.high %v443, %v443
      %v447 = vunpack.c.l.s4 1966171168
      %v448 = vunpack.c.0.s8 %v447
      %v449 = vlaneseq
      %v450 = vshrl.u32 %v449, 7
      %v451 = vsub.s32 %v448, %v450
      %v452 = vrot.slane %v436, %v451
      %v454 = vunpack.c.l.s4 1966171168
      %v455 = vunpack.c.0.s8 %v454
      %v456 = vlaneseq
      %v457 = vshrl.u32 %v456, 7
      %v458 = vsub.s32 %v455, %v457
      %v459 = vrot.slane %v443, %v458
      %v461 = vunpack.c.l.s4 1966171168
      %v462 = vunpack.c.0.s8 %v461
      %v463 = vlaneseq
      %v464 = vshrl.u32 %v463, 7
      %v465 = vsub.s32 %v462, %v464
      %v466 = vrot.slane %v444, %v465
      %v468 = vunpack.c.l.s4 1966171168
      %v469 = vunpack.c.0.s8 %v468
      %v470 = vlaneseq
      %v471 = vshrl.u32 %v470, 7
      %v472 = vsub.s32 %v469, %v471
      %v473 = vrot.slane %v445, %v472
      %v474 = vcombine.high %v452, %v452
      %v475 = vcombine.high %v459, %v459
      %v476 = vcombine.high %v466, %v466
      %v477 = vcombine.high %v473, %v473
      %v479 = vpack.i.b16 %v452, %v452
      %v481 = vlaneseq
      %v482 = vshrl.u32 %v481, 7
      %v483 = vsub.s32 0, %v482
      %v484 = vrot.slane %v479, %v483
      %v486 = vpack.i.b16 %v466, %v466
      %v488 = vlaneseq
      %v489 = vshrl.u32 %v488, 7
      %v490 = vsub.s32 0, %v489
      %v491 = vrot.slane %v486, %v490
      %v493 = vpack.i.b16 %v474, %v474
      %v495 = vlaneseq
      %v496 = vshrl.u32 %v495, 7
      %v497 = vsub.s32 0, %v496
      %v498 = vrot.slane %v493, %v497
      %v500 = vpack.i.b16 %v476, %v476
      %v502 = vlaneseq
      %v503 = vshrl.u32 %v502, 7
      %v504 = vsub.s32 0, %v503
      %v505 = vrot.slane %v500, %v504
      %v507 = vpack.i.b16 %v459, %v459
      %v509 = vlaneseq
      %v510 = vshrl.u32 %v509, 7
      %v511 = vsub.s32 0, %v510
      %v512 = vrot.slane %v507, %v511
      %v514 = vpack.i.b16 %v473, %v473
      %v516 = vlaneseq
      %v517 = vshrl.u32 %v516, 7
      %v518 = vsub.s32 0, %v517
      %v519 = vrot.slane %v514, %v518
      %v521 = vpack.i.b16 %v475, %v475
      %v523 = vlaneseq
      %v524 = vshrl.u32 %v523, 7
      %v525 = vsub.s32 0, %v524
      %v526 = vrot.slane %v521, %v525
      %v528 = vpack.i.b16 %v477, %v477
      %v530 = vlaneseq
      %v531 = vshrl.u32 %v530, 7
      %v532 = vsub.s32 0, %v531
      %v533 = vrot.slane %v528, %v532
      %v542 = vcombine.low %v484, %v491
      %v543 = vcombine.low %v498, %v505
      %v545 = vunpack.c.l.s4 1983009808
      %v546 = vunpack.c.0.s8 %v545
      %v547 = vlaneseq
      %v548 = vshrl.u32 %v547, 7
      %v549 = vsub.s32 %v546, %v548
      %v550 = vrot.slane %v542, %v549
      %v552 = vunpack.c.l.s4 1983009808
      %v553 = vunpack.c.0.s8 %v552
      %v554 = vlaneseq
      %v555 = vshrl.u32 %v554, 7
      %v556 = vsub.s32 %v553, %v555
      %v557 = vrot.slane %v543, %v556
      %v558 = vcombine.low %v550, %v557
      %v559 = vcombine.low %v512, %v519
      %v560 = vcombine.low %v526, %v533
      %v562 = vunpack.c.l.s4 1983009808
      %v563 = vunpack.c.0.s8 %v562
      %v564 = vlaneseq
      %v565 = vshrl.u32 %v564, 7
      %v566 = vsub.s32 %v563, %v565
      %v567 = vrot.slane %v559, %v566
      %v569 = vunpack.c.l.s4 1983009808
      %v570 = vunpack.c.0.s8 %v569
      %v571 = vlaneseq
      %v572 = vshrl.u32 %v571, 7
      %v573 = vsub.s32 %v570, %v572
      %v574 = vrot.slane %v560, %v573
      %v575 = vcombine.low %v567, %v574
      %v578 = vmul.bf16 %v426, %v558
      %v579 = vmul.bf16 %v427, %v575
      %v582 = vcombine.high %v578, %v578
      %v584 = vunpack.c.l.s4 1983009808
      %v585 = vunpack.c.0.s8 %v584
      %v586 = vlaneseq
      %v587 = vshrl.u32 %v586, 7
      %v588 = vsub.s32 %v585, %v587
      %v589 = vrot.slane %v578, %v588
      %v591 = vunpack.c.l.s4 1983009808
      %v592 = vunpack.c.0.s8 %v591
      %v593 = vlaneseq
      %v594 = vshrl.u32 %v593, 7
      %v595 = vsub.s32 %v592, %v594
      %v596 = vrot.slane %v582, %v595
      %v597 = vcombine.high %v579, %v579
      %v599 = vunpack.c.l.s4 1983009808
      %v600 = vunpack.c.0.s8 %v599
      %v601 = vlaneseq
      %v602 = vshrl.u32 %v601, 7
      %v603 = vsub.s32 %v600, %v602
      %v604 = vrot.slane %v579, %v603
      %v606 = vunpack.c.l.s4 1983009808
      %v607 = vunpack.c.0.s8 %v606
      %v608 = vlaneseq
      %v609 = vshrl.u32 %v608, 7
      %v610 = vsub.s32 %v607, %v609
      %v611 = vrot.slane %v597, %v610
      %616 = vst [vmem:[#allocation3] sm:$0x33] %v589
      %617 = vst [vmem:[#allocation3 + $0x8] sm:$0x33] %v596
      %618 = vst [vmem:[#allocation3 + $0x10] sm:$0x33] %v604
      %619 = vst [vmem:[#allocation3 + $0x18] sm:$0x33] %v611
      %v620 = vld [vmem:[#allocation2] sm:$0xff]
      %v621 = vld [vmem:[#allocation2 + $0x8] sm:$0xff]
      %v622 = vld [vmem:[#allocation2 + $0x10] sm:$0x3]
      %v626 = vcombine.low %v620, %v620
      %v628 = vunpack.c.l.s4 1983009808
      %v629 = vunpack.c.0.s8 %v628
      %v630 = vlaneseq
      %v631 = vshrl.u32 %v630, 7
      %v632 = vsub.s32 %v629, %v631
      %v633 = vrot.slane %v626, %v632
      %v635 = vunpack.c.l.s4 1983009808
      %v636 = vunpack.c.0.s8 %v635
      %v637 = vlaneseq
      %v638 = vshrl.u32 %v637, 7
      %v639 = vsub.s32 %v636, %v638
      %v640 = vrot.slane %v620, %v639
      %v641 = vcombine.low %v621, %v621
      %v643 = vunpack.c.l.s4 1983009808
      %v644 = vunpack.c.0.s8 %v643
      %v645 = vlaneseq
      %v646 = vshrl.u32 %v645, 7
      %v647 = vsub.s32 %v644, %v646
      %v648 = vrot.slane %v641, %v647
      %v650 = vunpack.c.l.s4 1983009808
      %v651 = vunpack.c.0.s8 %v650
      %v652 = vlaneseq
      %v653 = vshrl.u32 %v652, 7
      %v654 = vsub.s32 %v651, %v653
      %v655 = vrot.slane %v621, %v654
      %v656 = vcombine.low %v622, %v622
      %v658 = vunpack.c.l.s4 1983009808
      %v659 = vunpack.c.0.s8 %v658
      %v660 = vlaneseq
      %v661 = vshrl.u32 %v660, 7
      %v662 = vsub.s32 %v659, %v661
      %v663 = vrot.slane %v656, %v662
      %664 = vrot.lane.b32.xlu0 %v633, 127
      %v665 = vpop.permute.xlu0 %664
      %666 = vrot.lane.b32.xlu0 %v640, 127
      %v667 = vpop.permute.xlu0 %666
      %668 = vrot.lane.b32.xlu0 %v648, 127
      %v669 = vpop.permute.xlu0 %668
      %670 = vrot.lane.b32.xlu0 %v655, 127
      %v671 = vpop.permute.xlu0 %670
      %672 = vrot.lane.b32.xlu0 %v663, 127
      %v673 = vpop.permute.xlu0 %672
      %v674 = vrot.slane %v665, 4
      %v675 = vrot.slane %v667, 4
      %v676 = vrot.slane %v669, 4
      %v677 = vrot.slane %v671, 4
      %v678 = vrot.slane %v673, 4
      %vm679 = vcmask 1043456
      %v680 = vsel %vm679, %v674, %v675
      %vm681 = vcmask 1039360
      %v682 = vsel %vm681, %v665, %v680
      %v683 = vsel %vm679, %v675, %v676
      %v684 = vsel %vm681, %v667, %v683
      %v685 = vsel %vm679, %v676, %v677
      %v686 = vsel %vm681, %v669, %v685
      %v687 = vsel %vm679, %v677, %v678
      %v688 = vsel %vm681, %v671, %v687
      %693 = vst [vmem:[#allocation3] sm:$0xcc] %v682
      %694 = vst [vmem:[#allocation3 + $0x8] sm:$0xcc] %v684
      %695 = vst [vmem:[#allocation3 + $0x10] sm:$0xcc] %v686
      %696 = vst [vmem:[#allocation3 + $0x18] sm:$0xcc] %v688
      %v697 = vld [vmem:[#allocation2] sm:$0xff]
      %v698 = vld [vmem:[#allocation2 + $0x8] sm:$0xff]
      %v699 = vld [vmem:[#allocation2 + $0x10] sm:$0x3]
      %v700 = vshrl.u32 %v452, 16
      %v701 = vpack.i.b16 %v700, %v700
      %v703 = vlaneseq
      %v704 = vshrl.u32 %v703, 7
      %v705 = vsub.s32 0, %v704
      %v706 = vrot.slane %v701, %v705
      %v707 = vshrl.u32 %v466, 16
      %v708 = vpack.i.b16 %v707, %v707
      %v710 = vlaneseq
      %v711 = vshrl.u32 %v710, 7
      %v712 = vsub.s32 0, %v711
      %v713 = vrot.slane %v708, %v712
      %v714 = vshrl.u32 %v474, 16
      %v715 = vpack.i.b16 %v714, %v714
      %v717 = vlaneseq
      %v718 = vshrl.u32 %v717, 7
      %v719 = vsub.s32 0, %v718
      %v720 = vrot.slane %v715, %v719
      %v721 = vshrl.u32 %v476, 16
      %v722 = vpack.i.b16 %v721, %v721
      %v724 = vlaneseq
      %v725 = vshrl.u32 %v724, 7
      %v726 = vsub.s32 0, %v725
      %v727 = vrot.slane %v722, %v726
      %v728 = vshrl.u32 %v459, 16
      %v729 = vpack.i.b16 %v728, %v728
      %v731 = vlaneseq
      %v732 = vshrl.u32 %v731, 7
      %v733 = vsub.s32 0, %v732
      %v734 = vrot.slane %v729, %v733
      %v735 = vshrl.u32 %v473, 16
      %v736 = vpack.i.b16 %v735, %v735
      %v738 = vlaneseq
      %v739 = vshrl.u32 %v738, 7
      %v740 = vsub.s32 0, %v739
      %v741 = vrot.slane %v736, %v740
      %v742 = vshrl.u32 %v475, 16
      %v743 = vpack.i.b16 %v742, %v742
      %v745 = vlaneseq
      %v746 = vshrl.u32 %v745, 7
      %v747 = vsub.s32 0, %v746
      %v748 = vrot.slane %v743, %v747
      %v749 = vshrl.u32 %v477, 16
      %v750 = vpack.i.b16 %v749, %v749
      %v752 = vlaneseq
      %v753 = vshrl.u32 %v752, 7
      %v754 = vsub.s32 0, %v753
      %v755 = vrot.slane %v750, %v754
      %v764 = vcombine.low %v706, %v713
      %v765 = vcombine.low %v720, %v727
      %v767 = vunpack.c.l.s4 1983009808
      %v768 = vunpack.c.0.s8 %v767
      %v769 = vlaneseq
      %v770 = vshrl.u32 %v769, 7
      %v771 = vsub.s32 %v768, %v770
      %v772 = vrot.slane %v764, %v771
      %v774 = vunpack.c.l.s4 1983009808
      %v775 = vunpack.c.0.s8 %v774
      %v776 = vlaneseq
      %v777 = vshrl.u32 %v776, 7
      %v778 = vsub.s32 %v775, %v777
      %v779 = vrot.slane %v765, %v778
      %v780 = vcombine.low %v772, %v779
      %v781 = vcombine.low %v734, %v741
      %v782 = vcombine.low %v748, %v755
      %v784 = vunpack.c.l.s4 1983009808
      %v785 = vunpack.c.0.s8 %v784
      %v786 = vlaneseq
      %v787 = vshrl.u32 %v786, 7
      %v788 = vsub.s32 %v785, %v787
      %v789 = vrot.slane %v781, %v788
      %v791 = vunpack.c.l.s4 1983009808
      %v792 = vunpack.c.0.s8 %v791
      %v793 = vlaneseq
      %v794 = vshrl.u32 %v793, 7
      %v795 = vsub.s32 %v792, %v794
      %v796 = vrot.slane %v782, %v795
      %v797 = vcombine.low %v789, %v796
      %798 = vrot.lane.b32.xlu0 %v780, 2
      %v799 = vpop.permute.xlu0 %798
      %800 = vrot.lane.b32.xlu0 %v797, 2
      %v801 = vpop.permute.xlu0 %800
      %v802 = vrot.slane %v799, 6
      %v803 = vrot.slane %v801, 6
      %vm804 = vcmask 15360
      %v805 = vsel %vm804, %v802, %v799
      %v806 = vsel %vm409, %v802, %v803
      %v807 = vsel %vm804, %v806, %v801
      %v811 = vmul.bf16 %v697, %v805
      %v812 = vmul.bf16 %v698, %v807
      %v813 = vmul.bf16 %v699, %v803
      %v817 = vcombine.high %v811, %v811
      %v819 = vunpack.c.l.s4 1983009808
      %v820 = vunpack.c.0.s8 %v819
      %v821 = vlaneseq
      %v822 = vshrl.u32 %v821, 7
      %v823 = vsub.s32 %v820, %v822
      %v824 = vrot.slane %v811, %v823
      %v826 = vunpack.c.l.s4 1983009808
      %v827 = vunpack.c.0.s8 %v826
      %v828 = vlaneseq
      %v829 = vshrl.u32 %v828, 7
      %v830 = vsub.s32 %v827, %v829
      %v831 = vrot.slane %v817, %v830
      %v832 = vcombine.high %v812, %v812
      %v834 = vunpack.c.l.s4 1983009808
      %v835 = vunpack.c.0.s8 %v834
      %v836 = vlaneseq
      %v837 = vshrl.u32 %v836, 7
      %v838 = vsub.s32 %v835, %v837
      %v839 = vrot.slane %v812, %v838
      %v841 = vunpack.c.l.s4 1983009808
      %v842 = vunpack.c.0.s8 %v841
      %v843 = vlaneseq
      %v844 = vshrl.u32 %v843, 7
      %v845 = vsub.s32 %v842, %v844
      %v846 = vrot.slane %v832, %v845
      %v848 = vunpack.c.l.s4 1983009808
      %v849 = vunpack.c.0.s8 %v848
      %v850 = vlaneseq
      %v851 = vshrl.u32 %v850, 7
      %v852 = vsub.s32 %v849, %v851
      %v853 = vrot.slane %v813, %v852
      %854 = vrot.lane.b32.xlu0 %v824, 126
      %v855 = vpop.permute.xlu0 %854
      %856 = vrot.lane.b32.xlu0 %v831, 126
      %v857 = vpop.permute.xlu0 %856
      %858 = vrot.lane.b32.xlu0 %v839, 126
      %v859 = vpop.permute.xlu0 %858
      %860 = vrot.lane.b32.xlu0 %v846, 126
      %v861 = vpop.permute.xlu0 %860
      %862 = vrot.lane.b32.xlu0 %v853, 126
      %v863 = vpop.permute.xlu0 %862
      %v864 = vrot.slane %v855, 4
      %v865 = vrot.slane %v857, 4
      %v866 = vrot.slane %v859, 4
      %v867 = vrot.slane %v861, 4
      %v868 = vrot.slane %v863, 4
      %v869 = vsel %vm679, %v864, %v865
      %vm870 = vcmask 1031168
      %v871 = vsel %vm870, %v855, %v869
      %v872 = vsel %vm679, %v865, %v866
      %v873 = vsel %vm870, %v857, %v872
      %v874 = vsel %vm679, %v866, %v867
      %v875 = vsel %vm870, %v859, %v874
      %v876 = vsel %vm679, %v867, %v868
      %v877 = vsel %vm870, %v861, %v876
      %882 = vst [vmem:[#allocation3 + $0x20] sm:$0x33] %v871
      %883 = vst [vmem:[#allocation3 + $0x28] sm:$0x33] %v873
      %884 = vst [vmem:[#allocation3 + $0x30] sm:$0x33] %v875
      %885 = vst [vmem:[#allocation3 + $0x38] sm:$0x33] %v877
      %v886 = vld [vmem:[#allocation2] sm:$0xff]
      %v887 = vld [vmem:[#allocation2 + $0x8] sm:$0xff]
      %v888 = vld [vmem:[#allocation2 + $0x10] sm:$0x3]
      %889 = vrot.lane.b32.xlu0 %v558, 32
      %v890 = vpop.permute.xlu0 %889
      %891 = vrot.lane.b32.xlu0 %v575, 32
      %v892 = vpop.permute.xlu0 %891
      %v893 = vrot.slane %v890, 6
      %v894 = vrot.slane %v892, 6
      %vm895 = vcmask 261120
      %v896 = vsel %vm895, %v893, %v890
      %v897 = vsel %vm409, %v893, %v894
      %v898 = vsel %vm895, %v897, %v892
      %v902 = vmul.bf16 %v886, %v896
      %v903 = vmul.bf16 %v887, %v898
      %v904 = vmul.bf16 %v888, %v894
      %v908 = vcombine.low %v902, %v902
      %v910 = vunpack.c.l.s4 1983009808
      %v911 = vunpack.c.0.s8 %v910
      %v912 = vlaneseq
      %v913 = vshrl.u32 %v912, 7
      %v914 = vsub.s32 %v911, %v913
      %v915 = vrot.slane %v908, %v914
      %v917 = vunpack.c.l.s4 1983009808
      %v918 = vunpack.c.0.s8 %v917
      %v919 = vlaneseq
      %v920 = vshrl.u32 %v919, 7
      %v921 = vsub.s32 %v918, %v920
      %v922 = vrot.slane %v902, %v921
      %v923 = vcombine.low %v903, %v903
      %v925 = vunpack.c.l.s4 1983009808
      %v926 = vunpack.c.0.s8 %v925
      %v927 = vlaneseq
      %v928 = vshrl.u32 %v927, 7
      %v929 = vsub.s32 %v926, %v928
      %v930 = vrot.slane %v923, %v929
      %v932 = vunpack.c.l.s4 1983009808
      %v933 = vunpack.c.0.s8 %v932
      %v934 = vlaneseq
      %v935 = vshrl.u32 %v934, 7
      %v936 = vsub.s32 %v933, %v935
      %v937 = vrot.slane %v903, %v936
      %v938 = vcombine.low %v904, %v904
      %v940 = vunpack.c.l.s4 1983009808
      %v941 = vunpack.c.0.s8 %v940
      %v942 = vlaneseq
      %v943 = vshrl.u32 %v942, 7
      %v944 = vsub.s32 %v941, %v943
      %v945 = vrot.slane %v938, %v944
      %946 = vrot.lane.b32.xlu0 %v915, 96
      %v947 = vpop.permute.xlu0 %946
      %948 = vrot.lane.b32.xlu0 %v922, 96
      %v949 = vpop.permute.xlu0 %948
      %950 = vrot.lane.b32.xlu0 %v930, 96
      %v951 = vpop.permute.xlu0 %950
      %952 = vrot.lane.b32.xlu0 %v937, 96
      %v953 = vpop.permute.xlu0 %952
      %954 = vrot.lane.b32.xlu0 %v945, 96
      %v955 = vpop.permute.xlu0 %954
      %v956 = vrot.slane %v947, 4
      %v957 = vrot.slane %v949, 4
      %v958 = vrot.slane %v951, 4
      %v959 = vrot.slane %v953, 4
      %v960 = vrot.slane %v955, 4
      %v961 = vsel %vm679, %v956, %v957
      %vm962 = vcmask 785408
      %v963 = vsel %vm962, %v947, %v961
      %v964 = vsel %vm679, %v957, %v958
      %v965 = vsel %vm962, %v949, %v964
      %v966 = vsel %vm679, %v958, %v959
      %v967 = vsel %vm962, %v951, %v966
      %v968 = vsel %vm679, %v959, %v960
      %v969 = vsel %vm962, %v953, %v968
      %974 = vst [vmem:[#allocation3 + $0x20] sm:$0xcc] %v963
      %975 = vst [vmem:[#allocation3 + $0x28] sm:$0xcc] %v965
      %976 = vst [vmem:[#allocation3 + $0x30] sm:$0xcc] %v967
      %977 = vst [vmem:[#allocation3 + $0x38] sm:$0xcc] %v969
      %v978 = vld [vmem:[#allocation2] sm:$0xff]
      %v979 = vld [vmem:[#allocation2 + $0x8] sm:$0xff]
      %v980 = vld [vmem:[#allocation2 + $0x10] sm:$0x3]
      %v984 = vcombine.high %v978, %v978
      %v986 = vunpack.c.l.s4 1983009808
      %v987 = vunpack.c.0.s8 %v986
      %v988 = vlaneseq
      %v989 = vshrl.u32 %v988, 7
      %v990 = vsub.s32 %v987, %v989
      %v991 = vrot.slane %v978, %v990
      %v993 = vunpack.c.l.s4 1983009808
      %v994 = vunpack.c.0.s8 %v993
      %v995 = vlaneseq
      %v996 = vshrl.u32 %v995, 7
      %v997 = vsub.s32 %v994, %v996
      %v998 = vrot.slane %v984, %v997
      %v999 = vcombine.high %v979, %v979
      %v1001 = vunpack.c.l.s4 1983009808
      %v1002 = vunpack.c.0.s8 %v1001
      %v1003 = vlaneseq
      %v1004 = vshrl.u32 %v1003, 7
      %v1005 = vsub.s32 %v1002, %v1004
      %v1006 = vrot.slane %v979, %v1005
      %v1008 = vunpack.c.l.s4 1983009808
      %v1009 = vunpack.c.0.s8 %v1008
      %v1010 = vlaneseq
      %v1011 = vshrl.u32 %v1010, 7
      %v1012 = vsub.s32 %v1009, %v1011
      %v1013 = vrot.slane %v999, %v1012
      %v1015 = vunpack.c.l.s4 1983009808
      %v1016 = vunpack.c.0.s8 %v1015
      %v1017 = vlaneseq
      %v1018 = vshrl.u32 %v1017, 7
      %v1019 = vsub.s32 %v1016, %v1018
      %v1020 = vrot.slane %v980, %v1019
      %1021 = vrot.lane.b32.xlu0 %v991, 95
      %v1022 = vpop.permute.xlu0 %1021
      %1023 = vrot.lane.b32.xlu0 %v998, 95
      %v1024 = vpop.permute.xlu0 %1023
      %1025 = vrot.lane.b32.xlu0 %v1006, 95
      %v1026 = vpop.permute.xlu0 %1025
      %1027 = vrot.lane.b32.xlu0 %v1013, 95
      %v1028 = vpop.permute.xlu0 %1027
      %1029 = vrot.lane.b32.xlu0 %v1020, 95
      %v1030 = vpop.permute.xlu0 %1029
      %v1031 = vrot.slane %v1022, 4
      %v1032 = vrot.slane %v1024, 4
      %v1033 = vrot.slane %v1026, 4
      %v1034 = vrot.slane %v1028, 4
      %v1035 = vrot.slane %v1030, 4
      %v1036 = vsel %vm679, %v1031, %v1032
      %vm1037 = vcmask 777216
      %v1038 = vsel %vm1037, %v1022, %v1036
      %v1039 = vsel %vm679, %v1032, %v1033
      %v1040 = vsel %vm1037, %v1024, %v1039
      %v1041 = vsel %vm679, %v1033, %v1034
      %v1042 = vsel %vm1037, %v1026, %v1041
      %v1043 = vsel %vm679, %v1034, %v1035
      %v1044 = vsel %vm1037, %v1028, %v1043
      %1049 = vst [vmem:[#allocation3 + $0x40] sm:$0x33] %v1038
      %1050 = vst [vmem:[#allocation3 + $0x48] sm:$0x33] %v1040
      %1051 = vst [vmem:[#allocation3 + $0x50] sm:$0x33] %v1042
      %1052 = vst [vmem:[#allocation3 + $0x58] sm:$0x33] %v1044
      %v1053 = vld [vmem:[#allocation2] sm:$0xff]
      %v1054 = vld [vmem:[#allocation2 + $0x8] sm:$0xff]
      %v1055 = vld [vmem:[#allocation2 + $0x10] sm:$0x3]
      %1056 = vrot.lane.b32.xlu0 %v780, 34
      %v1057 = vpop.permute.xlu0 %1056
      %1058 = vrot.lane.b32.xlu0 %v797, 34
      %v1059 = vpop.permute.xlu0 %1058
      %v1060 = vrot.slane %v1057, 6
      %v1061 = vrot.slane %v1059, 6
      %vm1062 = vcmask 277504
      %v1063 = vsel %vm1062, %v1060, %v1057
      %v1064 = vsel %vm409, %v1060, %v1061
      %v1065 = vsel %vm1062, %v1064, %v1059
      %v1069 = vmul.bf16 %v1053, %v1063
      %v1070 = vmul.bf16 %v1054, %v1065
      %v1071 = vmul.bf16 %v1055, %v1061
      %v1075 = vcombine.low %v1069, %v1069
      %v1077 = vunpack.c.l.s4 1983009808
      %v1078 = vunpack.c.0.s8 %v1077
      %v1079 = vlaneseq
      %v1080 = vshrl.u32 %v1079, 7
      %v1081 = vsub.s32 %v1078, %v1080
      %v1082 = vrot.slane %v1075, %v1081
      %v1084 = vunpack.c.l.s4 1983009808
      %v1085 = vunpack.c.0.s8 %v1084
      %v1086 = vlaneseq
      %v1087 = vshrl.u32 %v1086, 7
      %v1088 = vsub.s32 %v1085, %v1087
      %v1089 = vrot.slane %v1069, %v1088
      %v1090 = vcombine.low %v1070, %v1070
      %v1092 = vunpack.c.l.s4 1983009808
      %v1093 = vunpack.c.0.s8 %v1092
      %v1094 = vlaneseq
      %v1095 = vshrl.u32 %v1094, 7
      %v1096 = vsub.s32 %v1093, %v1095
      %v1097 = vrot.slane %v1090, %v1096
      %v1099 = vunpack.c.l.s4 1983009808
      %v1100 = vunpack.c.0.s8 %v1099
      %v1101 = vlaneseq
      %v1102 = vshrl.u32 %v1101, 7
      %v1103 = vsub.s32 %v1100, %v1102
      %v1104 = vrot.slane %v1070, %v1103
      %v1105 = vcombine.low %v1071, %v1071
      %v1107 = vunpack.c.l.s4 1983009808
      %v1108 = vunpack.c.0.s8 %v1107
      %v1109 = vlaneseq
      %v1110 = vshrl.u32 %v1109, 7
      %v1111 = vsub.s32 %v1108, %v1110
      %v1112 = vrot.slane %v1105, %v1111
      %1113 = vrot.lane.b32.xlu0 %v1082, 94
      %v1114 = vpop.permute.xlu0 %1113
      %1115 = vrot.lane.b32.xlu0 %v1089, 94
      %v1116 = vpop.permute.xlu0 %1115
      %1117 = vrot.lane.b32.xlu0 %v1097, 94
      %v1118 = vpop.permute.xlu0 %1117
      %1119 = vrot.lane.b32.xlu0 %v1104, 94
      %v1120 = vpop.permute.xlu0 %1119
      %1121 = vrot.lane.b32.xlu0 %v1112, 94
      %v1122 = vpop.permute.xlu0 %1121
      %v1123 = vrot.slane %v1114, 4
      %v1124 = vrot.slane %v1116, 4
      %v1125 = vrot.slane %v1118, 4
      %v1126 = vrot.slane %v1120, 4
      %v1127 = vrot.slane %v1122, 4
      %v1128 = vsel %vm679, %v1123, %v1124
      %vm1129 = vcmask 769024
      %v1130 = vsel %vm1129, %v1114, %v1128
      %v1131 = vsel %vm679, %v1124, %v1125
      %v1132 = vsel %vm1129, %v1116, %v1131
      %v1133 = vsel %vm679, %v1125, %v1126
      %v1134 = vsel %vm1129, %v1118, %v1133
      %v1135 = vsel %vm679, %v1126, %v1127
      %v1136 = vsel %vm1129, %v1120, %v1135
      %1141 = vst [vmem:[#allocation3 + $0x40] sm:$0xcc] %v1130
      %1142 = vst [vmem:[#allocation3 + $0x48] sm:$0xcc] %v1132
      %1143 = vst [vmem:[#allocation3 + $0x50] sm:$0xcc] %v1134
      %1144 = vst [vmem:[#allocation3 + $0x58] sm:$0xcc] %v1136
      %v1145 = vld [vmem:[#allocation2] sm:$0xff]
      %v1146 = vld [vmem:[#allocation2 + $0x8] sm:$0xff]
      %v1147 = vld [vmem:[#allocation2 + $0x10] sm:$0x3]
      %1148 = vrot.lane.b32.xlu0 %v558, 64
      %v1149 = vpop.permute.xlu0 %1148
      %1150 = vrot.lane.b32.xlu0 %v575, 64
      %v1151 = vpop.permute.xlu0 %1150
      %v1152 = vrot.slane %v1149, 6
      %v1153 = vrot.slane %v1151, 6
      %vm1154 = vcmask 523264
      %v1155 = vsel %vm1154, %v1152, %v1149
      %v1156 = vsel %vm409, %v1152, %v1153
      %v1157 = vsel %vm1154, %v1156, %v1151
      %v1161 = vmul.bf16 %v1145, %v1155
      %v1162 = vmul.bf16 %v1146, %v1157
      %v1163 = vmul.bf16 %v1147, %v1153
      %v1167 = vcombine.high %v1161, %v1161
      %v1169 = vunpack.c.l.s4 1983009808
      %v1170 = vunpack.c.0.s8 %v1169
      %v1171 = vlaneseq
      %v1172 = vshrl.u32 %v1171, 7
      %v1173 = vsub.s32 %v1170, %v1172
      %v1174 = vrot.slane %v1161, %v1173
      %v1176 = vunpack.c.l.s4 1983009808
      %v1177 = vunpack.c.0.s8 %v1176
      %v1178 = vlaneseq
      %v1179 = vshrl.u32 %v1178, 7
      %v1180 = vsub.s32 %v1177, %v1179
      %v1181 = vrot.slane %v1167, %v1180
      %v1182 = vcombine.high %v1162, %v1162
      %v1184 = vunpack.c.l.s4 1983009808
      %v1185 = vunpack.c.0.s8 %v1184
      %v1186 = vlaneseq
      %v1187 = vshrl.u32 %v1186, 7
      %v1188 = vsub.s32 %v1185, %v1187
      %v1189 = vrot.slane %v1162, %v1188
      %v1191 = vunpack.c.l.s4 1983009808
      %v1192 = vunpack.c.0.s8 %v1191
      %v1193 = vlaneseq
      %v1194 = vshrl.u32 %v1193, 7
      %v1195 = vsub.s32 %v1192, %v1194
      %v1196 = vrot.slane %v1182, %v1195
      %v1198 = vunpack.c.l.s4 1983009808
      %v1199 = vunpack.c.0.s8 %v1198
      %v1200 = vlaneseq
      %v1201 = vshrl.u32 %v1200, 7
      %v1202 = vsub.s32 %v1199, %v1201
      %v1203 = vrot.slane %v1163, %v1202
      %1204 = vrot.lane.b32.xlu0 %v1174, 64
      %v1205 = vpop.permute.xlu0 %1204
      %1206 = vrot.lane.b32.xlu0 %v1181, 64
      %v1207 = vpop.permute.xlu0 %1206
      %1208 = vrot.lane.b32.xlu0 %v1189, 64
      %v1209 = vpop.permute.xlu0 %1208
      %1210 = vrot.lane.b32.xlu0 %v1196, 64
      %v1211 = vpop.permute.xlu0 %1210
      %1212 = vrot.lane.b32.xlu0 %v1203, 64
      %v1213 = vpop.permute.xlu0 %1212
      %v1214 = vrot.slane %v1205, 4
      %v1215 = vrot.slane %v1207, 4
      %v1216 = vrot.slane %v1209, 4
      %v1217 = vrot.slane %v1211, 4
      %v1218 = vrot.slane %v1213, 4
      %v1219 = vsel %vm679, %v1214, %v1215
      %v1220 = vsel %vm1154, %v1205, %v1219
      %v1221 = vsel %vm679, %v1215, %v1216
      %v1222 = vsel %vm1154, %v1207, %v1221
      %v1223 = vsel %vm679, %v1216, %v1217
      %v1224 = vsel %vm1154, %v1209, %v1223
      %v1225 = vsel %vm679, %v1217, %v1218
      %v1226 = vsel %vm1154, %v1211, %v1225
      %1231 = vst [vmem:[#allocation3 + $0x60] sm:$0x33] %v1220
      %1232 = vst [vmem:[#allocation3 + $0x68] sm:$0x33] %v1222
      %1233 = vst [vmem:[#allocation3 + $0x70] sm:$0x33] %v1224
      %1234 = vst [vmem:[#allocation3 + $0x78] sm:$0x33] %v1226
      %v1235 = vld [vmem:[#allocation2] sm:$0xff]
      %v1236 = vld [vmem:[#allocation2 + $0x8] sm:$0xff]
      %v1237 = vld [vmem:[#allocation2 + $0x10] sm:$0x3]
      %v1241 = vcombine.low %v1235, %v1235
      %v1243 = vunpack.c.l.s4 1983009808
      %v1244 = vunpack.c.0.s8 %v1243
      %v1245 = vlaneseq
      %v1246 = vshrl.u32 %v1245, 7
      %v1247 = vsub.s32 %v1244, %v1246
      %v1248 = vrot.slane %v1241, %v1247
      %v1250 = vunpack.c.l.s4 1983009808
      %v1251 = vunpack.c.0.s8 %v1250
      %v1252 = vlaneseq
      %v1253 = vshrl.u32 %v1252, 7
      %v1254 = vsub.s32 %v1251, %v1253
      %v1255 = vrot.slane %v1235, %v1254
      %v1256 = vcombine.low %v1236, %v1236
      %v1258 = vunpack.c.l.s4 1983009808
      %v1259 = vunpack.c.0.s8 %v1258
      %v1260 = vlaneseq
      %v1261 = vshrl.u32 %v1260, 7
      %v1262 = vsub.s32 %v1259, %v1261
      %v1263 = vrot.slane %v1256, %v1262
      %v1265 = vunpack.c.l.s4 1983009808
      %v1266 = vunpack.c.0.s8 %v1265
      %v1267 = vlaneseq
      %v1268 = vshrl.u32 %v1267, 7
      %v1269 = vsub.s32 %v1266, %v1268
      %v1270 = vrot.slane %v1236, %v1269
      %v1271 = vcombine.low %v1237, %v1237
      %v1273 = vunpack.c.l.s4 1983009808
      %v1274 = vunpack.c.0.s8 %v1273
      %v1275 = vlaneseq
      %v1276 = vshrl.u32 %v1275, 7
      %v1277 = vsub.s32 %v1274, %v1276
      %v1278 = vrot.slane %v1271, %v1277
      %1279 = vrot.lane.b32.xlu0 %v1248, 63
      %v1280 = vpop.permute.xlu0 %1279
      %1281 = vrot.lane.b32.xlu0 %v1255, 63
      %v1282 = vpop.permute.xlu0 %1281
      %1283 = vrot.lane.b32.xlu0 %v1263, 63
      %v1284 = vpop.permute.xlu0 %1283
      %1285 = vrot.lane.b32.xlu0 %v1270, 63
      %v1286 = vpop.permute.xlu0 %1285
      %1287 = vrot.lane.b32.xlu0 %v1278, 63
      %v1288 = vpop.permute.xlu0 %1287
      %v1289 = vrot.slane %v1280, 4
      %v1290 = vrot.slane %v1282, 4
      %v1291 = vrot.slane %v1284, 4
      %v1292 = vrot.slane %v1286, 4
      %v1293 = vrot.slane %v1288, 4
      %v1294 = vsel %vm679, %v1289, %v1290
      %vm1295 = vcmask 515072
      %v1296 = vsel %vm1295, %v1280, %v1294
      %v1297 = vsel %vm679, %v1290, %v1291
      %v1298 = vsel %vm1295, %v1282, %v1297
      %v1299 = vsel %vm679, %v1291, %v1292
      %v1300 = vsel %vm1295, %v1284, %v1299
      %v1301 = vsel %vm679, %v1292, %v1293
      %v1302 = vsel %vm1295, %v1286, %v1301
      %1307 = vst [vmem:[#allocation3 + $0x60] sm:$0xcc] %v1296
      %1308 = vst [vmem:[#allocation3 + $0x68] sm:$0xcc] %v1298
      %1309 = vst [vmem:[#allocation3 + $0x70] sm:$0xcc] %v1300
      %1310 = vst [vmem:[#allocation3 + $0x78] sm:$0xcc] %v1302
      %v1311 = vld [vmem:[#allocation2] sm:$0xff]
      %v1312 = vld [vmem:[#allocation2 + $0x8] sm:$0xff]
      %v1313 = vld [vmem:[#allocation2 + $0x10] sm:$0x3]
      %1314 = vrot.lane.b32.xlu0 %v780, 66
      %v1315 = vpop.permute.xlu0 %1314
      %1316 = vrot.lane.b32.xlu0 %v797, 66
      %v1317 = vpop.permute.xlu0 %1316
      %v1318 = vrot.slane %v1315, 6
      %v1319 = vrot.slane %v1317, 6
      %vm1320 = vcmask 539648
      %v1321 = vsel %vm1320, %v1318, %v1315
      %v1322 = vsel %vm409, %v1318, %v1319
      %v1323 = vsel %vm1320, %v1322, %v1317
      %v1327 = vmul.bf16 %v1311, %v1321
      %v1328 = vmul.bf16 %v1312, %v1323
      %v1329 = vmul.bf16 %v1313, %v1319
      %v1333 = vcombine.high %v1327, %v1327
      %v1335 = vunpack.c.l.s4 1983009808
      %v1336 = vunpack.c.0.s8 %v1335
      %v1337 = vlaneseq
      %v1338 = vshrl.u32 %v1337, 7
      %v1339 = vsub.s32 %v1336, %v1338
      %v1340 = vrot.slane %v1327, %v1339
      %v1342 = vunpack.c.l.s4 1983009808
      %v1343 = vunpack.c.0.s8 %v1342
      %v1344 = vlaneseq
      %v1345 = vshrl.u32 %v1344, 7
      %v1346 = vsub.s32 %v1343, %v1345
      %v1347 = vrot.slane %v1333, %v1346
      %v1348 = vcombine.high %v1328, %v1328
      %v1350 = vunpack.c.l.s4 1983009808
      %v1351 = vunpack.c.0.s8 %v1350
      %v1352 = vlaneseq
      %v1353 = vshrl.u32 %v1352, 7
      %v1354 = vsub.s32 %v1351, %v1353
      %v1355 = vrot.slane %v1328, %v1354
      %v1357 = vunpack.c.l.s4 1983009808
      %v1358 = vunpack.c.0.s8 %v1357
      %v1359 = vlaneseq
      %v1360 = vshrl.u32 %v1359, 7
      %v1361 = vsub.s32 %v1358, %v1360
      %v1362 = vrot.slane %v1348, %v1361
      %v1364 = vunpack.c.l.s4 1983009808
      %v1365 = vunpack.c.0.s8 %v1364
      %v1366 = vlaneseq
      %v1367 = vshrl.u32 %v1366, 7
      %v1368 = vsub.s32 %v1365, %v1367
      %v1369 = vrot.slane %v1329, %v1368
      %1370 = vrot.lane.b32.xlu0 %v1340, 62
      %v1371 = vpop.permute.xlu0 %1370
      %1372 = vrot.lane.b32.xlu0 %v1347, 62
      %v1373 = vpop.permute.xlu0 %1372
      %1374 = vrot.lane.b32.xlu0 %v1355, 62
      %v1375 = vpop.permute.xlu0 %1374
      %1376 = vrot.lane.b32.xlu0 %v1362, 62
      %v1377 = vpop.permute.xlu0 %1376
      %1378 = vrot.lane.b32.xlu0 %v1369, 62
      %v1379 = vpop.permute.xlu0 %1378
      %v1380 = vrot.slane %v1371, 4
      %v1381 = vrot.slane %v1373, 4
      %v1382 = vrot.slane %v1375, 4
      %v1383 = vrot.slane %v1377, 4
      %v1384 = vrot.slane %v1379, 4
      %v1385 = vsel %vm679, %v1380, %v1381
      %vm1386 = vcmask 506880
      %v1387 = vsel %vm1386, %v1371, %v1385
      %v1388 = vsel %vm679, %v1381, %v1382
      %v1389 = vsel %vm1386, %v1373, %v1388
      %v1390 = vsel %vm679, %v1382, %v1383
      %v1391 = vsel %vm1386, %v1375, %v1390
      %v1392 = vsel %vm679, %v1383, %v1384
      %v1393 = vsel %vm1386, %v1377, %v1392
      %1398 = vst [vmem:[#allocation3 + $0x80] sm:$0x33] %v1387
      %1399 = vst [vmem:[#allocation3 + $0x88] sm:$0x33] %v1389
      %1400 = vst [vmem:[#allocation3 + $0x90] sm:$0x33] %v1391
      %1401 = vst [vmem:[#allocation3 + $0x98] sm:$0x33] %v1393
      %v1402 = vld [vmem:[%s4] sm:$0x3]
      %v1403 = vld [vmem:[#allocation3] sm:$0xff]
      %v1404 = vld [vmem:[#allocation3 + $0x8] sm:$0xff]
      %v1405 = vld [vmem:[#allocation3 + $0x10] sm:$0xff]
      %v1406 = vld [vmem:[#allocation3 + $0x18] sm:$0xff]
      %v1407 = vld [vmem:[#allocation3 + $0x20] sm:$0xff]
      %v1408 = vld [vmem:[#allocation3 + $0x28] sm:$0xff]
      %v1409 = vld [vmem:[#allocation3 + $0x30] sm:$0xff]
      %v1410 = vld [vmem:[#allocation3 + $0x38] sm:$0xff]
      %v1411 = vld [vmem:[#allocation3 + $0x40] sm:$0xff]
      %v1412 = vld [vmem:[#allocation3 + $0x48] sm:$0xff]
      %v1413 = vld [vmem:[#allocation3 + $0x50] sm:$0xff]
      %v1414 = vld [vmem:[#allocation3 + $0x58] sm:$0xff]
      %v1415 = vld [vmem:[#allocation3 + $0x60] sm:$0xff]
      %v1416 = vld [vmem:[#allocation3 + $0x68] sm:$0xff]
      %v1417 = vld [vmem:[#allocation3 + $0x70] sm:$0xff]
      %v1418 = vld [vmem:[#allocation3 + $0x78] sm:$0xff]
      %v1419 = vld [vmem:[#allocation3 + $0x80] sm:$0x33]
      %v1420 = vld [vmem:[#allocation3 + $0x88] sm:$0x33]
      %v1421 = vld [vmem:[#allocation3 + $0x90] sm:$0x33]
      %v1422 = vld [vmem:[#allocation3 + $0x98] sm:$0x33]
      %v1423 = vld [vmem:[%s5] sm:$0xf]
      %1425 = vset.pattern.permute.xlu0 0
      %1426 = vperm.xlu0 %1425, %v1423
      %v1427 = vpop.permute.xlu0 %1426
      %v1449 = vunpack.c.l.b16 %v1403
      %v1450 = vunpack.c.h.b16 %v1403
      %v1451 = vunpack.c.l.b16 %v1404
      %v1452 = vunpack.c.h.b16 %v1404
      %v1453 = vunpack.c.l.b16 %v1405
      %v1454 = vunpack.c.h.b16 %v1405
      %v1455 = vunpack.c.l.b16 %v1406
      %v1456 = vunpack.c.h.b16 %v1406
      %v1457 = vunpack.c.l.b16 %v1407
      %v1458 = vunpack.c.h.b16 %v1407
      %v1459 = vunpack.c.l.b16 %v1408
      %v1460 = vunpack.c.h.b16 %v1408
      %v1461 = vunpack.c.l.b16 %v1409
      %v1462 = vunpack.c.h.b16 %v1409
      %v1463 = vunpack.c.l.b16 %v1410
      %v1464 = vunpack.c.h.b16 %v1410
      %v1465 = vunpack.c.l.b16 %v1411
      %v1466 = vunpack.c.h.b16 %v1411
      %v1467 = vunpack.c.l.b16 %v1412
      %v1468 = vunpack.c.h.b16 %v1412
      %v1469 = vunpack.c.l.b16 %v1413
      %v1470 = vunpack.c.h.b16 %v1413
      %v1471 = vunpack.c.l.b16 %v1414
      %v1472 = vunpack.c.h.b16 %v1414
      %v1473 = vunpack.c.l.b16 %v1415
      %v1474 = vunpack.c.h.b16 %v1415
      %v1475 = vunpack.c.l.b16 %v1416
      %v1476 = vunpack.c.h.b16 %v1416
      %v1477 = vunpack.c.l.b16 %v1417
      %v1478 = vunpack.c.h.b16 %v1417
      %v1479 = vunpack.c.l.b16 %v1418
      %v1480 = vunpack.c.h.b16 %v1418
      %v1481 = vunpack.c.l.b16 %v1419
      %v1482 = vunpack.c.h.b16 %v1419
      %v1483 = vunpack.c.l.b16 %v1420
      %v1484 = vunpack.c.h.b16 %v1420
      %v1485 = vunpack.c.l.b16 %v1421
      %v1486 = vunpack.c.h.b16 %v1421
      %v1487 = vunpack.c.l.b16 %v1422
      %v1488 = vunpack.c.h.b16 %v1422
      %v1489 = vpack.c.b16 %v1457, %v1449
      %v1490 = vpack.c.b16 %v1458, %v1450
      %v1491 = vpack.c.b16 %v1459, %v1451
      %v1492 = vpack.c.b16 %v1460, %v1452
      %v1493 = vpack.c.b16 %v1461, %v1453
      %v1494 = vpack.c.b16 %v1462, %v1454
      %v1495 = vpack.c.b16 %v1463, %v1455
      %v1496 = vpack.c.b16 %v1464, %v1456
      %v1497 = vpack.c.b16 %v1473, %v1465
      %v1498 = vpack.c.b16 %v1474, %v1466
      %v1499 = vpack.c.b16 %v1475, %v1467
      %v1500 = vpack.c.b16 %v1476, %v1468
      %v1501 = vpack.c.b16 %v1477, %v1469
      %v1502 = vpack.c.b16 %v1478, %v1470
      %v1503 = vpack.c.b16 %v1479, %v1471
      %v1504 = vpack.c.b16 %v1480, %v1472
      %v1505 = vpack.c.b16 %v1481, %v1481
      %v1506 = vpack.c.b16 %v1482, %v1482
      %v1507 = vpack.c.b16 %v1483, %v1483
      %v1508 = vpack.c.b16 %v1484, %v1484
      %v1509 = vpack.c.b16 %v1485, %v1485
      %v1510 = vpack.c.b16 %v1486, %v1486
      %v1511 = vpack.c.b16 %v1487, %v1487
      %v1512 = vpack.c.b16 %v1488, %v1488
      %vm1529 = vcmask 293888
      %v1531 = vsel %vm1529, %v1402, 0
      %vm1533 = vcmask 1041408
      %v1535 = vsel %vm1533, %v1505, 0
      %v1538 = vsel %vm1533, %v1506, 0
      %v1541 = vsel %vm1533, %v1507, 0
      %v1544 = vsel %vm1533, %v1508, 0
      %v1547 = vsel %vm1533, %v1509, 0
      %v1550 = vsel %vm1533, %v1510, 0
      %v1553 = vsel %vm1533, %v1511, 0
      %v1556 = vsel %vm1533, %v1512, 0
      %1558 = vmatprep.subr.bf16.mxu0 %v1490
      %1559 = vmatpush1.bf16.msra.mxu0 %v1489
      %1560 = vmatprep.subr.bf16.mxu0 %v1498
      %1561 = vmatpush1.bf16.msra.mxu0 %v1497
      %1562 = vmatprep.subr.bf16.mxu0 %v1538
      %1563 = vmatpush1.bf16.msra.mxu0 %v1535
      %1564 = vmatprep.subr.bf16.mxu0 0
      %1565 = vmatpush1.bf16.msra.mxu0 0
      %1566 = vmatprep.subr.bf16.mxu0 0
      %1567 = vmatpush1.bf16.msra.mxu0 0
      %1568 = vmatprep.subr.bf16.mxu0 0
      %1569 = vmatpush1.bf16.msra.mxu0 0
      %1570 = vmatprep.subr.bf16.mxu0 0
      %1571 = vmatpush1.bf16.msra.mxu0 0
      %1572 = vmatprep.subr.bf16.mxu0 0
      %1573 = vmatpush1.bf16.msra.mxu0 0
      %1574 = vmatprep.subr.bf16.mxu0 0
      %1575 = vmatpush1.bf16.msra.mxu0 0
      %1576 = vmatprep.subr.bf16.mxu0 0
      %1577 = vmatpush1.bf16.msra.mxu0 0
      %1578 = vmatprep.subr.bf16.mxu0 0
      %1579 = vmatpush1.bf16.msra.mxu0 0
      %1580 = vmatprep.subr.bf16.mxu0 0
      %1581 = vmatpush1.bf16.msra.mxu0 0
      %1582 = vmatprep.subr.bf16.mxu0 0
      %1583 = vmatpush1.bf16.msra.mxu0 0
      %1584 = vmatprep.subr.bf16.mxu0 0
      %1585 = vmatpush1.bf16.msra.mxu0 0
      %1586 = vmatprep.subr.bf16.mxu0 0
      %1587 = vmatpush1.bf16.msra.mxu0 0
      %1588 = vmatprep.subr.bf16.mxu0 0
      %1589 = vmatpush1.bf16.msra.mxu0 0
      %1590 = vmatprep.mubr.bf16.mxu0 0
      %1591 = vmatmul.mubr.bf16.gmra.mrb[0].mxu0 %v1531
      %v1592 = vpop.f32.mrb[0].mxu0
      %v1593 = vadd.f32 %v1427, %v1592
      %v1594 = vpop.f32.mrb[0].mxu0
      %v1595 = vadd.f32 %v1427, %v1594
      %v1596 = vpop.f32.mrb[0].mxu0
      %v1597 = vpop.f32.mrb[0].mxu0
      %1598 = vdwg.mxu0
      %1599 = vmatprep.subr.bf16.mxu0 %v1492
      %1600 = vmatpush1.bf16.msra.mxu0 %v1491
      %1601 = vmatprep.subr.bf16.mxu0 %v1500
      %1602 = vmatpush1.bf16.msra.mxu0 %v1499
      %1603 = vmatprep.subr.bf16.mxu0 %v1544
      %1604 = vmatpush1.bf16.msra.mxu0 %v1541
      %1605 = vmatprep.subr.bf16.mxu0 0
      %1606 = vmatpush1.bf16.msra.mxu0 0
      %1607 = vmatprep.subr.bf16.mxu0 0
      %1608 = vmatpush1.bf16.msra.mxu0 0
      %1609 = vmatprep.subr.bf16.mxu0 0
      %1610 = vmatpush1.bf16.msra.mxu0 0
      %1611 = vmatprep.subr.bf16.mxu0 0
      %1612 = vmatpush1.bf16.msra.mxu0 0
      %1613 = vmatprep.subr.bf16.mxu0 0
      %1614 = vmatpush1.bf16.msra.mxu0 0
      %1615 = vmatprep.subr.bf16.mxu0 0
      %1616 = vmatpush1.bf16.msra.mxu0 0
      %1617 = vmatprep.subr.bf16.mxu0 0
      %1618 = vmatpush1.bf16.msra.mxu0 0
      %1619 = vmatprep.subr.bf16.mxu0 0
      %1620 = vmatpush1.bf16.msra.mxu0 0
      %1621 = vmatprep.subr.bf16.mxu0 0
      %1622 = vmatpush1.bf16.msra.mxu0 0
      %1623 = vmatprep.subr.bf16.mxu0 0
      %1624 = vmatpush1.bf16.msra.mxu0 0
      %1625 = vmatprep.subr.bf16.mxu0 0
      %1626 = vmatpush1.bf16.msra.mxu0 0
      %1627 = vmatprep.subr.bf16.mxu0 0
      %1628 = vmatpush1.bf16.msra.mxu0 0
      %1629 = vmatprep.subr.bf16.mxu0 0
      %1630 = vmatpush1.bf16.msra.mxu0 0
      %1631 = vmatprep.mubr.bf16.mxu0 0
      %1632 = vmatmul.mubr.bf16.gmra.mrb[0].mxu0 %v1531
      %v1633 = vpop.f32.mrb[0].mxu0
      %v1634 = vadd.f32 %v1427, %v1633
      %v1635 = vpop.f32.mrb[0].mxu0
      %v1636 = vadd.f32 %v1427, %v1635
      %v1637 = vpop.f32.mrb[0].mxu0
      %v1638 = vpop.f32.mrb[0].mxu0
      %1639 = vdwg.mxu0
      %1640 = vmatprep.subr.bf16.mxu0 %v1494
      %1641 = vmatpush1.bf16.msra.mxu0 %v1493
      %1642 = vmatprep.subr.bf16.mxu0 %v1502
      %1643 = vmatpush1.bf16.msra.mxu0 %v1501
      %1644 = vmatprep.subr.bf16.mxu0 %v1550
      %1645 = vmatpush1.bf16.msra.mxu0 %v1547
      %1646 = vmatprep.subr.bf16.mxu0 0
      %1647 = vmatpush1.bf16.msra.mxu0 0
      %1648 = vmatprep.subr.bf16.mxu0 0
      %1649 = vmatpush1.bf16.msra.mxu0 0
      %1650 = vmatprep.subr.bf16.mxu0 0
      %1651 = vmatpush1.bf16.msra.mxu0 0
      %1652 = vmatprep.subr.bf16.mxu0 0
      %1653 = vmatpush1.bf16.msra.mxu0 0
      %1654 = vmatprep.subr.bf16.mxu0 0
      %1655 = vmatpush1.bf16.msra.mxu0 0
      %1656 = vmatprep.subr.bf16.mxu0 0
      %1657 = vmatpush1.bf16.msra.mxu0 0
      %1658 = vmatprep.subr.bf16.mxu0 0
      %1659 = vmatpush1.bf16.msra.mxu0 0
      %1660 = vmatprep.subr.bf16.mxu0 0
      %1661 = vmatpush1.bf16.msra.mxu0 0
      %1662 = vmatprep.subr.bf16.mxu0 0
      %1663 = vmatpush1.bf16.msra.mxu0 0
      %1664 = vmatprep.subr.bf16.mxu0 0
      %1665 = vmatpush1.bf16.msra.mxu0 0
      %1666 = vmatprep.subr.bf16.mxu0 0
      %1667 = vmatpush1.bf16.msra.mxu0 0
      %1668 = vmatprep.subr.bf16.mxu0 0
      %1669 = vmatpush1.bf16.msra.mxu0 0
      %1670 = vmatprep.subr.bf16.mxu0 0
      %1671 = vmatpush1.bf16.msra.mxu0 0
      %1672 = vmatprep.mubr.bf16.mxu0 0
      %1673 = vmatmul.mubr.bf16.gmra.mrb[0].mxu0 %v1531
      %v1674 = vpop.f32.mrb[0].mxu0
      %v1675 = vadd.f32 %v1427, %v1674
      %v1676 = vpop.f32.mrb[0].mxu0
      %v1677 = vadd.f32 %v1427, %v1676
      %v1678 = vpop.f32.mrb[0].mxu0
      %v1679 = vpop.f32.mrb[0].mxu0
      %1680 = vdwg.mxu0
      %1681 = vmatprep.subr.bf16.mxu0 %v1496
      %1682 = vmatpush1.bf16.msra.mxu0 %v1495
      %1683 = vmatprep.subr.bf16.mxu0 %v1504
      %1684 = vmatpush1.bf16.msra.mxu0 %v1503
      %1685 = vmatprep.subr.bf16.mxu0 %v1556
      %1686 = vmatpush1.bf16.msra.mxu0 %v1553
      %1687 = vmatprep.subr.bf16.mxu0 0
      %1688 = vmatpush1.bf16.msra.mxu0 0
      %1689 = vmatprep.subr.bf16.mxu0 0
      %1690 = vmatpush1.bf16.msra.mxu0 0
      %1691 = vmatprep.subr.bf16.mxu0 0
      %1692 = vmatpush1.bf16.msra.mxu0 0
      %1693 = vmatprep.subr.bf16.mxu0 0
      %1694 = vmatpush1.bf16.msra.mxu0 0
      %1695 = vmatprep.subr.bf16.mxu0 0
      %1696 = vmatpush1.bf16.msra.mxu0 0
      %1697 = vmatprep.subr.bf16.mxu0 0
      %1698 = vmatpush1.bf16.msra.mxu0 0
      %1699 = vmatprep.subr.bf16.mxu0 0
      %1700 = vmatpush1.bf16.msra.mxu0 0
      %1701 = vmatprep.subr.bf16.mxu0 0
      %1702 = vmatpush1.bf16.msra.mxu0 0
      %1703 = vmatprep.subr.bf16.mxu0 0
      %1704 = vmatpush1.bf16.msra.mxu0 0
      %1705 = vmatprep.subr.bf16.mxu0 0
      %1706 = vmatpush1.bf16.msra.mxu0 0
      %1707 = vmatprep.subr.bf16.mxu0 0
      %1708 = vmatpush1.bf16.msra.mxu0 0
      %1709 = vmatprep.subr.bf16.mxu0 0
      %1710 = vmatpush1.bf16.msra.mxu0 0
      %1711 = vmatprep.subr.bf16.mxu0 0
      %1712 = vmatpush1.bf16.msra.mxu0 0
      %1713 = vmatprep.mubr.bf16.mxu0 0
      %1714 = vmatmul.mubr.bf16.gmra.mrb[0].mxu0 %v1531
      %v1715 = vpop.f32.mrb[0].mxu0
      %v1716 = vadd.f32 %v1427, %v1715
      %v1717 = vpop.f32.mrb[0].mxu0
      %v1718 = vadd.f32 %v1427, %v1717
      %v1719 = vpop.f32.mrb[0].mxu0
      %v1720 = vpop.f32.mrb[0].mxu0
      %1721 = vdwg.mxu0
      %vm1722 = vcmask 1043456
      %v1723 = vsel %vm1722, %v1593, 0.0
      %v1724 = vsel %vm1722, %v1595, 0.0
      %v1725 = vadd.f32 %v1723, %v1724
      %v1726 = vsel %vm1722, %v1634, 0.0
      %v1727 = vadd.f32 %v1725, %v1726
      %v1728 = vsel %vm1722, %v1636, 0.0
      %v1729 = vadd.f32 %v1727, %v1728
      %v1730 = vsel %vm1722, %v1675, 0.0
      %v1731 = vadd.f32 %v1729, %v1730
      %v1732 = vsel %vm1722, %v1677, 0.0
      %v1733 = vadd.f32 %v1731, %v1732
      %v1734 = vsel %vm1722, %v1716, 0.0
      %v1735 = vadd.f32 %v1733, %v1734
      %v1736 = vsel %vm1722, %v1718, 0.0
      %v1737 = vadd.f32 %v1735, %v1736
      %1738 = vadd.xlane.f32.xlu0 %v1737
      %v1739 = vpop.xlane.xlu0 %1738
      %vm1740 = vcmask 3072
      %1741 = vst.msk [vmem:[%s289] sm:$0xf] %vm1740, %v1739
      %v1742 = vmul.f32 %v1593, %v1593
      %v1743 = vmul.f32 %v1595, %v1595
      %v1744 = vmul.f32 %v1634, %v1634
      %v1745 = vmul.f32 %v1636, %v1636
      %v1746 = vmul.f32 %v1675, %v1675
      %v1747 = vmul.f32 %v1677, %v1677
      %v1748 = vmul.f32 %v1716, %v1716
      %v1749 = vmul.f32 %v1718, %v1718
      %v1750 = vsel %vm1722, %v1742, 0.0
      %v1751 = vsel %vm1722, %v1743, 0.0
      %v1752 = vadd.f32 %v1750, %v1751
      %v1753 = vsel %vm1722, %v1744, 0.0
      %v1754 = vadd.f32 %v1752, %v1753
      %v1755 = vsel %vm1722, %v1745, 0.0
      %v1756 = vadd.f32 %v1754, %v1755
      %v1757 = vsel %vm1722, %v1746, 0.0
      %v1758 = vadd.f32 %v1756, %v1757
      %v1759 = vsel %vm1722, %v1747, 0.0
      %v1760 = vadd.f32 %v1758, %v1759
      %v1761 = vsel %vm1722, %v1748, 0.0
      %v1762 = vadd.f32 %v1760, %v1761
      %v1763 = vsel %vm1722, %v1749, 0.0
      %v1764 = vadd.f32 %v1762, %v1763
      %1765 = vadd.xlane.f32.xlu0 %v1764
      %v1766 = vpop.xlane.xlu0 %1765
      %vm1767 = vcmask 11272
      %1768 = vst.msk [vmem:[%s289] sm:$0xf] %vm1767, %v1766
      %v1769 = vpack.c.bf16 %v1593, %v1593
      %v1770 = vpack.c.bf16 %v1595, %v1595
      %v1771 = vpack.c.bf16 %v1634, %v1634
      %v1772 = vpack.c.bf16 %v1636, %v1636
      %v1773 = vpack.c.bf16 %v1675, %v1675
      %v1774 = vpack.c.bf16 %v1677, %v1677
      %v1775 = vpack.c.bf16 %v1716, %v1716
      %v1776 = vpack.c.bf16 %v1718, %v1718
      %v1785 = vcombine.low %v1769, %v1770
      %v1786 = vcombine.low %v1771, %v1772
      %v1788 = vunpack.c.l.s4 1983009808
      %v1789 = vunpack.c.0.s8 %v1788
      %v1790 = vlaneseq
      %v1791 = vshrl.u32 %v1790, 7
      %v1792 = vsub.s32 %v1789, %v1791
      %v1793 = vrot.slane %v1785, %v1792
      %v1795 = vunpack.c.l.s4 1983009808
      %v1796 = vunpack.c.0.s8 %v1795
      %v1797 = vlaneseq
      %v1798 = vshrl.u32 %v1797, 7
      %v1799 = vsub.s32 %v1796, %v1798
      %v1800 = vrot.slane %v1786, %v1799
      %v1801 = vcombine.low %v1793, %v1800
      %v1802 = vcombine.low %v1773, %v1774
      %v1803 = vcombine.low %v1775, %v1776
      %v1805 = vunpack.c.l.s4 1983009808
      %v1806 = vunpack.c.0.s8 %v1805
      %v1807 = vlaneseq
      %v1808 = vshrl.u32 %v1807, 7
      %v1809 = vsub.s32 %v1806, %v1808
      %v1810 = vrot.slane %v1802, %v1809
      %v1812 = vunpack.c.l.s4 1983009808
      %v1813 = vunpack.c.0.s8 %v1812
      %v1814 = vlaneseq
      %v1815 = vshrl.u32 %v1814, 7
      %v1816 = vsub.s32 %v1813, %v1815
      %v1817 = vrot.slane %v1803, %v1816
      %v1818 = vcombine.low %v1810, %v1817
      %1821 = vst [vmem:[%s285] sm:$0xff] %v1801
      %1822 = vst [vmem:[%s285 + $0x8] sm:$0xff] %v1818
      %p1823 = scmp.lt.s32.totalorder %s19, 1
      %s1824 = scalar_select %p1823, %s19, 1
      %s1825 = smul.addr %s1824, 8
      %s1826 = smul.addr %s1825, 2
      %s1827 = scalar_lea.vmem %s6, %s1826
      %p1828 = scmp.lt.s32.totalorder %s19, 1
      %s1829 = scalar_select %p1828, %s19, 1
      %s1830 = smul.addr %s1829, 4
      %s1831 = scalar_lea.vmem %s7, %s1830
      // Predicated region
      $region45: #{decoder_block_forward.7} parent=43 // pred_check
        %p1832 = pneg %p168
      $region46: #{decoder_block_forward.7} parent=43 // pred_check_branch
        %1834 = sbr.rel (%p1832) target = $region48
      $region47: #{decoder_block_forward.7} parent=43 // pred_region
        _
      $region48: #{decoder_block_forward.7} parent=43 // pred_fallthru
        _
      // Predicated region
      $region49: #{decoder_block_forward.7} parent=43 // pred_check
        %p1835 = pneg %p194
      $region50: #{decoder_block_forward.7} parent=43 // pred_check_branch
        %1837 = sbr.rel (%p1835) target = $region52
      $region51: #{decoder_block_forward.7} parent=43 // pred_region
        _
      $region52: #{decoder_block_forward.7} parent=43 // pred_fallthru
        _
    $region44: #{decoder_block_forward.7} parent=5 // pred_fallthru
      _
    %p1838 = scmp.le.s32.totalorder 2, %s14
    // Predicated region
    $region53: #{decoder_block_forward.7} parent=5 // pred_check
      %p1839 = pneg %p1838
    $region54: #{decoder_block_forward.7} parent=5 // pred_check_branch
      %1841 = sbr.rel (%p1839) target = $region56
    $region55: #{decoder_block_forward.7} parent=5 // pred_region
      %s1842 = ssub.s32 %s14, 2
      // Predicated region
      $region57: #{decoder_block_forward.7} parent=55 // pred_check
        %p1843 = pneg %p174
      $region58: #{decoder_block_forward.7} parent=55 // pred_check_branch
        %1845 = sbr.rel (%p1843) target = $region60
      $region59: #{decoder_block_forward.7} parent=55 // pred_region
        %p1846 = scmp.lt.s32.totalorder %s20, 1
        %s1847 = scalar_select %p1846, %s20, 1
        %s1848 = smul.addr %s1847, 8
        %s1849 = smul.addr %s1848, 2
        %s1850 = scalar_lea.vmem %s6, %s1849
      $region60: #{decoder_block_forward.7} parent=55 // pred_fallthru
        _
      // Predicated region
      $region61: #{decoder_block_forward.7} parent=55 // pred_check
        %p1851 = pneg %p200
      $region62: #{decoder_block_forward.7} parent=55 // pred_check_branch
        %1853 = sbr.rel (%p1851) target = $region64
      $region63: #{decoder_block_forward.7} parent=55 // pred_region
        %p1854 = scmp.lt.s32.totalorder %s20, 1
        %s1855 = scalar_select %p1854, %s20, 1
        %s1856 = smul.addr %s1855, 4
        %s1857 = scalar_lea.vmem %s7, %s1856
      $region64: #{decoder_block_forward.7} parent=55 // pred_fallthru
        _
    $region56: #{decoder_block_forward.7} parent=5 // pred_fallthru
      _
  $region6: #{decoder_block_forward.7} parent=0 // loop_footer
    %s18 = sadd.s32 1, %s14
  $region7: #{decoder_block_forward.7} parent=0 // loop_footer_branch
    %13 = sbr.rel target = $region3
  $region8: #{decoder_block_forward.7} parent=0 // loop_exit
    _

</llo_original>
